<compile_context>
chip_gen: v5e
topology: v5e:2x2
jax: 0.10.0
libtpu: 0.0.40
codegen_flags: <defaults>
</compile_context>

<pallas_src>
import functools

import jax
import jax.numpy as jnp
from jax.experimental import pallas as pl
from jax.experimental.pallas import tpu as pltpu

BN_EPS = 1e-5
LANE = 128


# ----------------------------- in-kernel math ------------------------------ #
def _softplus(x):
    # numerically stable softplus, matches torch.nn.Softplus semantics
    return jnp.maximum(x, 0.0) + jnp.log(1.0 + jnp.exp(-jnp.abs(x)))


def _sigmoid(x):
    # exact sigmoid (no approx reciprocal) -> PyTorch numeric parity
    return 1.0 / (1.0 + jnp.exp(-x))


# ------------------------------ fused kernel ------------------------------- #
def _cgcnn_kernel(
    # scalar prefetch (SMEM)
    first_idx_ref,
    # inputs
    atom0_ref, idx_ref, nbr_ref,
    wself_ref, wnbr_ref, wbond_ref, convb_ref, bn2_ref,
    fc1wa_ref, globh_ref, fc2w_ref, fc2b_ref,
    # outputs
    out_ref,
    # scratch
    atom_scr,
    *, n_atoms, n_nbrs, fp, n_crystals,
):
    N, M, Fp = n_atoms, n_nbrs, fp
    layer = pl.program_id(0)
    n_layers = pl.num_programs(0)

    # ---- init: embedded (wrapper-computed) atom features -> resident scratch
    @pl.when(layer == 0)
    def _init():
        atom_scr[...] = atom0_ref[...]

    # ---- ConvLayer `layer` (bn1 folded into W/b; bn2 -> scale/shift) -------
    atom = atom_scr[...]                                       # (N, Fp) f32
    atom_bf = atom.astype(jnp.bfloat16)

    # per-atom "self" contribution (+ folded bn1 bias), shared by all M slots
    self_z = (jnp.dot(atom_bf, wself_ref[...],
                      preferred_element_type=jnp.float32)
              + convb_ref[...])                                # (N, 2Fp)

    # bond contribution: one small-K matmul per layer over all N*M pairs
    zbond = jnp.dot(nbr_ref[...], wbond_ref[...],
                    preferred_element_type=jnp.float32)        # (M*N, 2Fp)
    zbond = zbond.reshape(M, N, 2 * Fp)
    # NOTE: fusing this K=B matmul into the neighbor dot via a lane concat was
    # considered; the (Fp + B) concat relayout costs more than one small matmul.

    idx = idx_ref[...]                                         # (M, N) int32
    # lane-oriented view of the atom table for the in-register neighbor gather
    atom_t = atom.T                                            # (Fp, N)

    accum = jnp.zeros((N, Fp), jnp.float32)
    for m in range(M):                                         # M small & static
        # real gather: row j of the result is atom[nbr_idx[j, m], :]
        idx_b = jnp.broadcast_to(idx[m:m + 1, :], (Fp, N))     # (Fp, N)
        g_t = jnp.take_along_axis(atom_t, idx_b, axis=1)       # lane gather
        gathered = g_t.T.astype(jnp.bfloat16)                  # (N, Fp)
        z_m = (jnp.dot(gathered, wnbr_ref[...],
                       preferred_element_type=jnp.float32)
               + self_z + zbond[m])                            # (N, 2Fp)
        # chunk(2): [:Fp] filter (sigmoid), [Fp:] core (softplus); 128-aligned
        accum = accum + _sigmoid(z_m[:, :Fp]) * _softplus(z_m[:, Fp:])

    scale2 = bn2_ref[0:1, :]                                   # (1, Fp)
    shift2 = bn2_ref[1:2, :]                                   # (1, Fp)
    atom_scr[...] = _softplus(atom + accum * scale2 + shift2)

    # ---- pooling + head (last grid step only) -------------------------------
    @pl.when(layer == n_layers - 1)
    def _head():
        # "first atom of each crystal" pooling: index the scratch directly via
        # SMEM scalars (no one-hot matmul).
        rows = [atom_scr[pl.ds(first_idx_ref[c], 1), :]
                for c in range(n_crystals)]
        crys = jnp.concatenate(rows, axis=0)                   # (N0, Fp)
        # conv_to_fc(softplus(cat([crys, glob]))): the glob branch is
        # precombined in the wrapper (glob_h = softplus(glob) @ Wg + b).
        h = (jnp.dot(_softplus(crys), fc1wa_ref[...],
                     preferred_element_type=jnp.float32)
             + globh_ref[...])
        h = _softplus(h)
        out_ref[...] = (jnp.dot(h, fc2w_ref[...],
                                preferred_element_type=jnp.float32)
                        + fc2b_ref[...])


# --------------------------- full network forward -------------------------- #
def _round_up(x, m):
    return (x + m - 1) // m * m


def _vmem_cap_bytes():
    # Generation-aware VMEM capacity (v5e/v6e 128 MiB, v7x 64 MiB).
    try:
        return int(pltpu.get_tpu_info().vmem_capacity_bytes)
    except Exception:
        return 64 * 2 ** 20          # conservative fallback (v7x per-core VMEM)


def cgcnn_forward(params, atom_fea, nbr_fea, nbr_fea_idx, crystal_atom_idx,
                  global_fea):
    f32, bf16 = jnp.float32, jnp.bfloat16
    N, M, B = nbr_fea.shape
    F = params["embedding_w"].shape[1]
    Fp = max(LANE, _round_up(F, LANE))          # lane-dense feature width
    n_conv = len(params["convs"])
    assert n_conv >= 1
    H = params["conv_to_fc_w"].shape[1]
    out_dim = params["fc_out_w"].shape[1]
    N0 = len(crystal_atom_idx)

    # ---- embedding in the wrapper (only needed at layer 0) ------------------
    atom0 = (atom_fea.astype(f32) @ params["embedding_w"]
             + params["embedding_b"][None, :])                 # (N, F)
    atom0_p = jnp.pad(atom0, ((0, 0), (0, Fp - F)))            # (N, Fp)

    # ---- neighbor bond features / indices, (M, N)-ordered -------------------
    nbr_mn = (nbr_fea.astype(f32).transpose(1, 0, 2)
              .reshape(M * N, B).astype(bf16))                 # (M*N, B) bf16
    idx_mn = nbr_fea_idx.astype(jnp.int32).T                   # (M, N)

    # ---- fold eval-mode BN into conv weights, pad lanes, pre-split ----------
    def pad_half_cols(w2f):
        # (rows, 2F) -> (rows, 2Fp); filter/core halves padded separately so
        # the in-kernel chunk split lands exactly at lane 0 / lane Fp.
        filt, core = w2f[:, :F], w2f[:, F:]
        zc = jnp.zeros((w2f.shape[0], Fp - F), w2f.dtype)
        return jnp.concatenate([filt, zc, core, zc], axis=1)

    w_self_l, w_nbr_l, w_bond_l, conv_b_l, bn2_l = [], [], [], [], []
    for cp in params["convs"]:
        s1 = cp["bn1_gamma"] * jax.lax.rsqrt(cp["bn1_var"] + BN_EPS)   # (2F,)
        Wf = cp["fc_full_w"] * s1[None, :]                             # (2F+B, 2F)
        bfold = (cp["fc_full_b"] - cp["bn1_mean"]) * s1 + cp["bn1_beta"]
        Wp = pad_half_cols(Wf)                                         # (2F+B, 2Fp)
        w_self_l.append(jnp.pad(Wp[:F], ((0, Fp - F), (0, 0))))        # (Fp, 2Fp)
        w_nbr_l.append(jnp.pad(Wp[F:2 * F], ((0, Fp - F), (0, 0))))    # (Fp, 2Fp)
        w_bond_l.append(Wp[2 * F:])                                    # (B, 2Fp)
        conv_b_l.append(pad_half_cols(bfold.reshape(1, 2 * F)))        # (1, 2Fp)
        s2 = cp["bn2_gamma"] * jax.lax.rsqrt(cp["bn2_var"] + BN_EPS)   # (F,)
        c2 = cp["bn2_beta"] - cp["bn2_mean"] * s2
        bn2_l.append(jnp.stack([jnp.pad(s2, (0, Fp - F)),
                                jnp.pad(c2, (0, Fp - F))]))            # (2, Fp)
    w_self_s = jnp.stack(w_self_l).astype(bf16)     # (n_conv, Fp, 2Fp)
    w_nbr_s = jnp.stack(w_nbr_l).astype(bf16)       # (n_conv, Fp, 2Fp)
    w_bond_s = jnp.stack(w_bond_l).astype(bf16)     # (n_conv, B, 2Fp)
    conv_b_s = jnp.stack(conv_b_l)                  # (n_conv, 1, 2Fp) f32
    bn2_s = jnp.stack(bn2_l)                        # (n_conv, 2, Fp)  f32

    # ---- head params; global branch of conv_to_fc precombined ---------------
    fc1_w = params["conv_to_fc_w"]                                  # (F+G, H)
    fc1_wa = jnp.pad(fc1_w[:F], ((0, Fp - F), (0, 0)))              # (Fp, H)
    glob_h = (jax.nn.softplus(global_fea.astype(f32)) @ fc1_w[F:]
              + params["conv_to_fc_b"][None, :])                    # (N0, H)
    fc2_w = params["fc_out_w"]                                      # (H, out)
    fc2_b = params["fc_out_b"].reshape(1, out_dim)

    # first atom of each crystal (cgcnndefect pooling: idx_map[0]); jit-safe
    first_idx = jnp.stack([im[0] for im in crystal_atom_idx]).astype(jnp.int32)

    tensor_args = (atom0_p, idx_mn, nbr_mn,
                   w_self_s, w_nbr_s, w_bond_s, conv_b_s, bn2_s,
                   fc1_wa, glob_h, fc2_w, fc2_b)

    def const_spec(a):
        # fetched once, never changes -> single buffer
        return pl.BlockSpec(a.shape, lambda l, fi, _nd=a.ndim: (0,) * _nd,
                            pipeline_mode=pl.Buffered(1))

    in_specs = [
        const_spec(atom0_p), const_spec(idx_mn), const_spec(nbr_mn),
        # per-layer stacked params, selected by the layer grid index
        pl.BlockSpec((None, Fp, 2 * Fp), lambda l, fi: (l, 0, 0)),
        pl.BlockSpec((None, Fp, 2 * Fp), lambda l, fi: (l, 0, 0)),
        pl.BlockSpec((None, B, 2 * Fp), lambda l, fi: (l, 0, 0)),
        pl.BlockSpec((None, 1, 2 * Fp), lambda l, fi: (l, 0, 0)),
        pl.BlockSpec((None, 2, Fp), lambda l, fi: (l, 0, 0)),
        const_spec(fc1_wa), const_spec(glob_h), const_spec(fc2_w),
        const_spec(fc2_b),
    ]

    # ---- explicit, generation-aware VMEM budget ------------------------------
    def _nbytes(a):
        return int(a.size) * a.dtype.itemsize

    const_bytes = sum(_nbytes(a) for a in (atom0_p, idx_mn, nbr_mn, fc1_wa,
                                           glob_h, fc2_w, fc2_b))
    layer_block_bytes = sum(_nbytes(a) // n_conv
                            for a in (w_self_s, w_nbr_s, w_bond_s,
                                      conv_b_s, bn2_s))
    scratch_bytes = N * Fp * 4
    out_bytes = N0 * out_dim * 4
    need = (const_bytes                      # single-buffered constants
            + 2 * layer_block_bytes          # double-buffered per-layer blocks
            + 2 * out_bytes + scratch_bytes)
    need = need * 3 // 2 + (8 << 20)         # headroom for in-kernel temporaries
    cap = _vmem_cap_bytes()
    vmem_limit = int(min(cap - (8 << 20), max(need, 32 << 20)))

    kern = functools.partial(_cgcnn_kernel, n_atoms=N, n_nbrs=M, fp=Fp,
                             n_crystals=N0)
    out = pl.pallas_call(
        kern,
        out_shape=jax.ShapeDtypeStruct((N0, out_dim), f32),
        grid_spec=pltpu.PrefetchScalarGridSpec(
            num_scalar_prefetch=1,           # first arg (first_idx) -> SMEM
            grid=(n_conv,),
            in_specs=in_specs,
            out_specs=pl.BlockSpec((N0, out_dim), lambda l, fi: (0, 0)),
            scratch_shapes=[pltpu.VMEM((N, Fp), f32)],   # atom features resident
        ),
        compiler_params=pltpu.CompilerParams(
            dimension_semantics=("arbitrary",),          # layer axis sequential
            vmem_limit_bytes=vmem_limit,
        ),
    )(first_idx, *tensor_args)
    # n_h == 1 -> no extra hidden fc layers (matches module defaults)
    return [out]


# --------------------------- deterministic params --------------------------- #
def _init_linear(key, fan_in, fan_out):
    kw, kb = jax.random.split(key)
    bound = 1.0 / jnp.sqrt(jnp.asarray(fan_in, jnp.float32))
    w = jax.random.uniform(kw, (fan_in, fan_out), jnp.float32, -bound, bound)
    b = jax.random.uniform(kb, (fan_out,), jnp.float32, -bound, bound)
    return w, b


def init_params(key, orig_atom_fea_len, nbr_fea_len, atom_fea_len, n_conv,
                h_fea_len, global_fea_len, new_output_dim):
    keys = jax.random.split(key, 3 + n_conv)
    params = {}
    params["embedding_w"], params["embedding_b"] = _init_linear(
        keys[0], orig_atom_fea_len, atom_fea_len)
    convs = []
    for c in range(n_conv):
        w, b = _init_linear(keys[1 + c],
                            2 * atom_fea_len + nbr_fea_len, 2 * atom_fea_len)
        convs.append({
            "fc_full_w": w, "fc_full_b": b,
            # PyTorch BatchNorm1d defaults (eval mode)
            "bn1_gamma": jnp.ones((2 * atom_fea_len,), jnp.float32),
            "bn1_beta": jnp.zeros((2 * atom_fea_len,), jnp.float32),
            "bn1_mean": jnp.zeros((2 * atom_fea_len,), jnp.float32),
            "bn1_var": jnp.ones((2 * atom_fea_len,), jnp.float32),
            "bn2_gamma": jnp.ones((atom_fea_len,), jnp.float32),
            "bn2_beta": jnp.zeros((atom_fea_len,), jnp.float32),
            "bn2_mean": jnp.zeros((atom_fea_len,), jnp.float32),
            "bn2_var": jnp.ones((atom_fea_len,), jnp.float32),
        })
    params["convs"] = convs
    params["conv_to_fc_w"], params["conv_to_fc_b"] = _init_linear(
        keys[1 + n_conv], atom_fea_len + global_fea_len, h_fea_len)
    params["fc_out_w"], params["fc_out_b"] = _init_linear(
        keys[2 + n_conv], h_fea_len, new_output_dim)
    return params


# ----------------------------------- main ----------------------------------- #
if __name__ == "__main__":
    # small, module-consistent shapes
    N = 16                 # total atoms in batch
    M = 8                  # max neighbors (sublane-aligned)
    orig_atom_fea_len = 16
    nbr_fea_len = 8
    atom_fea_len = 32
    n_conv = 3
    h_fea_len = 64
    global_fea_len = 4
    new_output_dim = 1
    N0 = 2                 # crystals in batch (8 atoms each)

    key = jax.random.PRNGKey(0)
    k_par, k_af, k_nf, k_idx, k_gf = jax.random.split(key, 5)

    params = init_params(k_par, orig_atom_fea_len, nbr_fea_len, atom_fea_len,
                         n_conv, h_fea_len, global_fea_len, new_output_dim)

    atom_fea = jax.random.normal(k_af, (N, orig_atom_fea_len), jnp.float32)
    nbr_fea = jax.random.normal(k_nf, (N, M, nbr_fea_len), jnp.float32)
    nbr_fea_idx = jax.random.randint(k_idx, (N, M), 0, N, dtype=jnp.int32)
    global_fea = jax.random.normal(k_gf, (N0, global_fea_len), jnp.float32)
    crystal_atom_idx = [jnp.arange(0, 8, dtype=jnp.int32),
                        jnp.arange(8, 16, dtype=jnp.int32)]

    fwd = jax.jit(cgcnn_forward)   # fully jit-safe: no host syncs in the wrapper
    outs = fwd(params, atom_fea, nbr_fea, nbr_fea_idx,
               crystal_atom_idx, global_fea)
    out = jax.block_until_ready(outs[0])
    assert out.shape == (N0, new_output_dim)
    assert bool(jnp.all(jnp.isfinite(out)))
    print("KERNEL_OK")
</pallas_src>

<mosaic_0001>
module attributes {stable_mosaic.version = 11 : i64} {
  func.func @_cgcnn_kernel(%arg0: i32, %arg1: memref<2xi32, #tpu.memory_space<smem>>, %arg2: memref<16x128xf32, #tpu.memory_space<vmem>>, %arg3: memref<8x16xi32, #tpu.memory_space<vmem>>, %arg4: memref<128x8xbf16, #tpu.memory_space<vmem>>, %arg5: memref<1x128x256xbf16, #tpu.memory_space<vmem>>, %arg6: memref<1x128x256xbf16, #tpu.memory_space<vmem>>, %arg7: memref<1x8x256xbf16, #tpu.memory_space<vmem>>, %arg8: memref<1x1x256xf32, #tpu.memory_space<vmem>>, %arg9: memref<1x2x128xf32, #tpu.memory_space<vmem>>, %arg10: memref<128x64xf32, #tpu.memory_space<vmem>>, %arg11: memref<2x64xf32, #tpu.memory_space<vmem>>, %arg12: memref<64x1xf32, #tpu.memory_space<vmem>>, %arg13: memref<1x1xf32, #tpu.memory_space<vmem>>, %arg14: memref<2x1xf32, #tpu.memory_space<vmem>>, %arg15: memref<16x128xf32, #tpu.memory_space<vmem>>) attributes {dimension_semantics = [#tpu.dimension_semantics<arbitrary>], iteration_bounds = array<i64: 3>, scalar_prefetch = 1 : i64, scratch_operands = 1 : i64, tpu.core_type = #tpu.core_type<tc>, window_params = [{pipeline_mode = #tpu.pipeline_mode<synchronous>, transform_indices = @transform_0, window_bounds = array<i64: 16, 128>}, {pipeline_mode = #tpu.pipeline_mode<synchronous>, transform_indices = @transform_1, window_bounds = array<i64: 8, 16>}, {pipeline_mode = #tpu.pipeline_mode<synchronous>, transform_indices = @transform_2, window_bounds = array<i64: 128, 8>}, {transform_indices = @transform_3, window_bounds = array<i64: 1, 128, 256>}, {transform_indices = @transform_4, window_bounds = array<i64: 1, 128, 256>}, {transform_indices = @transform_5, window_bounds = array<i64: 1, 8, 256>}, {transform_indices = @transform_6, window_bounds = array<i64: 1, 1, 256>}, {transform_indices = @transform_7, window_bounds = array<i64: 1, 2, 128>}, {pipeline_mode = #tpu.pipeline_mode<synchronous>, transform_indices = @transform_8, window_bounds = array<i64: 128, 64>}, {pipeline_mode = #tpu.pipeline_mode<synchronous>, transform_indices = @transform_9, window_bounds = array<i64: 2, 64>}, {pipeline_mode = #tpu.pipeline_mode<synchronous>, transform_indices = @transform_10, window_bounds = array<i64: 64, 1>}, {pipeline_mode = #tpu.pipeline_mode<synchronous>, transform_indices = @transform_11, window_bounds = array<i64: 1, 1>}, {pipeline_mode = #tpu.pipeline_mode<synchronous>, transform_indices = @transform_12, window_bounds = array<i64: 2, 1>}]} {
    %c0_i32 = arith.constant 0 : i32
    %0 = arith.cmpi eq, %arg0, %c0_i32 : i32
    %1 = arith.extui %0 : i1 to i32
    %c0_i32_0 = arith.constant 0 : i32
    %2 = arith.cmpi ne, %1, %c0_i32_0 : i32
    scf.if %2 {
      %c0_123 = arith.constant 0 : index
      %c0_124 = arith.constant 0 : index
      %371 = vector.load %arg2[%c0_123, %c0_124] : memref<16x128xf32, #tpu.memory_space<vmem>>, vector<16x128xf32>
      %c0_125 = arith.constant 0 : index
      %c0_126 = arith.constant 0 : index
      %372 = vector.load %arg15[%c0_125, %c0_126] : memref<16x128xf32, #tpu.memory_space<vmem>>, vector<16x128xf32>
      tpu.vector_store %arg15[%c0_125, %c0_126], %371 {strides = array<i32>} : memref<16x128xf32, #tpu.memory_space<vmem>>, vector<16x128xf32>,
    } else {
    }
    %c0 = arith.constant 0 : index
    %c0_1 = arith.constant 0 : index
    %3 = vector.load %arg15[%c0, %c0_1] : memref<16x128xf32, #tpu.memory_space<vmem>>, vector<16x128xf32>
    %4 = arith.truncf %3 : vector<16x128xf32> to vector<16x128xbf16>
    %c0_2 = arith.constant 0 : index
    %c0_3 = arith.constant 0 : index
    %c0_4 = arith.constant 0 : index
    %5 = vector.load %arg5[%c0_2, %c0_3, %c0_4] : memref<1x128x256xbf16, #tpu.memory_space<vmem>>, vector<1x128x256xbf16>
    %6 = vector.shape_cast %5 : vector<1x128x256xbf16> to vector<128x256xbf16>
    %cst = arith.constant dense<0.000000e+00> : vector<16x256xf32>
    %7 = tpu.matmul %4, %6, %cst {dimension_numbers = #tpu.dot_dimension_numbers<[1], [0], [0], [1], [0, 0, 1, 1], [], []>} : vector<16x128xbf16>, vector<128x256xbf16>, vector<16x256xf32> -> vector<16x256xf32>
    %c0_5 = arith.constant 0 : index
    %c0_6 = arith.constant 0 : index
    %c0_7 = arith.constant 0 : index
    %8 = vector.load %arg8[%c0_5, %c0_6, %c0_7] : memref<1x1x256xf32, #tpu.memory_space<vmem>>, vector<1x1x256xf32>
    %9 = vector.shape_cast %8 : vector<1x1x256xf32> to vector<1x256xf32>
    %10 = vector.broadcast %9 : vector<1x256xf32> to vector<16x256xf32>
    %11 = arith.addf %7, %10 : vector<16x256xf32>
    %c0_8 = arith.constant 0 : index
    %c0_9 = arith.constant 0 : index
    %12 = vector.load %arg4[%c0_8, %c0_9] : memref<128x8xbf16, #tpu.memory_space<vmem>>, vector<128x8xbf16>
    %c0_10 = arith.constant 0 : index
    %c0_11 = arith.constant 0 : index
    %c0_12 = arith.constant 0 : index
    %13 = vector.load %arg7[%c0_10, %c0_11, %c0_12] : memref<1x8x256xbf16, #tpu.memory_space<vmem>>, vector<1x8x256xbf16>
    %14 = vector.shape_cast %13 : vector<1x8x256xbf16> to vector<8x256xbf16>
    %cst_13 = arith.constant dense<0.000000e+00> : vector<128x256xf32>
    %15 = tpu.matmul %12, %14, %cst_13 {dimension_numbers = #tpu.dot_dimension_numbers<[1], [0], [0], [1], [0, 0, 1, 1], [], []>} : vector<128x8xbf16>, vector<8x256xbf16>, vector<128x256xf32> -> vector<128x256xf32>
    %16 = vector.shape_cast %15 : vector<128x256xf32> to vector<8x16x256xf32>
    %c0_14 = arith.constant 0 : index
    %c0_15 = arith.constant 0 : index
    %17 = vector.load %arg3[%c0_14, %c0_15] : memref<8x16xi32, #tpu.memory_space<vmem>>, vector<8x16xi32>
    %18 = tpu.transpose %3, [1, 0] : vector<16x128xf32> -> vector<128x16xf32>
    %cst_16 = arith.constant 0.000000e+00 : f32
    %19 = vector.broadcast %cst_16 : f32 to vector<16x128xf32>
    %20 = vector.extract_strided_slice %17 {offsets = [0, 0], sizes = [1, 16], strides = [1, 1]} : vector<8x16xi32> to vector<1x16xi32>
    %21 = vector.shape_cast %20 : vector<1x16xi32> to vector<1x16xi32>
    %22 = vector.broadcast %21 : vector<1x16xi32> to vector<128x16xi32>
    %c0_i32_17 = arith.constant 0 : i32
    %23 = vector.broadcast %c0_i32_17 : i32 to vector<128x16xi32>
    %24 = arith.cmpi slt, %22, %23 : vector<128x16xi32>
    %c16_i32 = arith.constant 16 : i32
    %25 = vector.broadcast %c16_i32 : i32 to vector<128x16xi32>
    %26 = arith.addi %22, %25 : vector<128x16xi32>
    %27 = arith.select %24, %26, %22 : vector<128x16xi1>, vector<128x16xi32>
    %28 = vector.shape_cast %27 : vector<128x16xi32> to vector<128x16x1xi32>
    %29 = vector.shape_cast %28 : vector<128x16x1xi32> to vector<128x16xi32>
    %30 = tpu.dynamic_gather %18[%29] in [1] : vector<128x16xf32>, vector<128x16xi32> -> vector<128x16xf32>
    %31 = tpu.transpose %30, [1, 0] : vector<128x16xf32> -> vector<16x128xf32>
    %32 = arith.truncf %31 : vector<16x128xf32> to vector<16x128xbf16>
    %c0_18 = arith.constant 0 : index
    %c0_19 = arith.constant 0 : index
    %c0_20 = arith.constant 0 : index
    %33 = vector.load %arg6[%c0_18, %c0_19, %c0_20] : memref<1x128x256xbf16, #tpu.memory_space<vmem>>, vector<1x128x256xbf16>
    %34 = vector.shape_cast %33 : vector<1x128x256xbf16> to vector<128x256xbf16>
    %cst_21 = arith.constant dense<0.000000e+00> : vector<16x256xf32>
    %35 = tpu.matmul %32, %34, %cst_21 {dimension_numbers = #tpu.dot_dimension_numbers<[1], [0], [0], [1], [0, 0, 1, 1], [], []>} : vector<16x128xbf16>, vector<128x256xbf16>, vector<16x256xf32> -> vector<16x256xf32>
    %36 = arith.addf %35, %11 : vector<16x256xf32>
    %37 = vector.extract_strided_slice %16 {offsets = [0, 0, 0], sizes = [1, 16, 256], strides = [1, 1, 1]} : vector<8x16x256xf32> to vector<1x16x256xf32>
    %38 = vector.shape_cast %37 : vector<1x16x256xf32> to vector<16x256xf32>
    %39 = arith.addf %36, %38 : vector<16x256xf32>
    %40 = vector.extract_strided_slice %39 {offsets = [0, 0], sizes = [16, 128], strides = [1, 1]} : vector<16x256xf32> to vector<16x128xf32>
    %cst_22 = arith.constant 0.000000e+00 : f32
    %41 = vector.broadcast %cst_22 : f32 to vector<16x128xf32>
    %42 = arith.subf %41, %40 : vector<16x128xf32>
    %43 = math.exp %42 : vector<16x128xf32>
    %cst_23 = arith.constant 1.000000e+00 : f32
    %44 = vector.broadcast %cst_23 : f32 to vector<16x128xf32>
    %45 = arith.addf %44, %43 : vector<16x128xf32>
    %cst_24 = arith.constant 1.000000e+00 : f32
    %46 = vector.broadcast %cst_24 : f32 to vector<16x128xf32>
    %47 = arith.divf %46, %45 : vector<16x128xf32>
    %48 = vector.extract_strided_slice %39 {offsets = [0, 128], sizes = [16, 128], strides = [1, 1]} : vector<16x256xf32> to vector<16x128xf32>
    %cst_25 = arith.constant 0.000000e+00 : f32
    %49 = vector.broadcast %cst_25 : f32 to vector<16x128xf32>
    %50 = arith.maximumf %48, %49 : vector<16x128xf32>
    %51 = math.absf %48 : vector<16x128xf32>
    %cst_26 = arith.constant 0.000000e+00 : f32
    %52 = vector.broadcast %cst_26 : f32 to vector<16x128xf32>
    %53 = arith.subf %52, %51 : vector<16x128xf32>
    %54 = math.exp %53 : vector<16x128xf32>
    %cst_27 = arith.constant 1.000000e+00 : f32
    %55 = vector.broadcast %cst_27 : f32 to vector<16x128xf32>
    %56 = arith.addf %55, %54 : vector<16x128xf32>
    %57 = math.log %56 : vector<16x128xf32>
    %58 = arith.addf %50, %57 : vector<16x128xf32>
    %59 = arith.mulf %47, %58 : vector<16x128xf32>
    %60 = arith.addf %19, %59 : vector<16x128xf32>
    %61 = vector.extract_strided_slice %17 {offsets = [1, 0], sizes = [1, 16], strides = [1, 1]} : vector<8x16xi32> to vector<1x16xi32>
    %62 = vector.shape_cast %61 : vector<1x16xi32> to vector<1x16xi32>
    %63 = vector.broadcast %62 : vector<1x16xi32> to vector<128x16xi32>
    %c0_i32_28 = arith.constant 0 : i32
    %64 = vector.broadcast %c0_i32_28 : i32 to vector<128x16xi32>
    %65 = arith.cmpi slt, %63, %64 : vector<128x16xi32>
    %c16_i32_29 = arith.constant 16 : i32
    %66 = vector.broadcast %c16_i32_29 : i32 to vector<128x16xi32>
    %67 = arith.addi %63, %66 : vector<128x16xi32>
    %68 = arith.select %65, %67, %63 : vector<128x16xi1>, vector<128x16xi32>
    %69 = vector.shape_cast %68 : vector<128x16xi32> to vector<128x16x1xi32>
    %70 = vector.shape_cast %69 : vector<128x16x1xi32> to vector<128x16xi32>
    %71 = tpu.dynamic_gather %18[%70] in [1] : vector<128x16xf32>, vector<128x16xi32> -> vector<128x16xf32>
    %72 = tpu.transpose %71, [1, 0] : vector<128x16xf32> -> vector<16x128xf32>
    %73 = arith.truncf %72 : vector<16x128xf32> to vector<16x128xbf16>
    %c0_30 = arith.constant 0 : index
    %c0_31 = arith.constant 0 : index
    %c0_32 = arith.constant 0 : index
    %74 = vector.load %arg6[%c0_30, %c0_31, %c0_32] : memref<1x128x256xbf16, #tpu.memory_space<vmem>>, vector<1x128x256xbf16>
    %75 = vector.shape_cast %74 : vector<1x128x256xbf16> to vector<128x256xbf16>
    %cst_33 = arith.constant dense<0.000000e+00> : vector<16x256xf32>
    %76 = tpu.matmul %73, %75, %cst_33 {dimension_numbers = #tpu.dot_dimension_numbers<[1], [0], [0], [1], [0, 0, 1, 1], [], []>} : vector<16x128xbf16>, vector<128x256xbf16>, vector<16x256xf32> -> vector<16x256xf32>
    %77 = arith.addf %76, %11 : vector<16x256xf32>
    %78 = vector.extract_strided_slice %16 {offsets = [1, 0, 0], sizes = [1, 16, 256], strides = [1, 1, 1]} : vector<8x16x256xf32> to vector<1x16x256xf32>
    %79 = vector.shape_cast %78 : vector<1x16x256xf32> to vector<16x256xf32>
    %80 = arith.addf %77, %79 : vector<16x256xf32>
    %81 = vector.extract_strided_slice %80 {offsets = [0, 0], sizes = [16, 128], strides = [1, 1]} : vector<16x256xf32> to vector<16x128xf32>
    %cst_34 = arith.constant 0.000000e+00 : f32
    %82 = vector.broadcast %cst_34 : f32 to vector<16x128xf32>
    %83 = arith.subf %82, %81 : vector<16x128xf32>
    %84 = math.exp %83 : vector<16x128xf32>
    %cst_35 = arith.constant 1.000000e+00 : f32
    %85 = vector.broadcast %cst_35 : f32 to vector<16x128xf32>
    %86 = arith.addf %85, %84 : vector<16x128xf32>
    %cst_36 = arith.constant 1.000000e+00 : f32
    %87 = vector.broadcast %cst_36 : f32 to vector<16x128xf32>
    %88 = arith.divf %87, %86 : vector<16x128xf32>
    %89 = vector.extract_strided_slice %80 {offsets = [0, 128], sizes = [16, 128], strides = [1, 1]} : vector<16x256xf32> to vector<16x128xf32>
    %cst_37 = arith.constant 0.000000e+00 : f32
    %90 = vector.broadcast %cst_37 : f32 to vector<16x128xf32>
    %91 = arith.maximumf %89, %90 : vector<16x128xf32>
    %92 = math.absf %89 : vector<16x128xf32>
    %cst_38 = arith.constant 0.000000e+00 : f32
    %93 = vector.broadcast %cst_38 : f32 to vector<16x128xf32>
    %94 = arith.subf %93, %92 : vector<16x128xf32>
    %95 = math.exp %94 : vector<16x128xf32>
    %cst_39 = arith.constant 1.000000e+00 : f32
    %96 = vector.broadcast %cst_39 : f32 to vector<16x128xf32>
    %97 = arith.addf %96, %95 : vector<16x128xf32>
    %98 = math.log %97 : vector<16x128xf32>
    %99 = arith.addf %91, %98 : vector<16x128xf32>
    %100 = arith.mulf %88, %99 : vector<16x128xf32>
    %101 = arith.addf %60, %100 : vector<16x128xf32>
    %102 = vector.extract_strided_slice %17 {offsets = [2, 0], sizes = [1, 16], strides = [1, 1]} : vector<8x16xi32> to vector<1x16xi32>
    %103 = vector.shape_cast %102 : vector<1x16xi32> to vector<1x16xi32>
    %104 = vector.broadcast %103 : vector<1x16xi32> to vector<128x16xi32>
    %c0_i32_40 = arith.constant 0 : i32
    %105 = vector.broadcast %c0_i32_40 : i32 to vector<128x16xi32>
    %106 = arith.cmpi slt, %104, %105 : vector<128x16xi32>
    %c16_i32_41 = arith.constant 16 : i32
    %107 = vector.broadcast %c16_i32_41 : i32 to vector<128x16xi32>
    %108 = arith.addi %104, %107 : vector<128x16xi32>
    %109 = arith.select %106, %108, %104 : vector<128x16xi1>, vector<128x16xi32>
    %110 = vector.shape_cast %109 : vector<128x16xi32> to vector<128x16x1xi32>
    %111 = vector.shape_cast %110 : vector<128x16x1xi32> to vector<128x16xi32>
    %112 = tpu.dynamic_gather %18[%111] in [1] : vector<128x16xf32>, vector<128x16xi32> -> vector<128x16xf32>
    %113 = tpu.transpose %112, [1, 0] : vector<128x16xf32> -> vector<16x128xf32>
    %114 = arith.truncf %113 : vector<16x128xf32> to vector<16x128xbf16>
    %c0_42 = arith.constant 0 : index
    %c0_43 = arith.constant 0 : index
    %c0_44 = arith.constant 0 : index
    %115 = vector.load %arg6[%c0_42, %c0_43, %c0_44] : memref<1x128x256xbf16, #tpu.memory_space<vmem>>, vector<1x128x256xbf16>
    %116 = vector.shape_cast %115 : vector<1x128x256xbf16> to vector<128x256xbf16>
    %cst_45 = arith.constant dense<0.000000e+00> : vector<16x256xf32>
    %117 = tpu.matmul %114, %116, %cst_45 {dimension_numbers = #tpu.dot_dimension_numbers<[1], [0], [0], [1], [0, 0, 1, 1], [], []>} : vector<16x128xbf16>, vector<128x256xbf16>, vector<16x256xf32> -> vector<16x256xf32>
    %118 = arith.addf %117, %11 : vector<16x256xf32>
    %119 = vector.extract_strided_slice %16 {offsets = [2, 0, 0], sizes = [1, 16, 256], strides = [1, 1, 1]} : vector<8x16x256xf32> to vector<1x16x256xf32>
    %120 = vector.shape_cast %119 : vector<1x16x256xf32> to vector<16x256xf32>
    %121 = arith.addf %118, %120 : vector<16x256xf32>
    %122 = vector.extract_strided_slice %121 {offsets = [0, 0], sizes = [16, 128], strides = [1, 1]} : vector<16x256xf32> to vector<16x128xf32>
    %cst_46 = arith.constant 0.000000e+00 : f32
    %123 = vector.broadcast %cst_46 : f32 to vector<16x128xf32>
    %124 = arith.subf %123, %122 : vector<16x128xf32>
    %125 = math.exp %124 : vector<16x128xf32>
    %cst_47 = arith.constant 1.000000e+00 : f32
    %126 = vector.broadcast %cst_47 : f32 to vector<16x128xf32>
    %127 = arith.addf %126, %125 : vector<16x128xf32>
    %cst_48 = arith.constant 1.000000e+00 : f32
    %128 = vector.broadcast %cst_48 : f32 to vector<16x128xf32>
    %129 = arith.divf %128, %127 : vector<16x128xf32>
    %130 = vector.extract_strided_slice %121 {offsets = [0, 128], sizes = [16, 128], strides = [1, 1]} : vector<16x256xf32> to vector<16x128xf32>
    %cst_49 = arith.constant 0.000000e+00 : f32
    %131 = vector.broadcast %cst_49 : f32 to vector<16x128xf32>
    %132 = arith.maximumf %130, %131 : vector<16x128xf32>
    %133 = math.absf %130 : vector<16x128xf32>
    %cst_50 = arith.constant 0.000000e+00 : f32
    %134 = vector.broadcast %cst_50 : f32 to vector<16x128xf32>
    %135 = arith.subf %134, %133 : vector<16x128xf32>
    %136 = math.exp %135 : vector<16x128xf32>
    %cst_51 = arith.constant 1.000000e+00 : f32
    %137 = vector.broadcast %cst_51 : f32 to vector<16x128xf32>
    %138 = arith.addf %137, %136 : vector<16x128xf32>
    %139 = math.log %138 : vector<16x128xf32>
    %140 = arith.addf %132, %139 : vector<16x128xf32>
    %141 = arith.mulf %129, %140 : vector<16x128xf32>
    %142 = arith.addf %101, %141 : vector<16x128xf32>
    %143 = vector.extract_strided_slice %17 {offsets = [3, 0], sizes = [1, 16], strides = [1, 1]} : vector<8x16xi32> to vector<1x16xi32>
    %144 = vector.shape_cast %143 : vector<1x16xi32> to vector<1x16xi32>
    %145 = vector.broadcast %144 : vector<1x16xi32> to vector<128x16xi32>
    %c0_i32_52 = arith.constant 0 : i32
    %146 = vector.broadcast %c0_i32_52 : i32 to vector<128x16xi32>
    %147 = arith.cmpi slt, %145, %146 : vector<128x16xi32>
    %c16_i32_53 = arith.constant 16 : i32
    %148 = vector.broadcast %c16_i32_53 : i32 to vector<128x16xi32>
    %149 = arith.addi %145, %148 : vector<128x16xi32>
    %150 = arith.select %147, %149, %145 : vector<128x16xi1>, vector<128x16xi32>
    %151 = vector.shape_cast %150 : vector<128x16xi32> to vector<128x16x1xi32>
    %152 = vector.shape_cast %151 : vector<128x16x1xi32> to vector<128x16xi32>
    %153 = tpu.dynamic_gather %18[%152] in [1] : vector<128x16xf32>, vector<128x16xi32> -> vector<128x16xf32>
    %154 = tpu.transpose %153, [1, 0] : vector<128x16xf32> -> vector<16x128xf32>
    %155 = arith.truncf %154 : vector<16x128xf32> to vector<16x128xbf16>
    %c0_54 = arith.constant 0 : index
    %c0_55 = arith.constant 0 : index
    %c0_56 = arith.constant 0 : index
    %156 = vector.load %arg6[%c0_54, %c0_55, %c0_56] : memref<1x128x256xbf16, #tpu.memory_space<vmem>>, vector<1x128x256xbf16>
    %157 = vector.shape_cast %156 : vector<1x128x256xbf16> to vector<128x256xbf16>
    %cst_57 = arith.constant dense<0.000000e+00> : vector<16x256xf32>
    %158 = tpu.matmul %155, %157, %cst_57 {dimension_numbers = #tpu.dot_dimension_numbers<[1], [0], [0], [1], [0, 0, 1, 1], [], []>} : vector<16x128xbf16>, vector<128x256xbf16>, vector<16x256xf32> -> vector<16x256xf32>
    %159 = arith.addf %158, %11 : vector<16x256xf32>
    %160 = vector.extract_strided_slice %16 {offsets = [3, 0, 0], sizes = [1, 16, 256], strides = [1, 1, 1]} : vector<8x16x256xf32> to vector<1x16x256xf32>
    %161 = vector.shape_cast %160 : vector<1x16x256xf32> to vector<16x256xf32>
    %162 = arith.addf %159, %161 : vector<16x256xf32>
    %163 = vector.extract_strided_slice %162 {offsets = [0, 0], sizes = [16, 128], strides = [1, 1]} : vector<16x256xf32> to vector<16x128xf32>
    %cst_58 = arith.constant 0.000000e+00 : f32
    %164 = vector.broadcast %cst_58 : f32 to vector<16x128xf32>
    %165 = arith.subf %164, %163 : vector<16x128xf32>
    %166 = math.exp %165 : vector<16x128xf32>
    %cst_59 = arith.constant 1.000000e+00 : f32
    %167 = vector.broadcast %cst_59 : f32 to vector<16x128xf32>
    %168 = arith.addf %167, %166 : vector<16x128xf32>
    %cst_60 = arith.constant 1.000000e+00 : f32
    %169 = vector.broadcast %cst_60 : f32 to vector<16x128xf32>
    %170 = arith.divf %169, %168 : vector<16x128xf32>
    %171 = vector.extract_strided_slice %162 {offsets = [0, 128], sizes = [16, 128], strides = [1, 1]} : vector<16x256xf32> to vector<16x128xf32>
    %cst_61 = arith.constant 0.000000e+00 : f32
    %172 = vector.broadcast %cst_61 : f32 to vector<16x128xf32>
    %173 = arith.maximumf %171, %172 : vector<16x128xf32>
    %174 = math.absf %171 : vector<16x128xf32>
    %cst_62 = arith.constant 0.000000e+00 : f32
    %175 = vector.broadcast %cst_62 : f32 to vector<16x128xf32>
    %176 = arith.subf %175, %174 : vector<16x128xf32>
    %177 = math.exp %176 : vector<16x128xf32>
    %cst_63 = arith.constant 1.000000e+00 : f32
    %178 = vector.broadcast %cst_63 : f32 to vector<16x128xf32>
    %179 = arith.addf %178, %177 : vector<16x128xf32>
    %180 = math.log %179 : vector<16x128xf32>
    %181 = arith.addf %173, %180 : vector<16x128xf32>
    %182 = arith.mulf %170, %181 : vector<16x128xf32>
    %183 = arith.addf %142, %182 : vector<16x128xf32>
    %184 = vector.extract_strided_slice %17 {offsets = [4, 0], sizes = [1, 16], strides = [1, 1]} : vector<8x16xi32> to vector<1x16xi32>
    %185 = vector.shape_cast %184 : vector<1x16xi32> to vector<1x16xi32>
    %186 = vector.broadcast %185 : vector<1x16xi32> to vector<128x16xi32>
    %c0_i32_64 = arith.constant 0 : i32
    %187 = vector.broadcast %c0_i32_64 : i32 to vector<128x16xi32>
    %188 = arith.cmpi slt, %186, %187 : vector<128x16xi32>
    %c16_i32_65 = arith.constant 16 : i32
    %189 = vector.broadcast %c16_i32_65 : i32 to vector<128x16xi32>
    %190 = arith.addi %186, %189 : vector<128x16xi32>
    %191 = arith.select %188, %190, %186 : vector<128x16xi1>, vector<128x16xi32>
    %192 = vector.shape_cast %191 : vector<128x16xi32> to vector<128x16x1xi32>
    %193 = vector.shape_cast %192 : vector<128x16x1xi32> to vector<128x16xi32>
    %194 = tpu.dynamic_gather %18[%193] in [1] : vector<128x16xf32>, vector<128x16xi32> -> vector<128x16xf32>
    %195 = tpu.transpose %194, [1, 0] : vector<128x16xf32> -> vector<16x128xf32>
    %196 = arith.truncf %195 : vector<16x128xf32> to vector<16x128xbf16>
    %c0_66 = arith.constant 0 : index
    %c0_67 = arith.constant 0 : index
    %c0_68 = arith.constant 0 : index
    %197 = vector.load %arg6[%c0_66, %c0_67, %c0_68] : memref<1x128x256xbf16, #tpu.memory_space<vmem>>, vector<1x128x256xbf16>
    %198 = vector.shape_cast %197 : vector<1x128x256xbf16> to vector<128x256xbf16>
    %cst_69 = arith.constant dense<0.000000e+00> : vector<16x256xf32>
    %199 = tpu.matmul %196, %198, %cst_69 {dimension_numbers = #tpu.dot_dimension_numbers<[1], [0], [0], [1], [0, 0, 1, 1], [], []>} : vector<16x128xbf16>, vector<128x256xbf16>, vector<16x256xf32> -> vector<16x256xf32>
    %200 = arith.addf %199, %11 : vector<16x256xf32>
    %201 = vector.extract_strided_slice %16 {offsets = [4, 0, 0], sizes = [1, 16, 256], strides = [1, 1, 1]} : vector<8x16x256xf32> to vector<1x16x256xf32>
    %202 = vector.shape_cast %201 : vector<1x16x256xf32> to vector<16x256xf32>
    %203 = arith.addf %200, %202 : vector<16x256xf32>
    %204 = vector.extract_strided_slice %203 {offsets = [0, 0], sizes = [16, 128], strides = [1, 1]} : vector<16x256xf32> to vector<16x128xf32>
    %cst_70 = arith.constant 0.000000e+00 : f32
    %205 = vector.broadcast %cst_70 : f32 to vector<16x128xf32>
    %206 = arith.subf %205, %204 : vector<16x128xf32>
    %207 = math.exp %206 : vector<16x128xf32>
    %cst_71 = arith.constant 1.000000e+00 : f32
    %208 = vector.broadcast %cst_71 : f32 to vector<16x128xf32>
    %209 = arith.addf %208, %207 : vector<16x128xf32>
    %cst_72 = arith.constant 1.000000e+00 : f32
    %210 = vector.broadcast %cst_72 : f32 to vector<16x128xf32>
    %211 = arith.divf %210, %209 : vector<16x128xf32>
    %212 = vector.extract_strided_slice %203 {offsets = [0, 128], sizes = [16, 128], strides = [1, 1]} : vector<16x256xf32> to vector<16x128xf32>
    %cst_73 = arith.constant 0.000000e+00 : f32
    %213 = vector.broadcast %cst_73 : f32 to vector<16x128xf32>
    %214 = arith.maximumf %212, %213 : vector<16x128xf32>
    %215 = math.absf %212 : vector<16x128xf32>
    %cst_74 = arith.constant 0.000000e+00 : f32
    %216 = vector.broadcast %cst_74 : f32 to vector<16x128xf32>
    %217 = arith.subf %216, %215 : vector<16x128xf32>
    %218 = math.exp %217 : vector<16x128xf32>
    %cst_75 = arith.constant 1.000000e+00 : f32
    %219 = vector.broadcast %cst_75 : f32 to vector<16x128xf32>
    %220 = arith.addf %219, %218 : vector<16x128xf32>
    %221 = math.log %220 : vector<16x128xf32>
    %222 = arith.addf %214, %221 : vector<16x128xf32>
    %223 = arith.mulf %211, %222 : vector<16x128xf32>
    %224 = arith.addf %183, %223 : vector<16x128xf32>
    %225 = vector.extract_strided_slice %17 {offsets = [5, 0], sizes = [1, 16], strides = [1, 1]} : vector<8x16xi32> to vector<1x16xi32>
    %226 = vector.shape_cast %225 : vector<1x16xi32> to vector<1x16xi32>
    %227 = vector.broadcast %226 : vector<1x16xi32> to vector<128x16xi32>
    %c0_i32_76 = arith.constant 0 : i32
    %228 = vector.broadcast %c0_i32_76 : i32 to vector<128x16xi32>
    %229 = arith.cmpi slt, %227, %228 : vector<128x16xi32>
    %c16_i32_77 = arith.constant 16 : i32
    %230 = vector.broadcast %c16_i32_77 : i32 to vector<128x16xi32>
    %231 = arith.addi %227, %230 : vector<128x16xi32>
    %232 = arith.select %229, %231, %227 : vector<128x16xi1>, vector<128x16xi32>
    %233 = vector.shape_cast %232 : vector<128x16xi32> to vector<128x16x1xi32>
    %234 = vector.shape_cast %233 : vector<128x16x1xi32> to vector<128x16xi32>
    %235 = tpu.dynamic_gather %18[%234] in [1] : vector<128x16xf32>, vector<128x16xi32> -> vector<128x16xf32>
    %236 = tpu.transpose %235, [1, 0] : vector<128x16xf32> -> vector<16x128xf32>
    %237 = arith.truncf %236 : vector<16x128xf32> to vector<16x128xbf16>
    %c0_78 = arith.constant 0 : index
    %c0_79 = arith.constant 0 : index
    %c0_80 = arith.constant 0 : index
    %238 = vector.load %arg6[%c0_78, %c0_79, %c0_80] : memref<1x128x256xbf16, #tpu.memory_space<vmem>>, vector<1x128x256xbf16>
    %239 = vector.shape_cast %238 : vector<1x128x256xbf16> to vector<128x256xbf16>
    %cst_81 = arith.constant dense<0.000000e+00> : vector<16x256xf32>
    %240 = tpu.matmul %237, %239, %cst_81 {dimension_numbers = #tpu.dot_dimension_numbers<[1], [0], [0], [1], [0, 0, 1, 1], [], []>} : vector<16x128xbf16>, vector<128x256xbf16>, vector<16x256xf32> -> vector<16x256xf32>
    %241 = arith.addf %240, %11 : vector<16x256xf32>
    %242 = vector.extract_strided_slice %16 {offsets = [5, 0, 0], sizes = [1, 16, 256], strides = [1, 1, 1]} : vector<8x16x256xf32> to vector<1x16x256xf32>
    %243 = vector.shape_cast %242 : vector<1x16x256xf32> to vector<16x256xf32>
    %244 = arith.addf %241, %243 : vector<16x256xf32>
    %245 = vector.extract_strided_slice %244 {offsets = [0, 0], sizes = [16, 128], strides = [1, 1]} : vector<16x256xf32> to vector<16x128xf32>
    %cst_82 = arith.constant 0.000000e+00 : f32
    %246 = vector.broadcast %cst_82 : f32 to vector<16x128xf32>
    %247 = arith.subf %246, %245 : vector<16x128xf32>
    %248 = math.exp %247 : vector<16x128xf32>
    %cst_83 = arith.constant 1.000000e+00 : f32
    %249 = vector.broadcast %cst_83 : f32 to vector<16x128xf32>
    %250 = arith.addf %249, %248 : vector<16x128xf32>
    %cst_84 = arith.constant 1.000000e+00 : f32
    %251 = vector.broadcast %cst_84 : f32 to vector<16x128xf32>
    %252 = arith.divf %251, %250 : vector<16x128xf32>
    %253 = vector.extract_strided_slice %244 {offsets = [0, 128], sizes = [16, 128], strides = [1, 1]} : vector<16x256xf32> to vector<16x128xf32>
    %cst_85 = arith.constant 0.000000e+00 : f32
    %254 = vector.broadcast %cst_85 : f32 to vector<16x128xf32>
    %255 = arith.maximumf %253, %254 : vector<16x128xf32>
    %256 = math.absf %253 : vector<16x128xf32>
    %cst_86 = arith.constant 0.000000e+00 : f32
    %257 = vector.broadcast %cst_86 : f32 to vector<16x128xf32>
    %258 = arith.subf %257, %256 : vector<16x128xf32>
    %259 = math.exp %258 : vector<16x128xf32>
    %cst_87 = arith.constant 1.000000e+00 : f32
    %260 = vector.broadcast %cst_87 : f32 to vector<16x128xf32>
    %261 = arith.addf %260, %259 : vector<16x128xf32>
    %262 = math.log %261 : vector<16x128xf32>
    %263 = arith.addf %255, %262 : vector<16x128xf32>
    %264 = arith.mulf %252, %263 : vector<16x128xf32>
    %265 = arith.addf %224, %264 : vector<16x128xf32>
    %266 = vector.extract_strided_slice %17 {offsets = [6, 0], sizes = [1, 16], strides = [1, 1]} : vector<8x16xi32> to vector<1x16xi32>
    %267 = vector.shape_cast %266 : vector<1x16xi32> to vector<1x16xi32>
    %268 = vector.broadcast %267 : vector<1x16xi32> to vector<128x16xi32>
    %c0_i32_88 = arith.constant 0 : i32
    %269 = vector.broadcast %c0_i32_88 : i32 to vector<128x16xi32>
    %270 = arith.cmpi slt, %268, %269 : vector<128x16xi32>
    %c16_i32_89 = arith.constant 16 : i32
    %271 = vector.broadcast %c16_i32_89 : i32 to vector<128x16xi32>
    %272 = arith.addi %268, %271 : vector<128x16xi32>
    %273 = arith.select %270, %272, %268 : vector<128x16xi1>, vector<128x16xi32>
    %274 = vector.shape_cast %273 : vector<128x16xi32> to vector<128x16x1xi32>
    %275 = vector.shape_cast %274 : vector<128x16x1xi32> to vector<128x16xi32>
    %276 = tpu.dynamic_gather %18[%275] in [1] : vector<128x16xf32>, vector<128x16xi32> -> vector<128x16xf32>
    %277 = tpu.transpose %276, [1, 0] : vector<128x16xf32> -> vector<16x128xf32>
    %278 = arith.truncf %277 : vector<16x128xf32> to vector<16x128xbf16>
    %c0_90 = arith.constant 0 : index
    %c0_91 = arith.constant 0 : index
    %c0_92 = arith.constant 0 : index
    %279 = vector.load %arg6[%c0_90, %c0_91, %c0_92] : memref<1x128x256xbf16, #tpu.memory_space<vmem>>, vector<1x128x256xbf16>
    %280 = vector.shape_cast %279 : vector<1x128x256xbf16> to vector<128x256xbf16>
    %cst_93 = arith.constant dense<0.000000e+00> : vector<16x256xf32>
    %281 = tpu.matmul %278, %280, %cst_93 {dimension_numbers = #tpu.dot_dimension_numbers<[1], [0], [0], [1], [0, 0, 1, 1], [], []>} : vector<16x128xbf16>, vector<128x256xbf16>, vector<16x256xf32> -> vector<16x256xf32>
    %282 = arith.addf %281, %11 : vector<16x256xf32>
    %283 = vector.extract_strided_slice %16 {offsets = [6, 0, 0], sizes = [1, 16, 256], strides = [1, 1, 1]} : vector<8x16x256xf32> to vector<1x16x256xf32>
    %284 = vector.shape_cast %283 : vector<1x16x256xf32> to vector<16x256xf32>
    %285 = arith.addf %282, %284 : vector<16x256xf32>
    %286 = vector.extract_strided_slice %285 {offsets = [0, 0], sizes = [16, 128], strides = [1, 1]} : vector<16x256xf32> to vector<16x128xf32>
    %cst_94 = arith.constant 0.000000e+00 : f32
    %287 = vector.broadcast %cst_94 : f32 to vector<16x128xf32>
    %288 = arith.subf %287, %286 : vector<16x128xf32>
    %289 = math.exp %288 : vector<16x128xf32>
    %cst_95 = arith.constant 1.000000e+00 : f32
    %290 = vector.broadcast %cst_95 : f32 to vector<16x128xf32>
    %291 = arith.addf %290, %289 : vector<16x128xf32>
    %cst_96 = arith.constant 1.000000e+00 : f32
    %292 = vector.broadcast %cst_96 : f32 to vector<16x128xf32>
    %293 = arith.divf %292, %291 : vector<16x128xf32>
    %294 = vector.extract_strided_slice %285 {offsets = [0, 128], sizes = [16, 128], strides = [1, 1]} : vector<16x256xf32> to vector<16x128xf32>
    %cst_97 = arith.constant 0.000000e+00 : f32
    %295 = vector.broadcast %cst_97 : f32 to vector<16x128xf32>
    %296 = arith.maximumf %294, %295 : vector<16x128xf32>
    %297 = math.absf %294 : vector<16x128xf32>
    %cst_98 = arith.constant 0.000000e+00 : f32
    %298 = vector.broadcast %cst_98 : f32 to vector<16x128xf32>
    %299 = arith.subf %298, %297 : vector<16x128xf32>
    %300 = math.exp %299 : vector<16x128xf32>
    %cst_99 = arith.constant 1.000000e+00 : f32
    %301 = vector.broadcast %cst_99 : f32 to vector<16x128xf32>
    %302 = arith.addf %301, %300 : vector<16x128xf32>
    %303 = math.log %302 : vector<16x128xf32>
    %304 = arith.addf %296, %303 : vector<16x128xf32>
    %305 = arith.mulf %293, %304 : vector<16x128xf32>
    %306 = arith.addf %265, %305 : vector<16x128xf32>
    %307 = vector.extract_strided_slice %17 {offsets = [7, 0], sizes = [1, 16], strides = [1, 1]} : vector<8x16xi32> to vector<1x16xi32>
    %308 = vector.shape_cast %307 : vector<1x16xi32> to vector<1x16xi32>
    %309 = vector.broadcast %308 : vector<1x16xi32> to vector<128x16xi32>
    %c0_i32_100 = arith.constant 0 : i32
    %310 = vector.broadcast %c0_i32_100 : i32 to vector<128x16xi32>
    %311 = arith.cmpi slt, %309, %310 : vector<128x16xi32>
    %c16_i32_101 = arith.constant 16 : i32
    %312 = vector.broadcast %c16_i32_101 : i32 to vector<128x16xi32>
    %313 = arith.addi %309, %312 : vector<128x16xi32>
    %314 = arith.select %311, %313, %309 : vector<128x16xi1>, vector<128x16xi32>
    %315 = vector.shape_cast %314 : vector<128x16xi32> to vector<128x16x1xi32>
    %316 = vector.shape_cast %315 : vector<128x16x1xi32> to vector<128x16xi32>
    %317 = tpu.dynamic_gather %18[%316] in [1] : vector<128x16xf32>, vector<128x16xi32> -> vector<128x16xf32>
    %318 = tpu.transpose %317, [1, 0] : vector<128x16xf32> -> vector<16x128xf32>
    %319 = arith.truncf %318 : vector<16x128xf32> to vector<16x128xbf16>
    %c0_102 = arith.constant 0 : index
    %c0_103 = arith.constant 0 : index
    %c0_104 = arith.constant 0 : index
    %320 = vector.load %arg6[%c0_102, %c0_103, %c0_104] : memref<1x128x256xbf16, #tpu.memory_space<vmem>>, vector<1x128x256xbf16>
    %321 = vector.shape_cast %320 : vector<1x128x256xbf16> to vector<128x256xbf16>
    %cst_105 = arith.constant dense<0.000000e+00> : vector<16x256xf32>
    %322 = tpu.matmul %319, %321, %cst_105 {dimension_numbers = #tpu.dot_dimension_numbers<[1], [0], [0], [1], [0, 0, 1, 1], [], []>} : vector<16x128xbf16>, vector<128x256xbf16>, vector<16x256xf32> -> vector<16x256xf32>
    %323 = arith.addf %322, %11 : vector<16x256xf32>
    %324 = vector.extract_strided_slice %16 {offsets = [7, 0, 0], sizes = [1, 16, 256], strides = [1, 1, 1]} : vector<8x16x256xf32> to vector<1x16x256xf32>
    %325 = vector.shape_cast %324 : vector<1x16x256xf32> to vector<16x256xf32>
    %326 = arith.addf %323, %325 : vector<16x256xf32>
    %327 = vector.extract_strided_slice %326 {offsets = [0, 0], sizes = [16, 128], strides = [1, 1]} : vector<16x256xf32> to vector<16x128xf32>
    %cst_106 = arith.constant 0.000000e+00 : f32
    %328 = vector.broadcast %cst_106 : f32 to vector<16x128xf32>
    %329 = arith.subf %328, %327 : vector<16x128xf32>
    %330 = math.exp %329 : vector<16x128xf32>
    %cst_107 = arith.constant 1.000000e+00 : f32
    %331 = vector.broadcast %cst_107 : f32 to vector<16x128xf32>
    %332 = arith.addf %331, %330 : vector<16x128xf32>
    %cst_108 = arith.constant 1.000000e+00 : f32
    %333 = vector.broadcast %cst_108 : f32 to vector<16x128xf32>
    %334 = arith.divf %333, %332 : vector<16x128xf32>
    %335 = vector.extract_strided_slice %326 {offsets = [0, 128], sizes = [16, 128], strides = [1, 1]} : vector<16x256xf32> to vector<16x128xf32>
    %cst_109 = arith.constant 0.000000e+00 : f32
    %336 = vector.broadcast %cst_109 : f32 to vector<16x128xf32>
    %337 = arith.maximumf %335, %336 : vector<16x128xf32>
    %338 = math.absf %335 : vector<16x128xf32>
    %cst_110 = arith.constant 0.000000e+00 : f32
    %339 = vector.broadcast %cst_110 : f32 to vector<16x128xf32>
    %340 = arith.subf %339, %338 : vector<16x128xf32>
    %341 = math.exp %340 : vector<16x128xf32>
    %cst_111 = arith.constant 1.000000e+00 : f32
    %342 = vector.broadcast %cst_111 : f32 to vector<16x128xf32>
    %343 = arith.addf %342, %341 : vector<16x128xf32>
    %344 = math.log %343 : vector<16x128xf32>
    %345 = arith.addf %337, %344 : vector<16x128xf32>
    %346 = arith.mulf %334, %345 : vector<16x128xf32>
    %347 = arith.addf %306, %346 : vector<16x128xf32>
    %c0_112 = arith.constant 0 : index
    %c0_113 = arith.constant 0 : index
    %c0_114 = arith.constant 0 : index
    %348 = vector.load %arg9[%c0_112, %c0_113, %c0_114] : memref<1x2x128xf32, #tpu.memory_space<vmem>>, vector<1x1x128xf32>
    %349 = vector.shape_cast %348 : vector<1x1x128xf32> to vector<1x128xf32>
    %c0_115 = arith.constant 0 : index
    %c1 = arith.constant 1 : index
    %c0_116 = arith.constant 0 : index
    %350 = vector.load %arg9[%c0_115, %c1, %c0_116] : memref<1x2x128xf32, #tpu.memory_space<vmem>>, vector<1x1x128xf32>
    %351 = vector.shape_cast %350 : vector<1x1x128xf32> to vector<1x128xf32>
    %352 = vector.broadcast %349 : vector<1x128xf32> to vector<16x128xf32>
    %353 = arith.mulf %347, %352 : vector<16x128xf32>
    %354 = arith.addf %3, %353 : vector<16x128xf32>
    %355 = vector.broadcast %351 : vector<1x128xf32> to vector<16x128xf32>
    %356 = arith.addf %354, %355 : vector<16x128xf32>
    %cst_117 = arith.constant 0.000000e+00 : f32
    %357 = vector.broadcast %cst_117 : f32 to vector<16x128xf32>
    %358 = arith.maximumf %356, %357 : vector<16x128xf32>
    %359 = math.absf %356 : vector<16x128xf32>
    %cst_118 = arith.constant 0.000000e+00 : f32
    %360 = vector.broadcast %cst_118 : f32 to vector<16x128xf32>
    %361 = arith.subf %360, %359 : vector<16x128xf32>
    %362 = math.exp %361 : vector<16x128xf32>
    %cst_119 = arith.constant 1.000000e+00 : f32
    %363 = vector.broadcast %cst_119 : f32 to vector<16x128xf32>
    %364 = arith.addf %363, %362 : vector<16x128xf32>
    %365 = math.log %364 : vector<16x128xf32>
    %366 = arith.addf %358, %365 : vector<16x128xf32>
    %c0_120 = arith.constant 0 : index
    %c0_121 = arith.constant 0 : index
    %367 = vector.load %arg15[%c0_120, %c0_121] : memref<16x128xf32, #tpu.memory_space<vmem>>, vector<16x128xf32>
    tpu.vector_store %arg15[%c0_120, %c0_121], %366 {strides = array<i32>} : memref<16x128xf32, #tpu.memory_space<vmem>>, vector<16x128xf32>,
    %c2_i32 = arith.constant 2 : i32
    %368 = arith.cmpi eq, %arg0, %c2_i32 : i32
    %369 = arith.extui %368 : i1 to i32
    %c0_i32_122 = arith.constant 0 : i32
    %370 = arith.cmpi ne, %369, %c0_i32_122 : i32
    scf.if %370 {
      %c0_123 = arith.constant 0 : index
      %371 = memref.load %arg1[%c0_123] : memref<2xi32, #tpu.memory_space<smem>>
      %372 = arith.index_cast %371 : i32 to index
      %c0_124 = arith.constant 0 : index
      %373 = vector.load %arg15[%372, %c0_124] : memref<16x128xf32, #tpu.memory_space<vmem>>, vector<1x128xf32>
      %c1_125 = arith.constant 1 : index
      %374 = memref.load %arg1[%c1_125] : memref<2xi32, #tpu.memory_space<smem>>
      %375 = arith.index_cast %374 : i32 to index
      %c0_126 = arith.constant 0 : index
      %376 = vector.load %arg15[%375, %c0_126] : memref<16x128xf32, #tpu.memory_space<vmem>>, vector<1x128xf32>
      %377 = tpu.concatenate %373, %376 in 0 : vector<1x128xf32>, vector<1x128xf32> -> vector<2x128xf32>
      %cst_127 = arith.constant 0.000000e+00 : f32
      %378 = vector.broadcast %cst_127 : f32 to vector<2x128xf32>
      %379 = arith.maximumf %377, %378 : vector<2x128xf32>
      %380 = math.absf %377 : vector<2x128xf32>
      %cst_128 = arith.constant 0.000000e+00 : f32
      %381 = vector.broadcast %cst_128 : f32 to vector<2x128xf32>
      %382 = arith.subf %381, %380 : vector<2x128xf32>
      %383 = math.exp %382 : vector<2x128xf32>
      %cst_129 = arith.constant 1.000000e+00 : f32
      %384 = vector.broadcast %cst_129 : f32 to vector<2x128xf32>
      %385 = arith.addf %384, %383 : vector<2x128xf32>
      %386 = math.log %385 : vector<2x128xf32>
      %387 = arith.addf %379, %386 : vector<2x128xf32>
      %c0_130 = arith.constant 0 : index
      %c0_131 = arith.constant 0 : index
      %388 = vector.load %arg10[%c0_130, %c0_131] : memref<128x64xf32, #tpu.memory_space<vmem>>, vector<128x64xf32>
      %cst_132 = arith.constant dense<0.000000e+00> : vector<2x64xf32>
      %389 = tpu.matmul %387, %388, %cst_132 {dimension_numbers = #tpu.dot_dimension_numbers<[1], [0], [0], [1], [0, 0, 1, 1], [], []>} : vector<2x128xf32>, vector<128x64xf32>, vector<2x64xf32> -> vector<2x64xf32>
      %c0_133 = arith.constant 0 : index
      %c0_134 = arith.constant 0 : index
      %390 = vector.load %arg11[%c0_133, %c0_134] : memref<2x64xf32, #tpu.memory_space<vmem>>, vector<2x64xf32>
      %391 = arith.addf %389, %390 : vector<2x64xf32>
      %cst_135 = arith.constant 0.000000e+00 : f32
      %392 = vector.broadcast %cst_135 : f32 to vector<2x64xf32>
      %393 = arith.maximumf %391, %392 : vector<2x64xf32>
      %394 = math.absf %391 : vector<2x64xf32>
      %cst_136 = arith.constant 0.000000e+00 : f32
      %395 = vector.broadcast %cst_136 : f32 to vector<2x64xf32>
      %396 = arith.subf %395, %394 : vector<2x64xf32>
      %397 = math.exp %396 : vector<2x64xf32>
      %cst_137 = arith.constant 1.000000e+00 : f32
      %398 = vector.broadcast %cst_137 : f32 to vector<2x64xf32>
      %399 = arith.addf %398, %397 : vector<2x64xf32>
      %400 = math.log %399 : vector<2x64xf32>
      %401 = arith.addf %393, %400 : vector<2x64xf32>
      %c0_138 = arith.constant 0 : index
      %c0_139 = arith.constant 0 : index
      %402 = vector.load %arg12[%c0_138, %c0_139] : memref<64x1xf32, #tpu.memory_space<vmem>>, vector<64x1xf32>
      %cst_140 = arith.constant dense<0.000000e+00> : vector<2x1xf32>
      %403 = tpu.matmul %401, %402, %cst_140 {dimension_numbers = #tpu.dot_dimension_numbers<[1], [0], [0], [1], [0, 0, 1, 1], [], []>} : vector<2x64xf32>, vector<64x1xf32>, vector<2x1xf32> -> vector<2x1xf32>
      %c0_141 = arith.constant 0 : index
      %c0_142 = arith.constant 0 : index
      %404 = vector.load %arg13[%c0_141, %c0_142] : memref<1x1xf32, #tpu.memory_space<vmem>>, vector<1x1xf32>
      %405 = vector.broadcast %404 : vector<1x1xf32> to vector<2x1xf32>
      %406 = arith.addf %403, %405 : vector<2x1xf32>
      %c0_143 = arith.constant 0 : index
      %c0_144 = arith.constant 0 : index
      %407 = vector.load %arg14[%c0_143, %c0_144] : memref<2x1xf32, #tpu.memory_space<vmem>>, vector<2x1xf32>
      tpu.vector_store %arg14[%c0_143, %c0_144], %406 {strides = array<i32>} : memref<2x1xf32, #tpu.memory_space<vmem>>, vector<2x1xf32>,
    } else {
    }
    return
  }
  func.func @transform_0(%arg0: i32, %arg1: memref<2xi32, #tpu.memory_space<smem>>) -> (i32, i32) {
    %c0_i32 = arith.constant 0 : i32
    %c0_i32_0 = arith.constant 0 : i32
    %c0_i32_1 = arith.constant 0 : i32
    return %c0_i32, %c0_i32_0 : i32, i32
  }
  func.func @transform_1(%arg0: i32, %arg1: memref<2xi32, #tpu.memory_space<smem>>) -> (i32, i32) {
    %c0_i32 = arith.constant 0 : i32
    %c0_i32_0 = arith.constant 0 : i32
    %c0_i32_1 = arith.constant 0 : i32
    return %c0_i32, %c0_i32_0 : i32, i32
  }
  func.func @transform_2(%arg0: i32, %arg1: memref<2xi32, #tpu.memory_space<smem>>) -> (i32, i32) {
    %c0_i32 = arith.constant 0 : i32
    %c0_i32_0 = arith.constant 0 : i32
    %c0_i32_1 = arith.constant 0 : i32
    return %c0_i32, %c0_i32_0 : i32, i32
  }
  func.func @transform_3(%arg0: i32, %arg1: memref<2xi32, #tpu.memory_space<smem>>) -> (i32, i32, i32) {
    %c0_i32 = arith.constant 0 : i32
    %c0_i32_0 = arith.constant 0 : i32
    %c0_i32_1 = arith.constant 0 : i32
    return %arg0, %c0_i32, %c0_i32_0 : i32, i32, i32
  }
  func.func @transform_4(%arg0: i32, %arg1: memref<2xi32, #tpu.memory_space<smem>>) -> (i32, i32, i32) {
    %c0_i32 = arith.constant 0 : i32
    %c0_i32_0 = arith.constant 0 : i32
    %c0_i32_1 = arith.constant 0 : i32
    return %arg0, %c0_i32, %c0_i32_0 : i32, i32, i32
  }
  func.func @transform_5(%arg0: i32, %arg1: memref<2xi32, #tpu.memory_space<smem>>) -> (i32, i32, i32) {
    %c0_i32 = arith.constant 0 : i32
    %c0_i32_0 = arith.constant 0 : i32
    %c0_i32_1 = arith.constant 0 : i32
    return %arg0, %c0_i32, %c0_i32_0 : i32, i32, i32
  }
  func.func @transform_6(%arg0: i32, %arg1: memref<2xi32, #tpu.memory_space<smem>>) -> (i32, i32, i32) {
    %c0_i32 = arith.constant 0 : i32
    %c0_i32_0 = arith.constant 0 : i32
    %c0_i32_1 = arith.constant 0 : i32
    return %arg0, %c0_i32, %c0_i32_0 : i32, i32, i32
  }
  func.func @transform_7(%arg0: i32, %arg1: memref<2xi32, #tpu.memory_space<smem>>) -> (i32, i32, i32) {
    %c0_i32 = arith.constant 0 : i32
    %c0_i32_0 = arith.constant 0 : i32
    %c0_i32_1 = arith.constant 0 : i32
    return %arg0, %c0_i32, %c0_i32_0 : i32, i32, i32
  }
  func.func @transform_8(%arg0: i32, %arg1: memref<2xi32, #tpu.memory_space<smem>>) -> (i32, i32) {
    %c0_i32 = arith.constant 0 : i32
    %c0_i32_0 = arith.constant 0 : i32
    %c0_i32_1 = arith.constant 0 : i32
    return %c0_i32, %c0_i32_0 : i32, i32
  }
  func.func @transform_9(%arg0: i32, %arg1: memref<2xi32, #tpu.memory_space<smem>>) -> (i32, i32) {
    %c0_i32 = arith.constant 0 : i32
    %c0_i32_0 = arith.constant 0 : i32
    %c0_i32_1 = arith.constant 0 : i32
    return %c0_i32, %c0_i32_0 : i32, i32
  }
  func.func @transform_10(%arg0: i32, %arg1: memref<2xi32, #tpu.memory_space<smem>>) -> (i32, i32) {
    %c0_i32 = arith.constant 0 : i32
    %c0_i32_0 = arith.constant 0 : i32
    %c0_i32_1 = arith.constant 0 : i32
    return %c0_i32, %c0_i32_0 : i32, i32
  }
  func.func @transform_11(%arg0: i32, %arg1: memref<2xi32, #tpu.memory_space<smem>>) -> (i32, i32) {
    %c0_i32 = arith.constant 0 : i32
    %c0_i32_0 = arith.constant 0 : i32
    %c0_i32_1 = arith.constant 0 : i32
    return %c0_i32, %c0_i32_0 : i32, i32
  }
  func.func @transform_12(%arg0: i32, %arg1: memref<2xi32, #tpu.memory_space<smem>>) -> (i32, i32) {
    %c0_i32 = arith.constant 0 : i32
    %c0_i32_0 = arith.constant 0 : i32
    %c0_i32_1 = arith.constant 0 : i32
    return %c0_i32, %c0_i32_0 : i32, i32
  }
}

</mosaic_0001>

<llo_original>
// kernel: cgcnn_forward.1
$region0: #{cgcnn_forward.1}
  #allocation0 [shape = 'u32[]', space=smem, size = 0x4, offset = 0x4, fixed_abs, tag = 'smem constant byte address 0x4 - core index']
  #allocation1 [shape = 'u32[72,128]{1,0:T(1,128)}', space=vmem, size = 0x9000, scoped, tag = 'internal scratch']
  #allocation2 [shape = 'f32[16,128]{1,0:T(8,128)}', space=vmem, size = 0x2000, scoped, tag = 'scratch operand']
  #allocation3 [shape = 's32[1]{0}', space=sflag, size = 0x4, scoped, tag = 'scoped memory for cgcnn_forward.1']
  #allocation4 [shape = 'u8[512]{0}', space=smem, size = 0x200, scoped, tag = 'prefetched SMEM operand 0']
  #allocation5 [shape = 'f32[1,1]{1,0:T(1,128)S(1)}', space=vmem, size = 0x200, scoped, tag = 'scoped memory for cgcnn_forward.1']
  %s0 = inlined_call_operand.vmem [shape: s32[2], index: 0, kind: input, shape index: {}]
  %s1 = inlined_call_operand.vmem [shape: f32[16,128], index: 1, kind: input, shape index: {}]
  %s2 = inlined_call_operand.vmem [shape: s32[8,16], index: 2, kind: input, shape index: {}]
  %s3 = inlined_call_operand.vmem [shape: bf16[128,8], index: 3, kind: input, shape index: {}]
  %s4 = inlined_call_operand.vmem [shape: bf16[3,128,256], index: 4, kind: input, shape index: {}]
  %s5 = inlined_call_operand.vmem [shape: bf16[3,128,256], index: 5, kind: input, shape index: {}]
  %s6 = inlined_call_operand.vmem [shape: bf16[3,8,256], index: 6, kind: input, shape index: {}]
  %s7 = inlined_call_operand.vmem [shape: f32[3,1,256], index: 7, kind: input, shape index: {}]
  %s8 = inlined_call_operand.vmem [shape: f32[3,2,128], index: 8, kind: input, shape index: {}]
  %s9 = inlined_call_operand.vmem [shape: f32[128,64], index: 9, kind: input, shape index: {}]
  %s10 = inlined_call_operand.vmem [shape: f32[2,64], index: 10, kind: input, shape index: {}]
  %s11 = inlined_call_operand.vmem [shape: f32[64,1], index: 11, kind: input, shape index: {}]
  %s12 = inlined_call_operand.<no memory space> [shape: f32[1,1], index: 12, kind: input, shape index: {}]
  %s13 = inlined_call_operand.vmem [shape: f32[2,1], index: 13, kind: output, shape index: {}]
  %s14 = sld [smem:[#allocation0]]
  $region89: #{cgcnn_forward.1} parent=0
    _
  %s16 = ssub.s32 1, %s14
  %s17 = scalar_select 0, %s16, %s14
  %s19 = sshll.u32 %s0, 4
  %s20 = int_to_ptr.vmem [resolvable:$true] %s19
  %22 = dma.vmem_to_smem %s20, 16, [#allocation4], [#allocation3]
  %v23 = vstv %s12
  %24 = vst [vmem:[#allocation5] sm:$0x1] %v23
  %26 = dma.done [#allocation3], 16
  %27 = sfence
  loop: start=0, step=1, limit=5
  $region2: #{cgcnn_forward.1} parent=0 // loop_pre_header
    _
  $region3: #{cgcnn_forward.1} parent=0 // loop_header
    %s29 = sphi 0, %s33
    %p30 = scmp.ge.s32.totalorder %s29, 5
    %s37 = sphi 0, %s37
    %s39 = sphi 0, %s37
    %s40 = sphi 0, %s39
    %s54 = sphi 0, %s40
    %s58 = sphi 0, %s58
    %s60 = sphi 0, %s58
    %s61 = sphi 0, %s60
    %s75 = sphi 0, %s61
    %s79 = sphi 0, %s79
    %s81 = sphi 0, %s79
    %s82 = sphi 0, %s81
    %s96 = sphi 0, %s82
    %s102 = sphi 0, %s104
    %s105 = sphi 0, %s102
    %s106 = sphi 0, %s105
    %s122 = sphi 0, %s106
    %s128 = sphi 0, %s130
    %s131 = sphi 0, %s128
    %s132 = sphi 0, %s131
    %s148 = sphi 0, %s132
    %s154 = sphi 0, %s156
    %s157 = sphi 0, %s154
    %s158 = sphi 0, %s157
    %s174 = sphi 0, %s158
    %s180 = sphi 0, %s182
    %s183 = sphi 0, %s180
    %s184 = sphi 0, %s183
    %s200 = sphi 0, %s184
    %s206 = sphi 0, %s208
    %s209 = sphi 0, %s206
    %s210 = sphi 0, %s209
    %s226 = sphi 0, %s210
    %s230 = sphi 0, %s230
    %s232 = sphi 0, %s230
    %s233 = sphi 0, %s232
    %s247 = sphi 0, %s233
    %s251 = sphi 0, %s251
    %s253 = sphi 0, %s251
    %s254 = sphi 0, %s253
    %s268 = sphi 0, %s254
    %s272 = sphi 0, %s272
    %s274 = sphi 0, %s272
    %s275 = sphi 0, %s274
    %s289 = sphi 0, %s275
    %s293 = sphi 0, %s293
    %s295 = sphi 0, %s293
    %s296 = sphi 0, %s295
    %s310 = sphi 0, %s296
    %s314 = sphi 0, %s314
    %s316 = sphi 0, %s314
    %s317 = sphi 0, %s316
    %s331 = sphi 0, %s317
  $region4: #{cgcnn_forward.1} parent=0 // loop_header_branch
    %32 = sbr.rel (%p30) target = $region8
  $region5: #{cgcnn_forward.1} parent=0 // loop_body
    %s34 = ssub.s32 %s29, 1
    %s35 = ssub.s32 %s29, 2
    %s36 = sadd.s32 %s29, 1
    %s38 = sadd.s32 %s37, 1
    %p41 = scmp.eq.s32.totalorder %s29, 2
    %p42 = scmp.ne.s32.totalorder %s37, %s39
    %p43 = scmp.eq.s32.totalorder %s29, 0
    %p44 = por %p42, %p43
    %p45 = scmp.ne.s32.totalorder %s37, %s39
    %p46 = scmp.eq.s32.totalorder %s34, 2
    %p47 = por %p45, %p46
    %p48 = scmp.ne.s32.totalorder %s39, %s40
    %p49 = scmp.eq.s32.totalorder %s34, 0
    %p50 = por %p48, %p49
    %p51 = scmp.ne.s32.totalorder %s39, %s40
    %p52 = scmp.eq.s32.totalorder %s35, 2
    %p53 = por %p51, %p52
    %p55 = scmp.ne.s32.totalorder %s40, %s54
    %p56 = scmp.eq.s32.totalorder %s35, 0
    %p57 = por %p55, %p56
    %s59 = sadd.s32 %s58, 1
    %p62 = scmp.eq.s32.totalorder %s29, 2
    %p63 = scmp.ne.s32.totalorder %s58, %s60
    %p64 = scmp.eq.s32.totalorder %s29, 0
    %p65 = por %p63, %p64
    %p66 = scmp.ne.s32.totalorder %s58, %s60
    %p67 = scmp.eq.s32.totalorder %s34, 2
    %p68 = por %p66, %p67
    %p69 = scmp.ne.s32.totalorder %s60, %s61
    %p70 = scmp.eq.s32.totalorder %s34, 0
    %p71 = por %p69, %p70
    %p72 = scmp.ne.s32.totalorder %s60, %s61
    %p73 = scmp.eq.s32.totalorder %s35, 2
    %p74 = por %p72, %p73
    %p76 = scmp.ne.s32.totalorder %s61, %s75
    %p77 = scmp.eq.s32.totalorder %s35, 0
    %p78 = por %p76, %p77
    %s80 = sadd.s32 %s79, 1
    %p83 = scmp.eq.s32.totalorder %s29, 2
    %p84 = scmp.ne.s32.totalorder %s79, %s81
    %p85 = scmp.eq.s32.totalorder %s29, 0
    %p86 = por %p84, %p85
    %p87 = scmp.ne.s32.totalorder %s79, %s81
    %p88 = scmp.eq.s32.totalorder %s34, 2
    %p89 = por %p87, %p88
    %p90 = scmp.ne.s32.totalorder %s81, %s82
    %p91 = scmp.eq.s32.totalorder %s34, 0
    %p92 = por %p90, %p91
    %p93 = scmp.ne.s32.totalorder %s81, %s82
    %p94 = scmp.eq.s32.totalorder %s35, 2
    %p95 = por %p93, %p94
    %p97 = scmp.ne.s32.totalorder %s82, %s96
    %p98 = scmp.eq.s32.totalorder %s35, 0
    %p99 = por %p97, %p98
    %s100 = ssub.s32 %s29, %s36
    %p101 = scmp.eq.s32.totalorder %s100, 0
    %s103 = sadd.s32 %s102, 1
    %s104 = scalar_select %p101, %s102, %s103
    %p107 = pneg %p101
    %p108 = scmp.eq.s32.totalorder %s29, 2
    %p109 = por %p107, %p108
    %p110 = scmp.ne.s32.totalorder %s102, %s105
    %p111 = scmp.eq.s32.totalorder %s29, 0
    %p112 = por %p110, %p111
    %p113 = scmp.ne.s32.totalorder %s102, %s105
    %p114 = scmp.eq.s32.totalorder %s34, 2
    %p115 = por %p113, %p114
    %p116 = scmp.ne.s32.totalorder %s105, %s106
    %p117 = scmp.eq.s32.totalorder %s34, 0
    %p118 = por %p116, %p117
    %p119 = scmp.ne.s32.totalorder %s105, %s106
    %p120 = scmp.eq.s32.totalorder %s35, 2
    %p121 = por %p119, %p120
    %p123 = scmp.ne.s32.totalorder %s106, %s122
    %p124 = scmp.eq.s32.totalorder %s35, 0
    %p125 = por %p123, %p124
    %s126 = ssub.s32 %s29, %s36
    %p127 = scmp.eq.s32.totalorder %s126, 0
    %s129 = sadd.s32 %s128, 1
    %s130 = scalar_select %p127, %s128, %s129
    %p133 = pneg %p127
    %p134 = scmp.eq.s32.totalorder %s29, 2
    %p135 = por %p133, %p134
    %p136 = scmp.ne.s32.totalorder %s128, %s131
    %p137 = scmp.eq.s32.totalorder %s29, 0
    %p138 = por %p136, %p137
    %p139 = scmp.ne.s32.totalorder %s128, %s131
    %p140 = scmp.eq.s32.totalorder %s34, 2
    %p141 = por %p139, %p140
    %p142 = scmp.ne.s32.totalorder %s131, %s132
    %p143 = scmp.eq.s32.totalorder %s34, 0
    %p144 = por %p142, %p143
    %p145 = scmp.ne.s32.totalorder %s131, %s132
    %p146 = scmp.eq.s32.totalorder %s35, 2
    %p147 = por %p145, %p146
    %p149 = scmp.ne.s32.totalorder %s132, %s148
    %p150 = scmp.eq.s32.totalorder %s35, 0
    %p151 = por %p149, %p150
    %s152 = ssub.s32 %s29, %s36
    %p153 = scmp.eq.s32.totalorder %s152, 0
    %s155 = sadd.s32 %s154, 1
    %s156 = scalar_select %p153, %s154, %s155
    %p159 = pneg %p153
    %p160 = scmp.eq.s32.totalorder %s29, 2
    %p161 = por %p159, %p160
    %p162 = scmp.ne.s32.totalorder %s154, %s157
    %p163 = scmp.eq.s32.totalorder %s29, 0
    %p164 = por %p162, %p163
    %p165 = scmp.ne.s32.totalorder %s154, %s157
    %p166 = scmp.eq.s32.totalorder %s34, 2
    %p167 = por %p165, %p166
    %p168 = scmp.ne.s32.totalorder %s157, %s158
    %p169 = scmp.eq.s32.totalorder %s34, 0
    %p170 = por %p168, %p169
    %p171 = scmp.ne.s32.totalorder %s157, %s158
    %p172 = scmp.eq.s32.totalorder %s35, 2
    %p173 = por %p171, %p172
    %p175 = scmp.ne.s32.totalorder %s158, %s174
    %p176 = scmp.eq.s32.totalorder %s35, 0
    %p177 = por %p175, %p176
    %s178 = ssub.s32 %s29, %s36
    %p179 = scmp.eq.s32.totalorder %s178, 0
    %s181 = sadd.s32 %s180, 1
    %s182 = scalar_select %p179, %s180, %s181
    %p185 = pneg %p179
    %p186 = scmp.eq.s32.totalorder %s29, 2
    %p187 = por %p185, %p186
    %p188 = scmp.ne.s32.totalorder %s180, %s183
    %p189 = scmp.eq.s32.totalorder %s29, 0
    %p190 = por %p188, %p189
    %p191 = scmp.ne.s32.totalorder %s180, %s183
    %p192 = scmp.eq.s32.totalorder %s34, 2
    %p193 = por %p191, %p192
    %p194 = scmp.ne.s32.totalorder %s183, %s184
    %p195 = scmp.eq.s32.totalorder %s34, 0
    %p196 = por %p194, %p195
    %p197 = scmp.ne.s32.totalorder %s183, %s184
    %p198 = scmp.eq.s32.totalorder %s35, 2
    %p199 = por %p197, %p198
    %p201 = scmp.ne.s32.totalorder %s184, %s200
    %p202 = scmp.eq.s32.totalorder %s35, 0
    %p203 = por %p201, %p202
    %s204 = ssub.s32 %s29, %s36
    %p205 = scmp.eq.s32.totalorder %s204, 0
    %s207 = sadd.s32 %s206, 1
    %s208 = scalar_select %p205, %s206, %s207
    %p211 = pneg %p205
    %p212 = scmp.eq.s32.totalorder %s29, 2
    %p213 = por %p211, %p212
    %p214 = scmp.ne.s32.totalorder %s206, %s209
    %p215 = scmp.eq.s32.totalorder %s29, 0
    %p216 = por %p214, %p215
    %p217 = scmp.ne.s32.totalorder %s206, %s209
    %p218 = scmp.eq.s32.totalorder %s34, 2
    %p219 = por %p217, %p218
    %p220 = scmp.ne.s32.totalorder %s209, %s210
    %p221 = scmp.eq.s32.totalorder %s34, 0
    %p222 = por %p220, %p221
    %p223 = scmp.ne.s32.totalorder %s209, %s210
    %p224 = scmp.eq.s32.totalorder %s35, 2
    %p225 = por %p223, %p224
    %p227 = scmp.ne.s32.totalorder %s210, %s226
    %p228 = scmp.eq.s32.totalorder %s35, 0
    %p229 = por %p227, %p228
    %s231 = sadd.s32 %s230, 1
    %p234 = scmp.eq.s32.totalorder %s29, 2
    %p235 = scmp.ne.s32.totalorder %s230, %s232
    %p236 = scmp.eq.s32.totalorder %s29, 0
    %p237 = por %p235, %p236
    %p238 = scmp.ne.s32.totalorder %s230, %s232
    %p239 = scmp.eq.s32.totalorder %s34, 2
    %p240 = por %p238, %p239
    %p241 = scmp.ne.s32.totalorder %s232, %s233
    %p242 = scmp.eq.s32.totalorder %s34, 0
    %p243 = por %p241, %p242
    %p244 = scmp.ne.s32.totalorder %s232, %s233
    %p245 = scmp.eq.s32.totalorder %s35, 2
    %p246 = por %p244, %p245
    %p248 = scmp.ne.s32.totalorder %s233, %s247
    %p249 = scmp.eq.s32.totalorder %s35, 0
    %p250 = por %p248, %p249
    %s252 = sadd.s32 %s251, 1
    %p255 = scmp.eq.s32.totalorder %s29, 2
    %p256 = scmp.ne.s32.totalorder %s251, %s253
    %p257 = scmp.eq.s32.totalorder %s29, 0
    %p258 = por %p256, %p257
    %p259 = scmp.ne.s32.totalorder %s251, %s253
    %p260 = scmp.eq.s32.totalorder %s34, 2
    %p261 = por %p259, %p260
    %p262 = scmp.ne.s32.totalorder %s253, %s254
    %p263 = scmp.eq.s32.totalorder %s34, 0
    %p264 = por %p262, %p263
    %p265 = scmp.ne.s32.totalorder %s253, %s254
    %p266 = scmp.eq.s32.totalorder %s35, 2
    %p267 = por %p265, %p266
    %p269 = scmp.ne.s32.totalorder %s254, %s268
    %p270 = scmp.eq.s32.totalorder %s35, 0
    %p271 = por %p269, %p270
    %s273 = sadd.s32 %s272, 1
    %p276 = scmp.eq.s32.totalorder %s29, 2
    %p277 = scmp.ne.s32.totalorder %s272, %s274
    %p278 = scmp.eq.s32.totalorder %s29, 0
    %p279 = por %p277, %p278
    %p280 = scmp.ne.s32.totalorder %s272, %s274
    %p281 = scmp.eq.s32.totalorder %s34, 2
    %p282 = por %p280, %p281
    %p283 = scmp.ne.s32.totalorder %s274, %s275
    %p284 = scmp.eq.s32.totalorder %s34, 0
    %p285 = por %p283, %p284
    %p286 = scmp.ne.s32.totalorder %s274, %s275
    %p287 = scmp.eq.s32.totalorder %s35, 2
    %p288 = por %p286, %p287
    %p290 = scmp.ne.s32.totalorder %s275, %s289
    %p291 = scmp.eq.s32.totalorder %s35, 0
    %p292 = por %p290, %p291
    %s294 = sadd.s32 %s293, 1
    %p297 = scmp.eq.s32.totalorder %s29, 2
    %p298 = scmp.ne.s32.totalorder %s293, %s295
    %p299 = scmp.eq.s32.totalorder %s29, 0
    %p300 = por %p298, %p299
    %p301 = scmp.ne.s32.totalorder %s293, %s295
    %p302 = scmp.eq.s32.totalorder %s34, 2
    %p303 = por %p301, %p302
    %p304 = scmp.ne.s32.totalorder %s295, %s296
    %p305 = scmp.eq.s32.totalorder %s34, 0
    %p306 = por %p304, %p305
    %p307 = scmp.ne.s32.totalorder %s295, %s296
    %p308 = scmp.eq.s32.totalorder %s35, 2
    %p309 = por %p307, %p308
    %p311 = scmp.ne.s32.totalorder %s296, %s310
    %p312 = scmp.eq.s32.totalorder %s35, 0
    %p313 = por %p311, %p312
    %s315 = sadd.s32 %s314, 1
    %p318 = scmp.eq.s32.totalorder %s29, 2
    %p319 = scmp.ne.s32.totalorder %s314, %s316
    %p320 = scmp.eq.s32.totalorder %s29, 0
    %p321 = por %p319, %p320
    %p322 = scmp.ne.s32.totalorder %s314, %s316
    %p323 = scmp.eq.s32.totalorder %s34, 2
    %p324 = por %p322, %p323
    %p325 = scmp.ne.s32.totalorder %s316, %s317
    %p326 = scmp.eq.s32.totalorder %s34, 0
    %p327 = por %p325, %p326
    %p328 = scmp.ne.s32.totalorder %s316, %s317
    %p329 = scmp.eq.s32.totalorder %s35, 2
    %p330 = por %p328, %p329
    %p332 = scmp.ne.s32.totalorder %s317, %s331
    %p333 = scmp.eq.s32.totalorder %s35, 0
    %p334 = por %p332, %p333
    %p335 = scmp.le.s32.totalorder 1, %s29
    %p336 = scmp.lt.s32.totalorder %s29, 4
    %p337 = pnand %p335, %p336
    %p338 = pneg %p337
    // Predicated region
    $region9: #{cgcnn_forward.1} parent=5 // pred_check
      _
    $region10: #{cgcnn_forward.1} parent=5 // pred_check_branch
      %340 = sbr.rel (%p337) target = $region12
    $region11: #{cgcnn_forward.1} parent=5 // pred_region
      %s341 = ssub.s32 %s29, 1
      // Predicated region
      $region13: #{cgcnn_forward.1} parent=11 // pred_check
        %p342 = pneg %p50
      $region14: #{cgcnn_forward.1} parent=11 // pred_check_branch
        %344 = sbr.rel (%p342) target = $region16
      $region15: #{cgcnn_forward.1} parent=11 // pred_region
        _
      $region16: #{cgcnn_forward.1} parent=11 // pred_fallthru
        _
      // Predicated region
      $region17: #{cgcnn_forward.1} parent=11 // pred_check
        %p345 = pneg %p71
      $region18: #{cgcnn_forward.1} parent=11 // pred_check_branch
        %347 = sbr.rel (%p345) target = $region20
      $region19: #{cgcnn_forward.1} parent=11 // pred_region
        _
      $region20: #{cgcnn_forward.1} parent=11 // pred_fallthru
        _
      // Predicated region
      $region21: #{cgcnn_forward.1} parent=11 // pred_check
        %p348 = pneg %p92
      $region22: #{cgcnn_forward.1} parent=11 // pred_check_branch
        %350 = sbr.rel (%p348) target = $region24
      $region23: #{cgcnn_forward.1} parent=11 // pred_region
        _
      $region24: #{cgcnn_forward.1} parent=11 // pred_fallthru
        _
      // Predicated region
      $region25: #{cgcnn_forward.1} parent=11 // pred_check
        %p351 = pneg %p243
      $region26: #{cgcnn_forward.1} parent=11 // pred_check_branch
        %353 = sbr.rel (%p351) target = $region28
      $region27: #{cgcnn_forward.1} parent=11 // pred_region
        _
      $region28: #{cgcnn_forward.1} parent=11 // pred_fallthru
        _
      // Predicated region
      $region29: #{cgcnn_forward.1} parent=11 // pred_check
        %p354 = pneg %p264
      $region30: #{cgcnn_forward.1} parent=11 // pred_check_branch
        %356 = sbr.rel (%p354) target = $region32
      $region31: #{cgcnn_forward.1} parent=11 // pred_region
        _
      $region32: #{cgcnn_forward.1} parent=11 // pred_fallthru
        _
      // Predicated region
      $region33: #{cgcnn_forward.1} parent=11 // pred_check
        %p357 = pneg %p285
      $region34: #{cgcnn_forward.1} parent=11 // pred_check_branch
        %359 = sbr.rel (%p357) target = $region36
      $region35: #{cgcnn_forward.1} parent=11 // pred_region
        _
      $region36: #{cgcnn_forward.1} parent=11 // pred_fallthru
        _
      // Predicated region
      $region37: #{cgcnn_forward.1} parent=11 // pred_check
        %p360 = pneg %p306
      $region38: #{cgcnn_forward.1} parent=11 // pred_check_branch
        %362 = sbr.rel (%p360) target = $region40
      $region39: #{cgcnn_forward.1} parent=11 // pred_region
        _
      $region40: #{cgcnn_forward.1} parent=11 // pred_fallthru
        _
    $region12: #{cgcnn_forward.1} parent=5 // pred_fallthru
      _
    %p363 = scmp.lt.s32.totalorder %s29, 3
    // Predicated region
    $region41: #{cgcnn_forward.1} parent=5 // pred_check
      %p364 = pneg %p363
    $region42: #{cgcnn_forward.1} parent=5 // pred_check_branch
      %366 = sbr.rel (%p364) target = $region44
    $region43: #{cgcnn_forward.1} parent=5 // pred_region
      // Predicated region
      $region45: #{cgcnn_forward.1} parent=43 // pred_check
        %p367 = pneg %p112
      $region46: #{cgcnn_forward.1} parent=43 // pred_check_branch
        %369 = sbr.rel (%p367) target = $region48
      $region47: #{cgcnn_forward.1} parent=43 // pred_region
        %p370 = scmp.lt.s32.totalorder %s29, 2
        %s371 = scalar_select %p370, %s29, 2
        %s372 = smul.addr %s371, 32
        %s373 = smul.addr %s372, 4
        %s374 = scalar_lea.vmem %s4, %s373
      $region48: #{cgcnn_forward.1} parent=43 // pred_fallthru
        _
      // Predicated region
      $region49: #{cgcnn_forward.1} parent=43 // pred_check
        %p375 = pneg %p138
      $region50: #{cgcnn_forward.1} parent=43 // pred_check_branch
        %377 = sbr.rel (%p375) target = $region52
      $region51: #{cgcnn_forward.1} parent=43 // pred_region
        %p378 = scmp.lt.s32.totalorder %s29, 2
        %s379 = scalar_select %p378, %s29, 2
        %s380 = smul.addr %s379, 32
        %s381 = smul.addr %s380, 4
        %s382 = scalar_lea.vmem %s5, %s381
      $region52: #{cgcnn_forward.1} parent=43 // pred_fallthru
        _
      // Predicated region
      $region53: #{cgcnn_forward.1} parent=43 // pred_check
        %p383 = pneg %p164
      $region54: #{cgcnn_forward.1} parent=43 // pred_check_branch
        %385 = sbr.rel (%p383) target = $region56
      $region55: #{cgcnn_forward.1} parent=43 // pred_region
        %p386 = scmp.lt.s32.totalorder %s29, 2
        %s387 = scalar_select %p386, %s29, 2
        %s388 = smul.addr %s387, 2
        %s389 = smul.addr %s388, 4
        %s390 = scalar_lea.vmem %s6, %s389
      $region56: #{cgcnn_forward.1} parent=43 // pred_fallthru
        _
      // Predicated region
      $region57: #{cgcnn_forward.1} parent=43 // pred_check
        %p391 = pneg %p190
      $region58: #{cgcnn_forward.1} parent=43 // pred_check_branch
        %393 = sbr.rel (%p391) target = $region60
      $region59: #{cgcnn_forward.1} parent=43 // pred_region
        %p394 = scmp.lt.s32.totalorder %s29, 2
        %s395 = scalar_select %p394, %s29, 2
        %s396 = smul.addr %s395, 2
        %s397 = scalar_lea.vmem %s7, %s396
      $region60: #{cgcnn_forward.1} parent=43 // pred_fallthru
        _
      // Predicated region
      $region61: #{cgcnn_forward.1} parent=43 // pred_check
        %p398 = pneg %p216
      $region62: #{cgcnn_forward.1} parent=43 // pred_check_branch
        %400 = sbr.rel (%p398) target = $region64
      $region63: #{cgcnn_forward.1} parent=43 // pred_region
        %p401 = scmp.lt.s32.totalorder %s29, 2
        %s402 = scalar_select %p401, %s29, 2
        %s403 = smul.addr %s402, 2
        %s404 = scalar_lea.vmem %s8, %s403
      $region64: #{cgcnn_forward.1} parent=43 // pred_fallthru
        _
    $region44: #{cgcnn_forward.1} parent=5 // pred_fallthru
      _
    %p405 = scmp.le.s32.totalorder 1, %s29
    %p406 = scmp.lt.s32.totalorder %s29, 4
    %p407 = pnand %p405, %p406
    %p408 = pneg %p407
    // Predicated region
    $region65: #{cgcnn_forward.1} parent=5 // pred_check
      _
    $region66: #{cgcnn_forward.1} parent=5 // pred_check_branch
      %410 = sbr.rel (%p407) target = $region68
    $region67: #{cgcnn_forward.1} parent=5 // pred_region
      %s411 = ssub.s32 %s29, 1
      %p412 = pneg %p50
      %p413 = pneg %p47
      %p414 = pneg %p71
      %p415 = pneg %p68
      %p416 = pneg %p92
      %p417 = pneg %p89
      %p418 = scmp.lt.s32.totalorder %s34, 2
      %s419 = scalar_select %p418, %s34, 2
      %s420 = smul.addr %s419, 32
      %s421 = smul.addr %s420, 4
      %s422 = scalar_lea.vmem %s4, %s421
      %p423 = pneg %p118
      %p424 = pneg %p115
      %p425 = scmp.lt.s32.totalorder %s34, 2
      %s426 = scalar_select %p425, %s34, 2
      %s427 = smul.addr %s426, 32
      %s428 = smul.addr %s427, 4
      %s429 = scalar_lea.vmem %s5, %s428
      %p430 = pneg %p144
      %p431 = pneg %p141
      %p432 = scmp.lt.s32.totalorder %s34, 2
      %s433 = scalar_select %p432, %s34, 2
      %s434 = smul.addr %s433, 2
      %s435 = smul.addr %s434, 4
      %s436 = scalar_lea.vmem %s6, %s435
      %p437 = pneg %p170
      %p438 = pneg %p167
      %p439 = scmp.lt.s32.totalorder %s34, 2
      %s440 = scalar_select %p439, %s34, 2
      %s441 = smul.addr %s440, 2
      %s442 = scalar_lea.vmem %s7, %s441
      %p443 = pneg %p196
      %p444 = pneg %p193
      %p445 = scmp.lt.s32.totalorder %s34, 2
      %s446 = scalar_select %p445, %s34, 2
      %s447 = smul.addr %s446, 2
      %s448 = scalar_lea.vmem %s8, %s447
      %p449 = pneg %p222
      %p450 = pneg %p219
      %p451 = pneg %p243
      %p452 = pneg %p240
      %p453 = pneg %p264
      %p454 = pneg %p261
      %p455 = pneg %p285
      %p456 = pneg %p282
      %p457 = pneg %p306
      %p458 = pneg %p303
      %p459 = pneg %p327
      %p460 = pneg %p324
      %p461 = scmp.lt.s32.totalorder %s34, 2
      %s462 = scalar_select %p461, %s34, 2
      %s463 = smul.addr %s462, 32
      %s464 = smul.addr %s463, 4
      %s465 = scalar_lea.vmem %s4, %s464
      %p466 = scmp.lt.s32.totalorder %s34, 2
      %s467 = scalar_select %p466, %s34, 2
      %s468 = smul.addr %s467, 32
      %s469 = smul.addr %s468, 4
      %s470 = scalar_lea.vmem %s5, %s469
      %p471 = scmp.lt.s32.totalorder %s34, 2
      %s472 = scalar_select %p471, %s34, 2
      %s473 = smul.addr %s472, 2
      %s474 = smul.addr %s473, 4
      %s475 = scalar_lea.vmem %s6, %s474
      %p476 = scmp.lt.s32.totalorder %s34, 2
      %s477 = scalar_select %p476, %s34, 2
      %s478 = smul.addr %s477, 2
      %s479 = scalar_lea.vmem %s7, %s478
      %p480 = scmp.lt.s32.totalorder %s34, 2
      %s481 = scalar_select %p480, %s34, 2
      %s482 = smul.addr %s481, 2
      %s483 = scalar_lea.vmem %s8, %s482
      %p485 = scmp.eq.s32.totalorder %s34, 0
      // Predicated region
      $region69: #{cgcnn_forward.1} parent=67 // pred_check
        %p486 = pneg %p485
      $region70: #{cgcnn_forward.1} parent=67 // pred_check_branch
        %488 = sbr.rel (%p486) target = $region72
      $region71: #{cgcnn_forward.1} parent=67 // pred_region
        %v489 = vld [vmem:[%s1] sm:$0xff]
        %v490 = vld [vmem:[%s1 + $0x8] sm:$0xff]
        %491 = vst [vmem:[#allocation2] sm:$0xff] %v489
        %492 = vst [vmem:[#allocation2 + $0x8] sm:$0xff] %v490
      $region72: #{cgcnn_forward.1} parent=67 // pred_fallthru
        _
      %v493 = vld [vmem:[#allocation2] sm:$0xff]
      %v494 = vld [vmem:[#allocation2 + $0x8] sm:$0xff]
      %v495 = vpack.c.bf16 %v494, %v493
      %v496 = vld [vmem:[%s465] sm:$0xff]
      %v497 = vld [vmem:[%s465 + $0x8] sm:$0xff]
      %v498 = vld [vmem:[%s465 + $0x10] sm:$0xff]
      %v499 = vld [vmem:[%s465 + $0x18] sm:$0xff]
      %v500 = vld [vmem:[%s465 + $0x20] sm:$0xff]
      %v501 = vld [vmem:[%s465 + $0x28] sm:$0xff]
      %v502 = vld [vmem:[%s465 + $0x30] sm:$0xff]
      %v503 = vld [vmem:[%s465 + $0x38] sm:$0xff]
      %v504 = vld [vmem:[%s465 + $0x40] sm:$0xff]
      %v505 = vld [vmem:[%s465 + $0x48] sm:$0xff]
      %v506 = vld [vmem:[%s465 + $0x50] sm:$0xff]
      %v507 = vld [vmem:[%s465 + $0x58] sm:$0xff]
      %v508 = vld [vmem:[%s465 + $0x60] sm:$0xff]
      %v509 = vld [vmem:[%s465 + $0x68] sm:$0xff]
      %v510 = vld [vmem:[%s465 + $0x70] sm:$0xff]
      %v511 = vld [vmem:[%s465 + $0x78] sm:$0xff]
      %v512 = vld [vmem:[%s479] sm:$0x3]
      %v514 = vperm.slane %v512, 0
      %v515 = vperm.slane %v512, 1
      %v534 = vunpack.c.l.b16 %v496
      %v535 = vunpack.c.h.b16 %v496
      %v536 = vunpack.c.l.b16 %v497
      %v537 = vunpack.c.h.b16 %v497
      %v538 = vunpack.c.l.b16 %v498
      %v539 = vunpack.c.h.b16 %v498
      %v540 = vunpack.c.l.b16 %v499
      %v541 = vunpack.c.h.b16 %v499
      %v542 = vunpack.c.l.b16 %v500
      %v543 = vunpack.c.h.b16 %v500
      %v544 = vunpack.c.l.b16 %v501
      %v545 = vunpack.c.h.b16 %v501
      %v546 = vunpack.c.l.b16 %v502
      %v547 = vunpack.c.h.b16 %v502
      %v548 = vunpack.c.l.b16 %v503
      %v549 = vunpack.c.h.b16 %v503
      %v550 = vunpack.c.l.b16 %v504
      %v551 = vunpack.c.h.b16 %v504
      %v552 = vunpack.c.l.b16 %v505
      %v553 = vunpack.c.h.b16 %v505
      %v554 = vunpack.c.l.b16 %v506
      %v555 = vunpack.c.h.b16 %v506
      %v556 = vunpack.c.l.b16 %v507
      %v557 = vunpack.c.h.b16 %v507
      %v558 = vunpack.c.l.b16 %v508
      %v559 = vunpack.c.h.b16 %v508
      %v560 = vunpack.c.l.b16 %v509
      %v561 = vunpack.c.h.b16 %v509
      %v562 = vunpack.c.l.b16 %v510
      %v563 = vunpack.c.h.b16 %v510
      %v564 = vunpack.c.l.b16 %v511
      %v565 = vunpack.c.h.b16 %v511
      %v566 = vpack.c.b16 %v536, %v534
      %v567 = vpack.c.b16 %v537, %v535
      %v568 = vpack.c.b16 %v540, %v538
      %v569 = vpack.c.b16 %v541, %v539
      %v570 = vpack.c.b16 %v544, %v542
      %v571 = vpack.c.b16 %v545, %v543
      %v572 = vpack.c.b16 %v548, %v546
      %v573 = vpack.c.b16 %v549, %v547
      %v574 = vpack.c.b16 %v552, %v550
      %v575 = vpack.c.b16 %v553, %v551
      %v576 = vpack.c.b16 %v556, %v554
      %v577 = vpack.c.b16 %v557, %v555
      %v578 = vpack.c.b16 %v560, %v558
      %v579 = vpack.c.b16 %v561, %v559
      %v580 = vpack.c.b16 %v564, %v562
      %v581 = vpack.c.b16 %v565, %v563
      %598 = vmatpush.bf16.msra.mxu0 %v580
      %599 = vmatpush.bf16.msra.mxu0 %v578
      %600 = vmatpush.bf16.msra.mxu0 %v576
      %601 = vmatpush.bf16.msra.mxu0 %v574
      %602 = vmatpush.bf16.msra.mxu0 %v572
      %603 = vmatpush.bf16.msra.mxu0 %v570
      %604 = vmatpush.bf16.msra.mxu0 %v568
      %605 = vmatpush.bf16.msra.mxu0 %v566
      %606 = vmatmul.bf16.gmra.mxu0 %v495
      %v607 = vpop.f32.mrf.mxu0
      %v608 = vadd.f32 %v514, %v607
      %v609 = vpop.f32.mrf.mxu0
      %v610 = vadd.f32 %v514, %v609
      %611 = vdwg.mxu0
      %612 = vmatpush.bf16.msra.mxu0 %v581
      %613 = vmatpush.bf16.msra.mxu0 %v579
      %614 = vmatpush.bf16.msra.mxu0 %v577
      %615 = vmatpush.bf16.msra.mxu0 %v575
      %616 = vmatpush.bf16.msra.mxu0 %v573
      %617 = vmatpush.bf16.msra.mxu0 %v571
      %618 = vmatpush.bf16.msra.mxu0 %v569
      %619 = vmatpush.bf16.msra.mxu0 %v567
      %620 = vmatmul.bf16.gmra.mxu0 %v495
      %v621 = vpop.f32.mrf.mxu0
      %v622 = vadd.f32 %v515, %v621
      %v623 = vpop.f32.mrf.mxu0
      %v624 = vadd.f32 %v515, %v623
      %625 = vdwg.mxu0
      %v626 = vld [vmem:[%s3] sm:$0xf]
      %v627 = vld [vmem:[%s3 + $0x4] sm:$0xf]
      %v628 = vld [vmem:[%s3 + $0x8] sm:$0xf]
      %v629 = vld [vmem:[%s3 + $0xc] sm:$0xf]
      %v630 = vld [vmem:[%s3 + $0x10] sm:$0xf]
      %v631 = vld [vmem:[%s3 + $0x14] sm:$0xf]
      %v632 = vld [vmem:[%s3 + $0x18] sm:$0xf]
      %v633 = vld [vmem:[%s3 + $0x1c] sm:$0xf]
      %v634 = vld [vmem:[%s3 + $0x20] sm:$0xf]
      %v635 = vld [vmem:[%s3 + $0x24] sm:$0xf]
      %v636 = vld [vmem:[%s3 + $0x28] sm:$0xf]
      %v637 = vld [vmem:[%s3 + $0x2c] sm:$0xf]
      %v638 = vld [vmem:[%s3 + $0x30] sm:$0xf]
      %v639 = vld [vmem:[%s3 + $0x34] sm:$0xf]
      %v640 = vld [vmem:[%s3 + $0x38] sm:$0xf]
      %v641 = vld [vmem:[%s3 + $0x3c] sm:$0xf]
      %v642 = vld [vmem:[%s475] sm:$0xff]
      %v659 = vunpack.c.l.b16 %v626
      %v660 = vunpack.c.l.b16 %v627
      %v661 = vunpack.c.l.b16 %v628
      %v662 = vunpack.c.l.b16 %v629
      %v663 = vunpack.c.l.b16 %v630
      %v664 = vunpack.c.l.b16 %v631
      %v665 = vunpack.c.l.b16 %v632
      %v666 = vunpack.c.l.b16 %v633
      %v667 = vunpack.c.l.b16 %v634
      %v668 = vunpack.c.l.b16 %v635
      %v669 = vunpack.c.l.b16 %v636
      %v670 = vunpack.c.l.b16 %v637
      %v671 = vunpack.c.l.b16 %v638
      %v672 = vunpack.c.l.b16 %v639
      %v673 = vunpack.c.l.b16 %v640
      %v674 = vunpack.c.l.b16 %v641
      %v675 = vpack.c.b16 %v660, %v659
      %v676 = vpack.c.b16 %v662, %v661
      %v677 = vpack.c.b16 %v664, %v663
      %v678 = vpack.c.b16 %v666, %v665
      %v679 = vpack.c.b16 %v668, %v667
      %v680 = vpack.c.b16 %v670, %v669
      %v681 = vpack.c.b16 %v672, %v671
      %v682 = vpack.c.b16 %v674, %v673
      %v684 = vunpack.c.l.b16 %v642
      %v685 = vunpack.c.h.b16 %v642
      %v686 = vpack.c.b16 %v684, %v684
      %v687 = vpack.c.b16 %v685, %v685
      %vm688 = vcmask 64512
      %v690 = vsel %vm688, %v675, 0
      %v693 = vsel %vm688, %v676, 0
      %v696 = vsel %vm688, %v677, 0
      %v699 = vsel %vm688, %v678, 0
      %v702 = vsel %vm688, %v679, 0
      %v705 = vsel %vm688, %v680, 0
      %v708 = vsel %vm688, %v681, 0
      %v711 = vsel %vm688, %v682, 0
      %vm713 = vcmask 1043456
      %v715 = vsel %vm713, %v686, 0
      %v718 = vsel %vm713, %v687, 0
      %720 = vmatpush.bf16.msra.mxu0 0
      %721 = vmatpush.bf16.msra.mxu0 0
      %722 = vmatpush.bf16.msra.mxu0 0
      %723 = vmatpush.bf16.msra.mxu0 0
      %724 = vmatpush.bf16.msra.mxu0 0
      %725 = vmatpush.bf16.msra.mxu0 0
      %726 = vmatpush.bf16.msra.mxu0 0
      %727 = vmatpush.bf16.msra.mxu0 %v715
      %728 = vmatmul.bf16.gmra.mxu0 %v690
      %v729 = vpop.f32.mrf.mxu0
      %v730 = vadd.f32 0.0, %v729
      %v731 = vpop.f32.mrf.mxu0
      %v732 = vadd.f32 0.0, %v731
      %733 = vmatmul.bf16.gmra.mxu0 %v693
      %v734 = vpop.f32.mrf.mxu0
      %v735 = vadd.f32 0.0, %v734
      %v736 = vpop.f32.mrf.mxu0
      %v737 = vadd.f32 0.0, %v736
      %738 = vmatmul.bf16.gmra.mxu0 %v696
      %v739 = vpop.f32.mrf.mxu0
      %v740 = vadd.f32 0.0, %v739
      %v741 = vpop.f32.mrf.mxu0
      %v742 = vadd.f32 0.0, %v741
      %743 = vmatmul.bf16.gmra.mxu0 %v699
      %v744 = vpop.f32.mrf.mxu0
      %v745 = vadd.f32 0.0, %v744
      %v746 = vpop.f32.mrf.mxu0
      %v747 = vadd.f32 0.0, %v746
      %748 = vmatmul.bf16.gmra.mxu0 %v702
      %v749 = vpop.f32.mrf.mxu0
      %v750 = vadd.f32 0.0, %v749
      %v751 = vpop.f32.mrf.mxu0
      %v752 = vadd.f32 0.0, %v751
      %753 = vmatmul.bf16.gmra.mxu0 %v705
      %v754 = vpop.f32.mrf.mxu0
      %v755 = vadd.f32 0.0, %v754
      %v756 = vpop.f32.mrf.mxu0
      %v757 = vadd.f32 0.0, %v756
      %758 = vmatmul.bf16.gmra.mxu0 %v708
      %v759 = vpop.f32.mrf.mxu0
      %v760 = vadd.f32 0.0, %v759
      %v761 = vpop.f32.mrf.mxu0
      %v762 = vadd.f32 0.0, %v761
      %763 = vmatmul.bf16.gmra.mxu0 %v711
      %v764 = vpop.f32.mrf.mxu0
      %v765 = vadd.f32 0.0, %v764
      %v766 = vpop.f32.mrf.mxu0
      %v767 = vadd.f32 0.0, %v766
      %768 = vdwg.mxu0
      %769 = vmatpush.bf16.msra.mxu0 0
      %770 = vmatpush.bf16.msra.mxu0 0
      %771 = vmatpush.bf16.msra.mxu0 0
      %772 = vmatpush.bf16.msra.mxu0 0
      %773 = vmatpush.bf16.msra.mxu0 0
      %774 = vmatpush.bf16.msra.mxu0 0
      %775 = vmatpush.bf16.msra.mxu0 0
      %776 = vmatpush.bf16.msra.mxu0 %v718
      %777 = vmatmul.bf16.gmra.mxu0 %v690
      %v778 = vpop.f32.mrf.mxu0
      %v779 = vadd.f32 0.0, %v778
      %v780 = vpop.f32.mrf.mxu0
      %v781 = vadd.f32 0.0, %v780
      %782 = vmatmul.bf16.gmra.mxu0 %v693
      %v783 = vpop.f32.mrf.mxu0
      %v784 = vadd.f32 0.0, %v783
      %v785 = vpop.f32.mrf.mxu0
      %v786 = vadd.f32 0.0, %v785
      %787 = vmatmul.bf16.gmra.mxu0 %v696
      %v788 = vpop.f32.mrf.mxu0
      %v789 = vadd.f32 0.0, %v788
      %v790 = vpop.f32.mrf.mxu0
      %v791 = vadd.f32 0.0, %v790
      %792 = vmatmul.bf16.gmra.mxu0 %v699
      %v793 = vpop.f32.mrf.mxu0
      %v794 = vadd.f32 0.0, %v793
      %v795 = vpop.f32.mrf.mxu0
      %v796 = vadd.f32 0.0, %v795
      %797 = vmatmul.bf16.gmra.mxu0 %v702
      %v798 = vpop.f32.mrf.mxu0
      %v799 = vadd.f32 0.0, %v798
      %v800 = vpop.f32.mrf.mxu0
      %v801 = vadd.f32 0.0, %v800
      %802 = vmatmul.bf16.gmra.mxu0 %v705
      %v803 = vpop.f32.mrf.mxu0
      %v804 = vadd.f32 0.0, %v803
      %v805 = vpop.f32.mrf.mxu0
      %v806 = vadd.f32 0.0, %v805
      %807 = vmatmul.bf16.gmra.mxu0 %v708
      %v808 = vpop.f32.mrf.mxu0
      %v809 = vadd.f32 0.0, %v808
      %v810 = vpop.f32.mrf.mxu0
      %v811 = vadd.f32 0.0, %v810
      %812 = vmatmul.bf16.gmra.mxu0 %v711
      %v813 = vpop.f32.mrf.mxu0
      %v814 = vadd.f32 0.0, %v813
      %v815 = vpop.f32.mrf.mxu0
      %v816 = vadd.f32 0.0, %v815
      %817 = vdwg.mxu0
      %v818 = vld [vmem:[%s2] sm:$0xff]
      %819 = vxpose.xlu0.b32.start [1/16] %v493, 128
      %820 = vxpose.xlu0.b32.cont [2/16] %v494, 128
      %821 = vxpose.xlu0.b32.cont [3/16] 0.0, 128
      %822 = vxpose.xlu0.b32.cont [4/16] 0.0, 128
      %823 = vxpose.xlu0.b32.cont [5/16] 0.0, 128
      %824 = vxpose.xlu0.b32.cont [6/16] 0.0, 128
      %825 = vxpose.xlu0.b32.cont [7/16] 0.0, 128
      %826 = vxpose.xlu0.b32.cont [8/16] 0.0, 128
      %827 = vxpose.xlu0.b32.cont [9/16] 0.0, 128
      %828 = vxpose.xlu0.b32.cont [10/16] 0.0, 128
      %829 = vxpose.xlu0.b32.cont [11/16] 0.0, 128
      %830 = vxpose.xlu0.b32.cont [12/16] 0.0, 128
      %831 = vxpose.xlu0.b32.cont [13/16] 0.0, 128
      %832 = vxpose.xlu0.b32.cont [14/16] 0.0, 128
      %833 = vxpose.xlu0.b32.cont [15/16] 0.0, 128
      %834 = vxpose.xlu0.b32.end [16/16] 0.0, 128
      %v835 = vpop.trf.xlu0
      %v836 = vpop.trf.xlu0
      %v837 = vpop.trf.xlu0
      %v838 = vpop.trf.xlu0
      %v839 = vpop.trf.xlu0
      %v840 = vpop.trf.xlu0
      %v841 = vpop.trf.xlu0
      %v842 = vpop.trf.xlu0
      %v843 = vpop.trf.xlu0
      %v844 = vpop.trf.xlu0
      %v845 = vpop.trf.xlu0
      %v846 = vpop.trf.xlu0
      %v847 = vpop.trf.xlu0
      %v848 = vpop.trf.xlu0
      %v849 = vpop.trf.xlu0
      %v850 = vpop.trf.xlu0
      %v851 = vperm.slane %v818, 0
      %vm852 = vcmp.lt.s32.totalorder %v851, 0
      %v853 = vadd.s32 %v851, 16
      %v854 = vsel %vm852, %v853, %v851
      %855 = vset.pattern.permute.xlu0 %v854
      %856 = vperm.xlu0 %855, %v835
      %v857 = vpop.permute.xlu0 %856
      %858 = vset.pattern.permute.xlu0 %v854
      %859 = vperm.xlu0 %858, %v836
      %v860 = vpop.permute.xlu0 %859
      %861 = vset.pattern.permute.xlu0 %v854
      %862 = vperm.xlu0 %861, %v837
      %v863 = vpop.permute.xlu0 %862
      %864 = vset.pattern.permute.xlu0 %v854
      %865 = vperm.xlu0 %864, %v838
      %v866 = vpop.permute.xlu0 %865
      %867 = vset.pattern.permute.xlu0 %v854
      %868 = vperm.xlu0 %867, %v839
      %v869 = vpop.permute.xlu0 %868
      %870 = vset.pattern.permute.xlu0 %v854
      %871 = vperm.xlu0 %870, %v840
      %v872 = vpop.permute.xlu0 %871
      %873 = vset.pattern.permute.xlu0 %v854
      %874 = vperm.xlu0 %873, %v841
      %v875 = vpop.permute.xlu0 %874
      %876 = vset.pattern.permute.xlu0 %v854
      %877 = vperm.xlu0 %876, %v842
      %v878 = vpop.permute.xlu0 %877
      %879 = vset.pattern.permute.xlu0 %v854
      %880 = vperm.xlu0 %879, %v843
      %v881 = vpop.permute.xlu0 %880
      %882 = vset.pattern.permute.xlu0 %v854
      %883 = vperm.xlu0 %882, %v844
      %v884 = vpop.permute.xlu0 %883
      %885 = vset.pattern.permute.xlu0 %v854
      %886 = vperm.xlu0 %885, %v845
      %v887 = vpop.permute.xlu0 %886
      %888 = vset.pattern.permute.xlu0 %v854
      %889 = vperm.xlu0 %888, %v846
      %v890 = vpop.permute.xlu0 %889
      %891 = vset.pattern.permute.xlu0 %v854
      %892 = vperm.xlu0 %891, %v847
      %v893 = vpop.permute.xlu0 %892
      %894 = vset.pattern.permute.xlu0 %v854
      %895 = vperm.xlu0 %894, %v848
      %v896 = vpop.permute.xlu0 %895
      %897 = vset.pattern.permute.xlu0 %v854
      %898 = vperm.xlu0 %897, %v849
      %v899 = vpop.permute.xlu0 %898
      %900 = vset.pattern.permute.xlu0 %v854
      %901 = vperm.xlu0 %900, %v850
      %v902 = vpop.permute.xlu0 %901
      %903 = vxpose.xlu0.b32.start [1/16] %v857, 128
      %904 = vxpose.xlu0.b32.cont [2/16] %v860, 128
      %905 = vxpose.xlu0.b32.cont [3/16] %v863, 128
      %906 = vxpose.xlu0.b32.cont [4/16] %v866, 128
      %907 = vxpose.xlu0.b32.cont [5/16] %v869, 128
      %908 = vxpose.xlu0.b32.cont [6/16] %v872, 128
      %909 = vxpose.xlu0.b32.cont [7/16] %v875, 128
      %910 = vxpose.xlu0.b32.cont [8/16] %v878, 128
      %911 = vxpose.xlu0.b32.cont [9/16] %v881, 128
      %912 = vxpose.xlu0.b32.cont [10/16] %v884, 128
      %913 = vxpose.xlu0.b32.cont [11/16] %v887, 128
      %914 = vxpose.xlu0.b32.cont [12/16] %v890, 128
      %915 = vxpose.xlu0.b32.cont [13/16] %v893, 128
      %916 = vxpose.xlu0.b32.cont [14/16] %v896, 128
      %917 = vxpose.xlu0.b32.cont [15/16] %v899, 128
      %918 = vxpose.xlu0.b32.end [16/16] %v902, 128
      %v919 = vpop.trf.xlu0
      %v920 = vpop.trf.xlu0
      %v921 = vpop.trf.xlu0
      %v922 = vpop.trf.xlu0
      %v923 = vpop.trf.xlu0
      %v924 = vpop.trf.xlu0
      %v925 = vpop.trf.xlu0
      %v926 = vpop.trf.xlu0
      %v927 = vpop.trf.xlu0
      %v928 = vpop.trf.xlu0
      %v929 = vpop.trf.xlu0
      %v930 = vpop.trf.xlu0
      %v931 = vpop.trf.xlu0
      %v932 = vpop.trf.xlu0
      %v933 = vpop.trf.xlu0
      %v934 = vpop.trf.xlu0
      %v935 = vpack.c.bf16 %v920, %v919
      %v936 = vld [vmem:[%s470] sm:$0xff]
      %v937 = vld [vmem:[%s470 + $0x8] sm:$0xff]
      %v938 = vld [vmem:[%s470 + $0x10] sm:$0xff]
      %v939 = vld [vmem:[%s470 + $0x18] sm:$0xff]
      %v940 = vld [vmem:[%s470 + $0x20] sm:$0xff]
      %v941 = vld [vmem:[%s470 + $0x28] sm:$0xff]
      %v942 = vld [vmem:[%s470 + $0x30] sm:$0xff]
      %v943 = vld [vmem:[%s470 + $0x38] sm:$0xff]
      %v944 = vld [vmem:[%s470 + $0x40] sm:$0xff]
      %v945 = vld [vmem:[%s470 + $0x48] sm:$0xff]
      %v946 = vld [vmem:[%s470 + $0x50] sm:$0xff]
      %v947 = vld [vmem:[%s470 + $0x58] sm:$0xff]
      %v948 = vld [vmem:[%s470 + $0x60] sm:$0xff]
      %v949 = vld [vmem:[%s470 + $0x68] sm:$0xff]
      %v950 = vld [vmem:[%s470 + $0x70] sm:$0xff]
      %v951 = vld [vmem:[%s470 + $0x78] sm:$0xff]
      %v968 = vunpack.c.l.b16 %v936
      %v969 = vunpack.c.h.b16 %v936
      %v970 = vunpack.c.l.b16 %v937
      %v971 = vunpack.c.h.b16 %v937
      %v972 = vunpack.c.l.b16 %v938
      %v973 = vunpack.c.h.b16 %v938
      %v974 = vunpack.c.l.b16 %v939
      %v975 = vunpack.c.h.b16 %v939
      %v976 = vunpack.c.l.b16 %v940
      %v977 = vunpack.c.h.b16 %v940
      %v978 = vunpack.c.l.b16 %v941
      %v979 = vunpack.c.h.b16 %v941
      %v980 = vunpack.c.l.b16 %v942
      %v981 = vunpack.c.h.b16 %v942
      %v982 = vunpack.c.l.b16 %v943
      %v983 = vunpack.c.h.b16 %v943
      %v984 = vunpack.c.l.b16 %v944
      %v985 = vunpack.c.h.b16 %v944
      %v986 = vunpack.c.l.b16 %v945
      %v987 = vunpack.c.h.b16 %v945
      %v988 = vunpack.c.l.b16 %v946
      %v989 = vunpack.c.h.b16 %v946
      %v990 = vunpack.c.l.b16 %v947
      %v991 = vunpack.c.h.b16 %v947
      %v992 = vunpack.c.l.b16 %v948
      %v993 = vunpack.c.h.b16 %v948
      %v994 = vunpack.c.l.b16 %v949
      %v995 = vunpack.c.h.b16 %v949
      %v996 = vunpack.c.l.b16 %v950
      %v997 = vunpack.c.h.b16 %v950
      %v998 = vunpack.c.l.b16 %v951
      %v999 = vunpack.c.h.b16 %v951
      %v1000 = vpack.c.b16 %v970, %v968
      %v1001 = vpack.c.b16 %v971, %v969
      %v1002 = vpack.c.b16 %v974, %v972
      %v1003 = vpack.c.b16 %v975, %v973
      %v1004 = vpack.c.b16 %v978, %v976
      %v1005 = vpack.c.b16 %v979, %v977
      %v1006 = vpack.c.b16 %v982, %v980
      %v1007 = vpack.c.b16 %v983, %v981
      %v1008 = vpack.c.b16 %v986, %v984
      %v1009 = vpack.c.b16 %v987, %v985
      %v1010 = vpack.c.b16 %v990, %v988
      %v1011 = vpack.c.b16 %v991, %v989
      %v1012 = vpack.c.b16 %v994, %v992
      %v1013 = vpack.c.b16 %v995, %v993
      %v1014 = vpack.c.b16 %v998, %v996
      %v1015 = vpack.c.b16 %v999, %v997
      %1032 = vmatpush.bf16.msra.mxu0 %v1014
      %1033 = vmatpush.bf16.msra.mxu0 %v1012
      %1034 = vmatpush.bf16.msra.mxu0 %v1010
      %1035 = vmatpush.bf16.msra.mxu0 %v1008
      %1036 = vmatpush.bf16.msra.mxu0 %v1006
      %1037 = vmatpush.bf16.msra.mxu0 %v1004
      %1038 = vmatpush.bf16.msra.mxu0 %v1002
      %1039 = vmatpush.bf16.msra.mxu0 %v1000
      %1040 = vmatmul.bf16.gmra.mxu0 %v935
      %v1041 = vpop.f32.mrf.mxu0
      %v1042 = vadd.f32 %v608, %v1041
      %v1043 = vpop.f32.mrf.mxu0
      %v1044 = vadd.f32 %v610, %v1043
      %1045 = vdwg.mxu0
      %1046 = vmatpush.bf16.msra.mxu0 %v1015
      %1047 = vmatpush.bf16.msra.mxu0 %v1013
      %1048 = vmatpush.bf16.msra.mxu0 %v1011
      %1049 = vmatpush.bf16.msra.mxu0 %v1009
      %1050 = vmatpush.bf16.msra.mxu0 %v1007
      %1051 = vmatpush.bf16.msra.mxu0 %v1005
      %1052 = vmatpush.bf16.msra.mxu0 %v1003
      %1053 = vmatpush.bf16.msra.mxu0 %v1001
      %1054 = vmatmul.bf16.gmra.mxu0 %v935
      %v1055 = vpop.f32.mrf.mxu0
      %v1056 = vadd.f32 %v622, %v1055
      %v1057 = vpop.f32.mrf.mxu0
      %v1058 = vadd.f32 %v624, %v1057
      %1059 = vdwg.mxu0
      %v1060 = vadd.f32 %v1042, %v730
      %v1061 = vadd.f32 %v1056, %v779
      %v1062 = vadd.f32 %v1044, %v732
      %v1063 = vadd.f32 %v1058, %v781
      %v1064 = vsub.f32 0.0, %v1060
      %v1065 = vsub.f32 0.0, %v1062
      %v1066 = vmul.f32 %v1064, 1.442695
      %v1067 = vpow.pop %v1066
      %v1068 = vmul.f32 %v1065, 1.442695
      %v1069 = vpow.pop %v1068
      %v1070 = vadd.f32 %v1067, 1.0
      %v1071 = vadd.f32 %v1069, 1.0
      %v1072 = vrcp.pop %v1070
      %v1073 = vmul.f32 %v1070, %v1072
      %v1074 = vsub.f32 1.0, %v1073
      %v1075 = vmul.f32 %v1072, %v1074
      %v1076 = vadd.f32 %v1072, %v1075
      %vm1077 = vweird.f32 %v1070
      %vm1078 = vweird.f32 %v1072
      %vm1079 = vmor %vm1077, %vm1078
      %v1080 = vsel %vm1079, %v1072, %v1076
      %v1081 = vand.u32 2147483647, %v1070
      %vm1082 = vcmp.eq.f32.partialorder %v1081, 8.507059e+37
      %v1083 = vand.u32 %v1070, 2147483648
      %v1084 = vor.u32 1.1754944e-38, %v1083
      %v1085 = vsel %vm1082, %v1084, %v1080
      %v1086 = vmul.f32 1.0, %v1085
      %v1087 = vrcp.pop %v1071
      %v1088 = vmul.f32 %v1071, %v1087
      %v1089 = vsub.f32 1.0, %v1088
      %v1090 = vmul.f32 %v1087, %v1089
      %v1091 = vadd.f32 %v1087, %v1090
      %vm1092 = vweird.f32 %v1071
      %vm1093 = vweird.f32 %v1087
      %vm1094 = vmor %vm1092, %vm1093
      %v1095 = vsel %vm1094, %v1087, %v1091
      %v1096 = vand.u32 2147483647, %v1071
      %vm1097 = vcmp.eq.f32.partialorder %v1096, 8.507059e+37
      %v1098 = vand.u32 %v1071, 2147483648
      %v1099 = vor.u32 1.1754944e-38, %v1098
      %v1100 = vsel %vm1097, %v1099, %v1095
      %v1101 = vmul.f32 1.0, %v1100
      %v1102 = vmax.f32 %v1061, 0.0
      %v1103 = vmax.f32 %v1063, 0.0
      %v1104 = vand.u32 2147483647, %v1061
      %v1105 = vand.u32 2147483647, %v1063
      %v1106 = vsub.f32 0.0, %v1104
      %v1107 = vsub.f32 0.0, %v1105
      %v1108 = vmul.f32 %v1106, 1.442695
      %v1109 = vpow.pop %v1108
      %v1110 = vmul.f32 %v1107, 1.442695
      %v1111 = vpow.pop %v1110
      %v1112 = vadd.f32 %v1109, 1.0
      %v1113 = vadd.f32 %v1111, 1.0
      %v1114 = vlog2.pop %v1112
      %v1115 = vmul.f32 %v1114, 0.6931472
      %v1116 = vlog2.pop %v1113
      %v1117 = vmul.f32 %v1116, 0.6931472
      %v1118 = vadd.f32 %v1102, %v1115
      %v1119 = vadd.f32 %v1103, %v1117
      %v1120 = vmul.f32 %v1086, %v1118
      %v1121 = vmul.f32 %v1101, %v1119
      %v1122 = vadd.f32 %v1120, 0.0
      %v1123 = vadd.f32 %v1121, 0.0
      %v1124 = vperm.slane %v818, 1
      %vm1125 = vcmp.lt.s32.totalorder %v1124, 0
      %v1126 = vadd.s32 %v1124, 16
      %v1127 = vsel %vm1125, %v1126, %v1124
      %1128 = vset.pattern.permute.xlu0 %v1127
      %1129 = vperm.xlu0 %1128, %v835
      %v1130 = vpop.permute.xlu0 %1129
      %1131 = vset.pattern.permute.xlu0 %v1127
      %1132 = vperm.xlu0 %1131, %v836
      %v1133 = vpop.permute.xlu0 %1132
      %1134 = vset.pattern.permute.xlu0 %v1127
      %1135 = vperm.xlu0 %1134, %v837
      %v1136 = vpop.permute.xlu0 %1135
      %1137 = vset.pattern.permute.xlu0 %v1127
      %1138 = vperm.xlu0 %1137, %v838
      %v1139 = vpop.permute.xlu0 %1138
      %1140 = vset.pattern.permute.xlu0 %v1127
      %1141 = vperm.xlu0 %1140, %v839
      %v1142 = vpop.permute.xlu0 %1141
      %1143 = vset.pattern.permute.xlu0 %v1127
      %1144 = vperm.xlu0 %1143, %v840
      %v1145 = vpop.permute.xlu0 %1144
      %1146 = vset.pattern.permute.xlu0 %v1127
      %1147 = vperm.xlu0 %1146, %v841
      %v1148 = vpop.permute.xlu0 %1147
      %1149 = vset.pattern.permute.xlu0 %v1127
      %1150 = vperm.xlu0 %1149, %v842
      %v1151 = vpop.permute.xlu0 %1150
      %1152 = vset.pattern.permute.xlu0 %v1127
      %1153 = vperm.xlu0 %1152, %v843
      %v1154 = vpop.permute.xlu0 %1153
      %1155 = vset.pattern.permute.xlu0 %v1127
      %1156 = vperm.xlu0 %1155, %v844
      %v1157 = vpop.permute.xlu0 %1156
      %1158 = vset.pattern.permute.xlu0 %v1127
      %1159 = vperm.xlu0 %1158, %v845
      %v1160 = vpop.permute.xlu0 %1159
      %1161 = vset.pattern.permute.xlu0 %v1127
      %1162 = vperm.xlu0 %1161, %v846
      %v1163 = vpop.permute.xlu0 %1162
      %1164 = vset.pattern.permute.xlu0 %v1127
      %1165 = vperm.xlu0 %1164, %v847
      %v1166 = vpop.permute.xlu0 %1165
      %1167 = vset.pattern.permute.xlu0 %v1127
      %1168 = vperm.xlu0 %1167, %v848
      %v1169 = vpop.permute.xlu0 %1168
      %1170 = vset.pattern.permute.xlu0 %v1127
      %1171 = vperm.xlu0 %1170, %v849
      %v1172 = vpop.permute.xlu0 %1171
      %1173 = vset.pattern.permute.xlu0 %v1127
      %1174 = vperm.xlu0 %1173, %v850
      %v1175 = vpop.permute.xlu0 %1174
      %1176 = vxpose.xlu0.b32.start [1/16] %v1130, 128
      %1177 = vxpose.xlu0.b32.cont [2/16] %v1133, 128
      %1178 = vxpose.xlu0.b32.cont [3/16] %v1136, 128
      %1179 = vxpose.xlu0.b32.cont [4/16] %v1139, 128
      %1180 = vxpose.xlu0.b32.cont [5/16] %v1142, 128
      %1181 = vxpose.xlu0.b32.cont [6/16] %v1145, 128
      %1182 = vxpose.xlu0.b32.cont [7/16] %v1148, 128
      %1183 = vxpose.xlu0.b32.cont [8/16] %v1151, 128
      %1184 = vxpose.xlu0.b32.cont [9/16] %v1154, 128
      %1185 = vxpose.xlu0.b32.cont [10/16] %v1157, 128
      %1186 = vxpose.xlu0.b32.cont [11/16] %v1160, 128
      %1187 = vxpose.xlu0.b32.cont [12/16] %v1163, 128
      %1188 = vxpose.xlu0.b32.cont [13/16] %v1166, 128
      %1189 = vxpose.xlu0.b32.cont [14/16] %v1169, 128
      %1190 = vxpose.xlu0.b32.cont [15/16] %v1172, 128
      %1191 = vxpose.xlu0.b32.end [16/16] %v1175, 128
      %v1192 = vpop.trf.xlu0
      %v1193 = vpop.trf.xlu0
      %v1194 = vpop.trf.xlu0
      %v1195 = vpop.trf.xlu0
      %v1196 = vpop.trf.xlu0
      %v1197 = vpop.trf.xlu0
      %v1198 = vpop.trf.xlu0
      %v1199 = vpop.trf.xlu0
      %v1200 = vpop.trf.xlu0
      %v1201 = vpop.trf.xlu0
      %v1202 = vpop.trf.xlu0
      %v1203 = vpop.trf.xlu0
      %v1204 = vpop.trf.xlu0
      %v1205 = vpop.trf.xlu0
      %v1206 = vpop.trf.xlu0
      %v1207 = vpop.trf.xlu0
      %v1208 = vpack.c.bf16 %v1193, %v1192
      %1209 = vmatpush.bf16.msra.mxu0 %v1014
      %1210 = vmatpush.bf16.msra.mxu0 %v1012
      %1211 = vmatpush.bf16.msra.mxu0 %v1010
      %1212 = vmatpush.bf16.msra.mxu0 %v1008
      %1213 = vmatpush.bf16.msra.mxu0 %v1006
      %1214 = vmatpush.bf16.msra.mxu0 %v1004
      %1215 = vmatpush.bf16.msra.mxu0 %v1002
      %1216 = vmatpush.bf16.msra.mxu0 %v1000
      %1217 = vmatmul.bf16.gmra.mxu0 %v1208
      %v1218 = vpop.f32.mrf.mxu0
      %v1219 = vadd.f32 %v608, %v1218
      %v1220 = vpop.f32.mrf.mxu0
      %v1221 = vadd.f32 %v610, %v1220
      %1222 = vdwg.mxu0
      %1223 = vmatpush.bf16.msra.mxu0 %v1015
      %1224 = vmatpush.bf16.msra.mxu0 %v1013
      %1225 = vmatpush.bf16.msra.mxu0 %v1011
      %1226 = vmatpush.bf16.msra.mxu0 %v1009
      %1227 = vmatpush.bf16.msra.mxu0 %v1007
      %1228 = vmatpush.bf16.msra.mxu0 %v1005
      %1229 = vmatpush.bf16.msra.mxu0 %v1003
      %1230 = vmatpush.bf16.msra.mxu0 %v1001
      %1231 = vmatmul.bf16.gmra.mxu0 %v1208
      %v1232 = vpop.f32.mrf.mxu0
      %v1233 = vadd.f32 %v622, %v1232
      %v1234 = vpop.f32.mrf.mxu0
      %v1235 = vadd.f32 %v624, %v1234
      %1236 = vdwg.mxu0
      %v1237 = vadd.f32 %v1219, %v735
      %v1238 = vadd.f32 %v1233, %v784
      %v1239 = vadd.f32 %v1221, %v737
      %v1240 = vadd.f32 %v1235, %v786
      %v1241 = vsub.f32 0.0, %v1237
      %v1242 = vsub.f32 0.0, %v1239
      %v1243 = vmul.f32 %v1241, 1.442695
      %v1244 = vpow.pop %v1243
      %v1245 = vmul.f32 %v1242, 1.442695
      %v1246 = vpow.pop %v1245
      %v1247 = vadd.f32 %v1244, 1.0
      %v1248 = vadd.f32 %v1246, 1.0
      %v1249 = vrcp.pop %v1247
      %v1250 = vmul.f32 %v1247, %v1249
      %v1251 = vsub.f32 1.0, %v1250
      %v1252 = vmul.f32 %v1249, %v1251
      %v1253 = vadd.f32 %v1249, %v1252
      %vm1254 = vweird.f32 %v1247
      %vm1255 = vweird.f32 %v1249
      %vm1256 = vmor %vm1254, %vm1255
      %v1257 = vsel %vm1256, %v1249, %v1253
      %v1258 = vand.u32 2147483647, %v1247
      %vm1259 = vcmp.eq.f32.partialorder %v1258, 8.507059e+37
      %v1260 = vand.u32 %v1247, 2147483648
      %v1261 = vor.u32 1.1754944e-38, %v1260
      %v1262 = vsel %vm1259, %v1261, %v1257
      %v1263 = vmul.f32 1.0, %v1262
      %v1264 = vrcp.pop %v1248
      %v1265 = vmul.f32 %v1248, %v1264
      %v1266 = vsub.f32 1.0, %v1265
      %v1267 = vmul.f32 %v1264, %v1266
      %v1268 = vadd.f32 %v1264, %v1267
      %vm1269 = vweird.f32 %v1248
      %vm1270 = vweird.f32 %v1264
      %vm1271 = vmor %vm1269, %vm1270
      %v1272 = vsel %vm1271, %v1264, %v1268
      %v1273 = vand.u32 2147483647, %v1248
      %vm1274 = vcmp.eq.f32.partialorder %v1273, 8.507059e+37
      %v1275 = vand.u32 %v1248, 2147483648
      %v1276 = vor.u32 1.1754944e-38, %v1275
      %v1277 = vsel %vm1274, %v1276, %v1272
      %v1278 = vmul.f32 1.0, %v1277
      %v1279 = vmax.f32 %v1238, 0.0
      %v1280 = vmax.f32 %v1240, 0.0
      %v1281 = vand.u32 2147483647, %v1238
      %v1282 = vand.u32 2147483647, %v1240
      %v1283 = vsub.f32 0.0, %v1281
      %v1284 = vsub.f32 0.0, %v1282
      %v1285 = vmul.f32 %v1283, 1.442695
      %v1286 = vpow.pop %v1285
      %v1287 = vmul.f32 %v1284, 1.442695
      %v1288 = vpow.pop %v1287
      %v1289 = vadd.f32 %v1286, 1.0
      %v1290 = vadd.f32 %v1288, 1.0
      %v1291 = vlog2.pop %v1289
      %v1292 = vmul.f32 %v1291, 0.6931472
      %v1293 = vlog2.pop %v1290
      %v1294 = vmul.f32 %v1293, 0.6931472
      %v1295 = vadd.f32 %v1279, %v1292
      %v1296 = vadd.f32 %v1280, %v1294
      %v1297 = vmul.f32 %v1263, %v1295
      %v1298 = vmul.f32 %v1278, %v1296
      %v1299 = vadd.f32 %v1122, %v1297
      %v1300 = vadd.f32 %v1123, %v1298
      %v1301 = vperm.slane %v818, 2
      %vm1302 = vcmp.lt.s32.totalorder %v1301, 0
      %v1303 = vadd.s32 %v1301, 16
      %v1304 = vsel %vm1302, %v1303, %v1301
      %1305 = vset.pattern.permute.xlu0 %v1304
      %1306 = vperm.xlu0 %1305, %v835
      %v1307 = vpop.permute.xlu0 %1306
      %1308 = vset.pattern.permute.xlu0 %v1304
      %1309 = vperm.xlu0 %1308, %v836
      %v1310 = vpop.permute.xlu0 %1309
      %1311 = vset.pattern.permute.xlu0 %v1304
      %1312 = vperm.xlu0 %1311, %v837
      %v1313 = vpop.permute.xlu0 %1312
      %1314 = vset.pattern.permute.xlu0 %v1304
      %1315 = vperm.xlu0 %1314, %v838
      %v1316 = vpop.permute.xlu0 %1315
      %1317 = vset.pattern.permute.xlu0 %v1304
      %1318 = vperm.xlu0 %1317, %v839
      %v1319 = vpop.permute.xlu0 %1318
      %1320 = vset.pattern.permute.xlu0 %v1304
      %1321 = vperm.xlu0 %1320, %v840
      %v1322 = vpop.permute.xlu0 %1321
      %1323 = vset.pattern.permute.xlu0 %v1304
      %1324 = vperm.xlu0 %1323, %v841
      %v1325 = vpop.permute.xlu0 %1324
      %1326 = vset.pattern.permute.xlu0 %v1304
      %1327 = vperm.xlu0 %1326, %v842
      %v1328 = vpop.permute.xlu0 %1327
      %1329 = vset.pattern.permute.xlu0 %v1304
      %1330 = vperm.xlu0 %1329, %v843
      %v1331 = vpop.permute.xlu0 %1330
      %1332 = vset.pattern.permute.xlu0 %v1304
      %1333 = vperm.xlu0 %1332, %v844
      %v1334 = vpop.permute.xlu0 %1333
      %1335 = vset.pattern.permute.xlu0 %v1304
      %1336 = vperm.xlu0 %1335, %v845
      %v1337 = vpop.permute.xlu0 %1336
      %1338 = vset.pattern.permute.xlu0 %v1304
      %1339 = vperm.xlu0 %1338, %v846
      %v1340 = vpop.permute.xlu0 %1339
      %1341 = vset.pattern.permute.xlu0 %v1304
      %1342 = vperm.xlu0 %1341, %v847
      %v1343 = vpop.permute.xlu0 %1342
      %1344 = vset.pattern.permute.xlu0 %v1304
      %1345 = vperm.xlu0 %1344, %v848
      %v1346 = vpop.permute.xlu0 %1345
      %1347 = vset.pattern.permute.xlu0 %v1304
      %1348 = vperm.xlu0 %1347, %v849
      %v1349 = vpop.permute.xlu0 %1348
      %1350 = vset.pattern.permute.xlu0 %v1304
      %1351 = vperm.xlu0 %1350, %v850
      %v1352 = vpop.permute.xlu0 %1351
      %1353 = vxpose.xlu0.b32.start [1/16] %v1307, 128
      %1354 = vxpose.xlu0.b32.cont [2/16] %v1310, 128
      %1355 = vxpose.xlu0.b32.cont [3/16] %v1313, 128
      %1356 = vxpose.xlu0.b32.cont [4/16] %v1316, 128
      %1357 = vxpose.xlu0.b32.cont [5/16] %v1319, 128
      %1358 = vxpose.xlu0.b32.cont [6/16] %v1322, 128
      %1359 = vxpose.xlu0.b32.cont [7/16] %v1325, 128
      %1360 = vxpose.xlu0.b32.cont [8/16] %v1328, 128
      %1361 = vxpose.xlu0.b32.cont [9/16] %v1331, 128
      %1362 = vxpose.xlu0.b32.cont [10/16] %v1334, 128
      %1363 = vxpose.xlu0.b32.cont [11/16] %v1337, 128
      %1364 = vxpose.xlu0.b32.cont [12/16] %v1340, 128
      %1365 = vxpose.xlu0.b32.cont [13/16] %v1343, 128
      %1366 = vxpose.xlu0.b32.cont [14/16] %v1346, 128
      %1367 = vxpose.xlu0.b32.cont [15/16] %v1349, 128
      %1368 = vxpose.xlu0.b32.end [16/16] %v1352, 128
      %v1369 = vpop.trf.xlu0
      %v1370 = vpop.trf.xlu0
      %v1371 = vpop.trf.xlu0
      %v1372 = vpop.trf.xlu0
      %v1373 = vpop.trf.xlu0
      %v1374 = vpop.trf.xlu0
      %v1375 = vpop.trf.xlu0
      %v1376 = vpop.trf.xlu0
      %v1377 = vpop.trf.xlu0
      %v1378 = vpop.trf.xlu0
      %v1379 = vpop.trf.xlu0
      %v1380 = vpop.trf.xlu0
      %v1381 = vpop.trf.xlu0
      %v1382 = vpop.trf.xlu0
      %v1383 = vpop.trf.xlu0
      %v1384 = vpop.trf.xlu0
      %v1385 = vpack.c.bf16 %v1370, %v1369
      %1386 = vmatpush.bf16.msra.mxu0 %v1014
      %1387 = vmatpush.bf16.msra.mxu0 %v1012
      %1388 = vmatpush.bf16.msra.mxu0 %v1010
      %1389 = vmatpush.bf16.msra.mxu0 %v1008
      %1390 = vmatpush.bf16.msra.mxu0 %v1006
      %1391 = vmatpush.bf16.msra.mxu0 %v1004
      %1392 = vmatpush.bf16.msra.mxu0 %v1002
      %1393 = vmatpush.bf16.msra.mxu0 %v1000
      %1394 = vmatmul.bf16.gmra.mxu0 %v1385
      %v1395 = vpop.f32.mrf.mxu0
      %v1396 = vadd.f32 %v608, %v1395
      %v1397 = vpop.f32.mrf.mxu0
      %v1398 = vadd.f32 %v610, %v1397
      %1399 = vdwg.mxu0
      %1400 = vmatpush.bf16.msra.mxu0 %v1015
      %1401 = vmatpush.bf16.msra.mxu0 %v1013
      %1402 = vmatpush.bf16.msra.mxu0 %v1011
      %1403 = vmatpush.bf16.msra.mxu0 %v1009
      %1404 = vmatpush.bf16.msra.mxu0 %v1007
      %1405 = vmatpush.bf16.msra.mxu0 %v1005
      %1406 = vmatpush.bf16.msra.mxu0 %v1003
      %1407 = vmatpush.bf16.msra.mxu0 %v1001
      %1408 = vmatmul.bf16.gmra.mxu0 %v1385
      %v1409 = vpop.f32.mrf.mxu0
      %v1410 = vadd.f32 %v622, %v1409
      %v1411 = vpop.f32.mrf.mxu0
      %v1412 = vadd.f32 %v624, %v1411
      %1413 = vdwg.mxu0
      %v1414 = vadd.f32 %v1396, %v740
      %v1415 = vadd.f32 %v1410, %v789
      %v1416 = vadd.f32 %v1398, %v742
      %v1417 = vadd.f32 %v1412, %v791
      %v1418 = vsub.f32 0.0, %v1414
      %v1419 = vsub.f32 0.0, %v1416
      %v1420 = vmul.f32 %v1418, 1.442695
      %v1421 = vpow.pop %v1420
      %v1422 = vmul.f32 %v1419, 1.442695
      %v1423 = vpow.pop %v1422
      %v1424 = vadd.f32 %v1421, 1.0
      %v1425 = vadd.f32 %v1423, 1.0
      %v1426 = vrcp.pop %v1424
      %v1427 = vmul.f32 %v1424, %v1426
      %v1428 = vsub.f32 1.0, %v1427
      %v1429 = vmul.f32 %v1426, %v1428
      %v1430 = vadd.f32 %v1426, %v1429
      %vm1431 = vweird.f32 %v1424
      %vm1432 = vweird.f32 %v1426
      %vm1433 = vmor %vm1431, %vm1432
      %v1434 = vsel %vm1433, %v1426, %v1430
      %v1435 = vand.u32 2147483647, %v1424
      %vm1436 = vcmp.eq.f32.partialorder %v1435, 8.507059e+37
      %v1437 = vand.u32 %v1424, 2147483648
      %v1438 = vor.u32 1.1754944e-38, %v1437
      %v1439 = vsel %vm1436, %v1438, %v1434
      %v1440 = vmul.f32 1.0, %v1439
      %v1441 = vrcp.pop %v1425
      %v1442 = vmul.f32 %v1425, %v1441
      %v1443 = vsub.f32 1.0, %v1442
      %v1444 = vmul.f32 %v1441, %v1443
      %v1445 = vadd.f32 %v1441, %v1444
      %vm1446 = vweird.f32 %v1425
      %vm1447 = vweird.f32 %v1441
      %vm1448 = vmor %vm1446, %vm1447
      %v1449 = vsel %vm1448, %v1441, %v1445
      %v1450 = vand.u32 2147483647, %v1425
      %vm1451 = vcmp.eq.f32.partialorder %v1450, 8.507059e+37
      %v1452 = vand.u32 %v1425, 2147483648
      %v1453 = vor.u32 1.1754944e-38, %v1452
      %v1454 = vsel %vm1451, %v1453, %v1449
      %v1455 = vmul.f32 1.0, %v1454
      %v1456 = vmax.f32 %v1415, 0.0
      %v1457 = vmax.f32 %v1417, 0.0
      %v1458 = vand.u32 2147483647, %v1415
      %v1459 = vand.u32 2147483647, %v1417
      %v1460 = vsub.f32 0.0, %v1458
      %v1461 = vsub.f32 0.0, %v1459
      %v1462 = vmul.f32 %v1460, 1.442695
      %v1463 = vpow.pop %v1462
      %v1464 = vmul.f32 %v1461, 1.442695
      %v1465 = vpow.pop %v1464
      %v1466 = vadd.f32 %v1463, 1.0
      %v1467 = vadd.f32 %v1465, 1.0
      %v1468 = vlog2.pop %v1466
      %v1469 = vmul.f32 %v1468, 0.6931472
      %v1470 = vlog2.pop %v1467
      %v1471 = vmul.f32 %v1470, 0.6931472
      %v1472 = vadd.f32 %v1456, %v1469
      %v1473 = vadd.f32 %v1457, %v1471
      %v1474 = vmul.f32 %v1440, %v1472
      %v1475 = vmul.f32 %v1455, %v1473
      %v1476 = vadd.f32 %v1299, %v1474
      %v1477 = vadd.f32 %v1300, %v1475
      %v1478 = vperm.slane %v818, 3
      %vm1479 = vcmp.lt.s32.totalorder %v1478, 0
      %v1480 = vadd.s32 %v1478, 16
      %v1481 = vsel %vm1479, %v1480, %v1478
      %1482 = vset.pattern.permute.xlu0 %v1481
      %1483 = vperm.xlu0 %1482, %v835
      %v1484 = vpop.permute.xlu0 %1483
      %1485 = vset.pattern.permute.xlu0 %v1481
      %1486 = vperm.xlu0 %1485, %v836
      %v1487 = vpop.permute.xlu0 %1486
      %1488 = vset.pattern.permute.xlu0 %v1481
      %1489 = vperm.xlu0 %1488, %v837
      %v1490 = vpop.permute.xlu0 %1489
      %1491 = vset.pattern.permute.xlu0 %v1481
      %1492 = vperm.xlu0 %1491, %v838
      %v1493 = vpop.permute.xlu0 %1492
      %1494 = vset.pattern.permute.xlu0 %v1481
      %1495 = vperm.xlu0 %1494, %v839
      %v1496 = vpop.permute.xlu0 %1495
      %1497 = vset.pattern.permute.xlu0 %v1481
      %1498 = vperm.xlu0 %1497, %v840
      %v1499 = vpop.permute.xlu0 %1498
      %1500 = vset.pattern.permute.xlu0 %v1481
      %1501 = vperm.xlu0 %1500, %v841
      %v1502 = vpop.permute.xlu0 %1501
      %1503 = vset.pattern.permute.xlu0 %v1481
      %1504 = vperm.xlu0 %1503, %v842
      %v1505 = vpop.permute.xlu0 %1504
      %1506 = vset.pattern.permute.xlu0 %v1481
      %1507 = vperm.xlu0 %1506, %v843
      %v1508 = vpop.permute.xlu0 %1507
      %1509 = vset.pattern.permute.xlu0 %v1481
      %1510 = vperm.xlu0 %1509, %v844
      %v1511 = vpop.permute.xlu0 %1510
      %1512 = vset.pattern.permute.xlu0 %v1481
      %1513 = vperm.xlu0 %1512, %v845
      %v1514 = vpop.permute.xlu0 %1513
      %1515 = vset.pattern.permute.xlu0 %v1481
      %1516 = vperm.xlu0 %1515, %v846
      %v1517 = vpop.permute.xlu0 %1516
      %1518 = vset.pattern.permute.xlu0 %v1481
      %1519 = vperm.xlu0 %1518, %v847
      %v1520 = vpop.permute.xlu0 %1519
      %1521 = vset.pattern.permute.xlu0 %v1481
      %1522 = vperm.xlu0 %1521, %v848
      %v1523 = vpop.permute.xlu0 %1522
      %1524 = vset.pattern.permute.xlu0 %v1481
      %1525 = vperm.xlu0 %1524, %v849
      %v1526 = vpop.permute.xlu0 %1525
      %1527 = vset.pattern.permute.xlu0 %v1481
      %1528 = vperm.xlu0 %1527, %v850
      %v1529 = vpop.permute.xlu0 %1528
      %1530 = vxpose.xlu0.b32.start [1/16] %v1484, 128
      %1531 = vxpose.xlu0.b32.cont [2/16] %v1487, 128
      %1532 = vxpose.xlu0.b32.cont [3/16] %v1490, 128
      %1533 = vxpose.xlu0.b32.cont [4/16] %v1493, 128
      %1534 = vxpose.xlu0.b32.cont [5/16] %v1496, 128
      %1535 = vxpose.xlu0.b32.cont [6/16] %v1499, 128
      %1536 = vxpose.xlu0.b32.cont [7/16] %v1502, 128
      %1537 = vxpose.xlu0.b32.cont [8/16] %v1505, 128
      %1538 = vxpose.xlu0.b32.cont [9/16] %v1508, 128
      %1539 = vxpose.xlu0.b32.cont [10/16] %v1511, 128
      %1540 = vxpose.xlu0.b32.cont [11/16] %v1514, 128
      %1541 = vxpose.xlu0.b32.cont [12/16] %v1517, 128
      %1542 = vxpose.xlu0.b32.cont [13/16] %v1520, 128
      %1543 = vxpose.xlu0.b32.cont [14/16] %v1523, 128
      %1544 = vxpose.xlu0.b32.cont [15/16] %v1526, 128
      %1545 = vxpose.xlu0.b32.end [16/16] %v1529, 128
      %v1546 = vpop.trf.xlu0
      %v1547 = vpop.trf.xlu0
      %v1548 = vpop.trf.xlu0
      %v1549 = vpop.trf.xlu0
      %v1550 = vpop.trf.xlu0
      %v1551 = vpop.trf.xlu0
      %v1552 = vpop.trf.xlu0
      %v1553 = vpop.trf.xlu0
      %v1554 = vpop.trf.xlu0
      %v1555 = vpop.trf.xlu0
      %v1556 = vpop.trf.xlu0
      %v1557 = vpop.trf.xlu0
      %v1558 = vpop.trf.xlu0
      %v1559 = vpop.trf.xlu0
      %v1560 = vpop.trf.xlu0
      %v1561 = vpop.trf.xlu0
      %v1562 = vpack.c.bf16 %v1547, %v1546
      %1563 = vmatpush.bf16.msra.mxu0 %v1014
      %1564 = vmatpush.bf16.msra.mxu0 %v1012
      %1565 = vmatpush.bf16.msra.mxu0 %v1010
      %1566 = vmatpush.bf16.msra.mxu0 %v1008
      %1567 = vmatpush.bf16.msra.mxu0 %v1006
      %1568 = vmatpush.bf16.msra.mxu0 %v1004
      %1569 = vmatpush.bf16.msra.mxu0 %v1002
      %1570 = vmatpush.bf16.msra.mxu0 %v1000
      %1571 = vmatmul.bf16.gmra.mxu0 %v1562
      %v1572 = vpop.f32.mrf.mxu0
      %v1573 = vadd.f32 %v608, %v1572
      %v1574 = vpop.f32.mrf.mxu0
      %v1575 = vadd.f32 %v610, %v1574
      %1576 = vdwg.mxu0
      %1577 = vmatpush.bf16.msra.mxu0 %v1015
      %1578 = vmatpush.bf16.msra.mxu0 %v1013
      %1579 = vmatpush.bf16.msra.mxu0 %v1011
      %1580 = vmatpush.bf16.msra.mxu0 %v1009
      %1581 = vmatpush.bf16.msra.mxu0 %v1007
      %1582 = vmatpush.bf16.msra.mxu0 %v1005
      %1583 = vmatpush.bf16.msra.mxu0 %v1003
      %1584 = vmatpush.bf16.msra.mxu0 %v1001
      %1585 = vmatmul.bf16.gmra.mxu0 %v1562
      %v1586 = vpop.f32.mrf.mxu0
      %v1587 = vadd.f32 %v622, %v1586
      %v1588 = vpop.f32.mrf.mxu0
      %v1589 = vadd.f32 %v624, %v1588
      %1590 = vdwg.mxu0
      %v1591 = vadd.f32 %v1573, %v745
      %v1592 = vadd.f32 %v1587, %v794
      %v1593 = vadd.f32 %v1575, %v747
      %v1594 = vadd.f32 %v1589, %v796
      %v1595 = vsub.f32 0.0, %v1591
      %v1596 = vsub.f32 0.0, %v1593
      %v1597 = vmul.f32 %v1595, 1.442695
      %v1598 = vpow.pop %v1597
      %v1599 = vmul.f32 %v1596, 1.442695
      %v1600 = vpow.pop %v1599
      %v1601 = vadd.f32 %v1598, 1.0
      %v1602 = vadd.f32 %v1600, 1.0
      %v1603 = vrcp.pop %v1601
      %v1604 = vmul.f32 %v1601, %v1603
      %v1605 = vsub.f32 1.0, %v1604
      %v1606 = vmul.f32 %v1603, %v1605
      %v1607 = vadd.f32 %v1603, %v1606
      %vm1608 = vweird.f32 %v1601
      %vm1609 = vweird.f32 %v1603
      %vm1610 = vmor %vm1608, %vm1609
      %v1611 = vsel %vm1610, %v1603, %v1607
      %v1612 = vand.u32 2147483647, %v1601
      %vm1613 = vcmp.eq.f32.partialorder %v1612, 8.507059e+37
      %v1614 = vand.u32 %v1601, 2147483648
      %v1615 = vor.u32 1.1754944e-38, %v1614
      %v1616 = vsel %vm1613, %v1615, %v1611
      %v1617 = vmul.f32 1.0, %v1616
      %v1618 = vrcp.pop %v1602
      %v1619 = vmul.f32 %v1602, %v1618
      %v1620 = vsub.f32 1.0, %v1619
      %v1621 = vmul.f32 %v1618, %v1620
      %v1622 = vadd.f32 %v1618, %v1621
      %vm1623 = vweird.f32 %v1602
      %vm1624 = vweird.f32 %v1618
      %vm1625 = vmor %vm1623, %vm1624
      %v1626 = vsel %vm1625, %v1618, %v1622
      %v1627 = vand.u32 2147483647, %v1602
      %vm1628 = vcmp.eq.f32.partialorder %v1627, 8.507059e+37
      %v1629 = vand.u32 %v1602, 2147483648
      %v1630 = vor.u32 1.1754944e-38, %v1629
      %v1631 = vsel %vm1628, %v1630, %v1626
      %v1632 = vmul.f32 1.0, %v1631
      %v1633 = vmax.f32 %v1592, 0.0
      %v1634 = vmax.f32 %v1594, 0.0
      %v1635 = vand.u32 2147483647, %v1592
      %v1636 = vand.u32 2147483647, %v1594
      %v1637 = vsub.f32 0.0, %v1635
      %v1638 = vsub.f32 0.0, %v1636
      %v1639 = vmul.f32 %v1637, 1.442695
      %v1640 = vpow.pop %v1639
      %v1641 = vmul.f32 %v1638, 1.442695
      %v1642 = vpow.pop %v1641
      %v1643 = vadd.f32 %v1640, 1.0
      %v1644 = vadd.f32 %v1642, 1.0
      %v1645 = vlog2.pop %v1643
      %v1646 = vmul.f32 %v1645, 0.6931472
      %v1647 = vlog2.pop %v1644
      %v1648 = vmul.f32 %v1647, 0.6931472
      %v1649 = vadd.f32 %v1633, %v1646
      %v1650 = vadd.f32 %v1634, %v1648
      %v1651 = vmul.f32 %v1617, %v1649
      %v1652 = vmul.f32 %v1632, %v1650
      %v1653 = vadd.f32 %v1476, %v1651
      %v1654 = vadd.f32 %v1477, %v1652
      %v1655 = vperm.slane %v818, 4
      %vm1656 = vcmp.lt.s32.totalorder %v1655, 0
      %v1657 = vadd.s32 %v1655, 16
      %v1658 = vsel %vm1656, %v1657, %v1655
      %1659 = vset.pattern.permute.xlu0 %v1658
      %1660 = vperm.xlu0 %1659, %v835
      %v1661 = vpop.permute.xlu0 %1660
      %1662 = vset.pattern.permute.xlu0 %v1658
      %1663 = vperm.xlu0 %1662, %v836
      %v1664 = vpop.permute.xlu0 %1663
      %1665 = vset.pattern.permute.xlu0 %v1658
      %1666 = vperm.xlu0 %1665, %v837
      %v1667 = vpop.permute.xlu0 %1666
      %1668 = vset.pattern.permute.xlu0 %v1658
      %1669 = vperm.xlu0 %1668, %v838
      %v1670 = vpop.permute.xlu0 %1669
      %1671 = vset.pattern.permute.xlu0 %v1658
      %1672 = vperm.xlu0 %1671, %v839
      %v1673 = vpop.permute.xlu0 %1672
      %1674 = vset.pattern.permute.xlu0 %v1658
      %1675 = vperm.xlu0 %1674, %v840
      %v1676 = vpop.permute.xlu0 %1675
      %1677 = vset.pattern.permute.xlu0 %v1658
      %1678 = vperm.xlu0 %1677, %v841
      %v1679 = vpop.permute.xlu0 %1678
      %1680 = vset.pattern.permute.xlu0 %v1658
      %1681 = vperm.xlu0 %1680, %v842
      %v1682 = vpop.permute.xlu0 %1681
      %1683 = vset.pattern.permute.xlu0 %v1658
      %1684 = vperm.xlu0 %1683, %v843
      %v1685 = vpop.permute.xlu0 %1684
      %1686 = vset.pattern.permute.xlu0 %v1658
      %1687 = vperm.xlu0 %1686, %v844
      %v1688 = vpop.permute.xlu0 %1687
      %1689 = vset.pattern.permute.xlu0 %v1658
      %1690 = vperm.xlu0 %1689, %v845
      %v1691 = vpop.permute.xlu0 %1690
      %1692 = vset.pattern.permute.xlu0 %v1658
      %1693 = vperm.xlu0 %1692, %v846
      %v1694 = vpop.permute.xlu0 %1693
      %1695 = vset.pattern.permute.xlu0 %v1658
      %1696 = vperm.xlu0 %1695, %v847
      %v1697 = vpop.permute.xlu0 %1696
      %1698 = vset.pattern.permute.xlu0 %v1658
      %1699 = vperm.xlu0 %1698, %v848
      %v1700 = vpop.permute.xlu0 %1699
      %1701 = vset.pattern.permute.xlu0 %v1658
      %1702 = vperm.xlu0 %1701, %v849
      %v1703 = vpop.permute.xlu0 %1702
      %1704 = vset.pattern.permute.xlu0 %v1658
      %1705 = vperm.xlu0 %1704, %v850
      %v1706 = vpop.permute.xlu0 %1705
      %1707 = vxpose.xlu0.b32.start [1/16] %v1661, 128
      %1708 = vxpose.xlu0.b32.cont [2/16] %v1664, 128
      %1709 = vxpose.xlu0.b32.cont [3/16] %v1667, 128
      %1710 = vxpose.xlu0.b32.cont [4/16] %v1670, 128
      %1711 = vxpose.xlu0.b32.cont [5/16] %v1673, 128
      %1712 = vxpose.xlu0.b32.cont [6/16] %v1676, 128
      %1713 = vxpose.xlu0.b32.cont [7/16] %v1679, 128
      %1714 = vxpose.xlu0.b32.cont [8/16] %v1682, 128
      %1715 = vxpose.xlu0.b32.cont [9/16] %v1685, 128
      %1716 = vxpose.xlu0.b32.cont [10/16] %v1688, 128
      %1717 = vxpose.xlu0.b32.cont [11/16] %v1691, 128
      %1718 = vxpose.xlu0.b32.cont [12/16] %v1694, 128
      %1719 = vxpose.xlu0.b32.cont [13/16] %v1697, 128
      %1720 = vxpose.xlu0.b32.cont [14/16] %v1700, 128
      %1721 = vxpose.xlu0.b32.cont [15/16] %v1703, 128
      %1722 = vxpose.xlu0.b32.end [16/16] %v1706, 128
      %v1723 = vpop.trf.xlu0
      %v1724 = vpop.trf.xlu0
      %v1725 = vpop.trf.xlu0
      %v1726 = vpop.trf.xlu0
      %v1727 = vpop.trf.xlu0
      %v1728 = vpop.trf.xlu0
      %v1729 = vpop.trf.xlu0
      %v1730 = vpop.trf.xlu0
      %v1731 = vpop.trf.xlu0
      %v1732 = vpop.trf.xlu0
      %v1733 = vpop.trf.xlu0
      %v1734 = vpop.trf.xlu0
      %v1735 = vpop.trf.xlu0
      %v1736 = vpop.trf.xlu0
      %v1737 = vpop.trf.xlu0
      %v1738 = vpop.trf.xlu0
      %v1739 = vpack.c.bf16 %v1724, %v1723
      %1740 = vmatpush.bf16.msra.mxu0 %v1014
      %1741 = vmatpush.bf16.msra.mxu0 %v1012
      %1742 = vmatpush.bf16.msra.mxu0 %v1010
      %1743 = vmatpush.bf16.msra.mxu0 %v1008
      %1744 = vmatpush.bf16.msra.mxu0 %v1006
      %1745 = vmatpush.bf16.msra.mxu0 %v1004
      %1746 = vmatpush.bf16.msra.mxu0 %v1002
      %1747 = vmatpush.bf16.msra.mxu0 %v1000
      %1748 = vmatmul.bf16.gmra.mxu0 %v1739
      %v1749 = vpop.f32.mrf.mxu0
      %v1750 = vadd.f32 %v608, %v1749
      %v1751 = vpop.f32.mrf.mxu0
      %v1752 = vadd.f32 %v610, %v1751
      %1753 = vdwg.mxu0
      %1754 = vmatpush.bf16.msra.mxu0 %v1015
      %1755 = vmatpush.bf16.msra.mxu0 %v1013
      %1756 = vmatpush.bf16.msra.mxu0 %v1011
      %1757 = vmatpush.bf16.msra.mxu0 %v1009
      %1758 = vmatpush.bf16.msra.mxu0 %v1007
      %1759 = vmatpush.bf16.msra.mxu0 %v1005
      %1760 = vmatpush.bf16.msra.mxu0 %v1003
      %1761 = vmatpush.bf16.msra.mxu0 %v1001
      %1762 = vmatmul.bf16.gmra.mxu0 %v1739
      %v1763 = vpop.f32.mrf.mxu0
      %v1764 = vadd.f32 %v622, %v1763
      %v1765 = vpop.f32.mrf.mxu0
      %v1766 = vadd.f32 %v624, %v1765
      %1767 = vdwg.mxu0
      %v1768 = vadd.f32 %v1750, %v750
      %v1769 = vadd.f32 %v1764, %v799
      %v1770 = vadd.f32 %v1752, %v752
      %v1771 = vadd.f32 %v1766, %v801
      %v1772 = vsub.f32 0.0, %v1768
      %v1773 = vsub.f32 0.0, %v1770
      %v1774 = vmul.f32 %v1772, 1.442695
      %v1775 = vpow.pop %v1774
      %v1776 = vmul.f32 %v1773, 1.442695
      %v1777 = vpow.pop %v1776
      %v1778 = vadd.f32 %v1775, 1.0
      %v1779 = vadd.f32 %v1777, 1.0
      %v1780 = vrcp.pop %v1778
      %v1781 = vmul.f32 %v1778, %v1780
      %v1782 = vsub.f32 1.0, %v1781
      %v1783 = vmul.f32 %v1780, %v1782
      %v1784 = vadd.f32 %v1780, %v1783
      %vm1785 = vweird.f32 %v1778
      %vm1786 = vweird.f32 %v1780
      %vm1787 = vmor %vm1785, %vm1786
      %v1788 = vsel %vm1787, %v1780, %v1784
      %v1789 = vand.u32 2147483647, %v1778
      %vm1790 = vcmp.eq.f32.partialorder %v1789, 8.507059e+37
      %v1791 = vand.u32 %v1778, 2147483648
      %v1792 = vor.u32 1.1754944e-38, %v1791
      %v1793 = vsel %vm1790, %v1792, %v1788
      %v1794 = vmul.f32 1.0, %v1793
      %v1795 = vrcp.pop %v1779
      %v1796 = vmul.f32 %v1779, %v1795
      %v1797 = vsub.f32 1.0, %v1796
      %v1798 = vmul.f32 %v1795, %v1797
      %v1799 = vadd.f32 %v1795, %v1798
      %vm1800 = vweird.f32 %v1779
      %vm1801 = vweird.f32 %v1795
      %vm1802 = vmor %vm1800, %vm1801
      %v1803 = vsel %vm1802, %v1795, %v1799
      %v1804 = vand.u32 2147483647, %v1779
      %vm1805 = vcmp.eq.f32.partialorder %v1804, 8.507059e+37
      %v1806 = vand.u32 %v1779, 2147483648
      %v1807 = vor.u32 1.1754944e-38, %v1806
      %v1808 = vsel %vm1805, %v1807, %v1803
      %v1809 = vmul.f32 1.0, %v1808
      %v1810 = vmax.f32 %v1769, 0.0
      %v1811 = vmax.f32 %v1771, 0.0
      %v1812 = vand.u32 2147483647, %v1769
      %v1813 = vand.u32 2147483647, %v1771
      %v1814 = vsub.f32 0.0, %v1812
      %v1815 = vsub.f32 0.0, %v1813
      %v1816 = vmul.f32 %v1814, 1.442695
      %v1817 = vpow.pop %v1816
      %v1818 = vmul.f32 %v1815, 1.442695
      %v1819 = vpow.pop %v1818
      %v1820 = vadd.f32 %v1817, 1.0
      %v1821 = vadd.f32 %v1819, 1.0
      %v1822 = vlog2.pop %v1820
      %v1823 = vmul.f32 %v1822, 0.6931472
      %v1824 = vlog2.pop %v1821
      %v1825 = vmul.f32 %v1824, 0.6931472
      %v1826 = vadd.f32 %v1810, %v1823
      %v1827 = vadd.f32 %v1811, %v1825
      %v1828 = vmul.f32 %v1794, %v1826
      %v1829 = vmul.f32 %v1809, %v1827
      %v1830 = vadd.f32 %v1653, %v1828
      %v1831 = vadd.f32 %v1654, %v1829
      %v1832 = vperm.slane %v818, 5
      %vm1833 = vcmp.lt.s32.totalorder %v1832, 0
      %v1834 = vadd.s32 %v1832, 16
      %v1835 = vsel %vm1833, %v1834, %v1832
      %1836 = vset.pattern.permute.xlu0 %v1835
      %1837 = vperm.xlu0 %1836, %v835
      %v1838 = vpop.permute.xlu0 %1837
      %1839 = vset.pattern.permute.xlu0 %v1835
      %1840 = vperm.xlu0 %1839, %v836
      %v1841 = vpop.permute.xlu0 %1840
      %1842 = vset.pattern.permute.xlu0 %v1835
      %1843 = vperm.xlu0 %1842, %v837
      %v1844 = vpop.permute.xlu0 %1843
      %1845 = vset.pattern.permute.xlu0 %v1835
      %1846 = vperm.xlu0 %1845, %v838
      %v1847 = vpop.permute.xlu0 %1846
      %1848 = vset.pattern.permute.xlu0 %v1835
      %1849 = vperm.xlu0 %1848, %v839
      %v1850 = vpop.permute.xlu0 %1849
      %1851 = vset.pattern.permute.xlu0 %v1835
      %1852 = vperm.xlu0 %1851, %v840
      %v1853 = vpop.permute.xlu0 %1852
      %1854 = vset.pattern.permute.xlu0 %v1835
      %1855 = vperm.xlu0 %1854, %v841
      %v1856 = vpop.permute.xlu0 %1855
      %1857 = vset.pattern.permute.xlu0 %v1835
      %1858 = vperm.xlu0 %1857, %v842
      %v1859 = vpop.permute.xlu0 %1858
      %1860 = vset.pattern.permute.xlu0 %v1835
      %1861 = vperm.xlu0 %1860, %v843
      %v1862 = vpop.permute.xlu0 %1861
      %1863 = vset.pattern.permute.xlu0 %v1835
      %1864 = vperm.xlu0 %1863, %v844
      %v1865 = vpop.permute.xlu0 %1864
      %1866 = vset.pattern.permute.xlu0 %v1835
      %1867 = vperm.xlu0 %1866, %v845
      %v1868 = vpop.permute.xlu0 %1867
      %1869 = vset.pattern.permute.xlu0 %v1835
      %1870 = vperm.xlu0 %1869, %v846
      %v1871 = vpop.permute.xlu0 %1870
      %1872 = vset.pattern.permute.xlu0 %v1835
      %1873 = vperm.xlu0 %1872, %v847
      %v1874 = vpop.permute.xlu0 %1873
      %1875 = vset.pattern.permute.xlu0 %v1835
      %1876 = vperm.xlu0 %1875, %v848
      %v1877 = vpop.permute.xlu0 %1876
      %1878 = vset.pattern.permute.xlu0 %v1835
      %1879 = vperm.xlu0 %1878, %v849
      %v1880 = vpop.permute.xlu0 %1879
      %1881 = vset.pattern.permute.xlu0 %v1835
      %1882 = vperm.xlu0 %1881, %v850
      %v1883 = vpop.permute.xlu0 %1882
      %1884 = vxpose.xlu0.b32.start [1/16] %v1838, 128
      %1885 = vxpose.xlu0.b32.cont [2/16] %v1841, 128
      %1886 = vxpose.xlu0.b32.cont [3/16] %v1844, 128
      %1887 = vxpose.xlu0.b32.cont [4/16] %v1847, 128
      %1888 = vxpose.xlu0.b32.cont [5/16] %v1850, 128
      %1889 = vxpose.xlu0.b32.cont [6/16] %v1853, 128
      %1890 = vxpose.xlu0.b32.cont [7/16] %v1856, 128
      %1891 = vxpose.xlu0.b32.cont [8/16] %v1859, 128
      %1892 = vxpose.xlu0.b32.cont [9/16] %v1862, 128
      %1893 = vxpose.xlu0.b32.cont [10/16] %v1865, 128
      %1894 = vxpose.xlu0.b32.cont [11/16] %v1868, 128
      %1895 = vxpose.xlu0.b32.cont [12/16] %v1871, 128
      %1896 = vxpose.xlu0.b32.cont [13/16] %v1874, 128
      %1897 = vxpose.xlu0.b32.cont [14/16] %v1877, 128
      %1898 = vxpose.xlu0.b32.cont [15/16] %v1880, 128
      %1899 = vxpose.xlu0.b32.end [16/16] %v1883, 128
      %v1900 = vpop.trf.xlu0
      %v1901 = vpop.trf.xlu0
      %v1902 = vpop.trf.xlu0
      %v1903 = vpop.trf.xlu0
      %v1904 = vpop.trf.xlu0
      %v1905 = vpop.trf.xlu0
      %v1906 = vpop.trf.xlu0
      %v1907 = vpop.trf.xlu0
      %v1908 = vpop.trf.xlu0
      %v1909 = vpop.trf.xlu0
      %v1910 = vpop.trf.xlu0
      %v1911 = vpop.trf.xlu0
      %v1912 = vpop.trf.xlu0
      %v1913 = vpop.trf.xlu0
      %v1914 = vpop.trf.xlu0
      %v1915 = vpop.trf.xlu0
      %v1916 = vpack.c.bf16 %v1901, %v1900
      %1917 = vmatpush.bf16.msra.mxu0 %v1014
      %1918 = vmatpush.bf16.msra.mxu0 %v1012
      %1919 = vmatpush.bf16.msra.mxu0 %v1010
      %1920 = vmatpush.bf16.msra.mxu0 %v1008
      %1921 = vmatpush.bf16.msra.mxu0 %v1006
      %1922 = vmatpush.bf16.msra.mxu0 %v1004
      %1923 = vmatpush.bf16.msra.mxu0 %v1002
      %1924 = vmatpush.bf16.msra.mxu0 %v1000
      %1925 = vmatmul.bf16.gmra.mxu0 %v1916
      %v1926 = vpop.f32.mrf.mxu0
      %v1927 = vadd.f32 %v608, %v1926
      %v1928 = vpop.f32.mrf.mxu0
      %v1929 = vadd.f32 %v610, %v1928
      %1930 = vdwg.mxu0
      %1931 = vmatpush.bf16.msra.mxu0 %v1015
      %1932 = vmatpush.bf16.msra.mxu0 %v1013
      %1933 = vmatpush.bf16.msra.mxu0 %v1011
      %1934 = vmatpush.bf16.msra.mxu0 %v1009
      %1935 = vmatpush.bf16.msra.mxu0 %v1007
      %1936 = vmatpush.bf16.msra.mxu0 %v1005
      %1937 = vmatpush.bf16.msra.mxu0 %v1003
      %1938 = vmatpush.bf16.msra.mxu0 %v1001
      %1939 = vmatmul.bf16.gmra.mxu0 %v1916
      %v1940 = vpop.f32.mrf.mxu0
      %v1941 = vadd.f32 %v622, %v1940
      %v1942 = vpop.f32.mrf.mxu0
      %v1943 = vadd.f32 %v624, %v1942
      %1944 = vdwg.mxu0
      %v1945 = vadd.f32 %v1927, %v755
      %v1946 = vadd.f32 %v1941, %v804
      %v1947 = vadd.f32 %v1929, %v757
      %v1948 = vadd.f32 %v1943, %v806
      %v1949 = vsub.f32 0.0, %v1945
      %v1950 = vsub.f32 0.0, %v1947
      %v1951 = vmul.f32 %v1949, 1.442695
      %v1952 = vpow.pop %v1951
      %v1953 = vmul.f32 %v1950, 1.442695
      %v1954 = vpow.pop %v1953
      %v1955 = vadd.f32 %v1952, 1.0
      %v1956 = vadd.f32 %v1954, 1.0
      %v1957 = vrcp.pop %v1955
      %v1958 = vmul.f32 %v1955, %v1957
      %v1959 = vsub.f32 1.0, %v1958
      %v1960 = vmul.f32 %v1957, %v1959
      %v1961 = vadd.f32 %v1957, %v1960
      %vm1962 = vweird.f32 %v1955
      %vm1963 = vweird.f32 %v1957
      %vm1964 = vmor %vm1962, %vm1963
      %v1965 = vsel %vm1964, %v1957, %v1961
      %v1966 = vand.u32 2147483647, %v1955
      %vm1967 = vcmp.eq.f32.partialorder %v1966, 8.507059e+37
      %v1968 = vand.u32 %v1955, 2147483648
      %v1969 = vor.u32 1.1754944e-38, %v1968
      %v1970 = vsel %vm1967, %v1969, %v1965
      %v1971 = vmul.f32 1.0, %v1970
      %v1972 = vrcp.pop %v1956
      %v1973 = vmul.f32 %v1956, %v1972
      %v1974 = vsub.f32 1.0, %v1973
      %v1975 = vmul.f32 %v1972, %v1974
      %v1976 = vadd.f32 %v1972, %v1975
      %vm1977 = vweird.f32 %v1956
      %vm1978 = vweird.f32 %v1972
      %vm1979 = vmor %vm1977, %vm1978
      %v1980 = vsel %vm1979, %v1972, %v1976
      %v1981 = vand.u32 2147483647, %v1956
      %vm1982 = vcmp.eq.f32.partialorder %v1981, 8.507059e+37
      %v1983 = vand.u32 %v1956, 2147483648
      %v1984 = vor.u32 1.1754944e-38, %v1983
      %v1985 = vsel %vm1982, %v1984, %v1980
      %v1986 = vmul.f32 1.0, %v1985
      %v1987 = vmax.f32 %v1946, 0.0
      %v1988 = vmax.f32 %v1948, 0.0
      %v1989 = vand.u32 2147483647, %v1946
      %v1990 = vand.u32 2147483647, %v1948
      %v1991 = vsub.f32 0.0, %v1989
      %v1992 = vsub.f32 0.0, %v1990
      %v1993 = vmul.f32 %v1991, 1.442695
      %v1994 = vpow.pop %v1993
      %v1995 = vmul.f32 %v1992, 1.442695
      %v1996 = vpow.pop %v1995
      %v1997 = vadd.f32 %v1994, 1.0
      %v1998 = vadd.f32 %v1996, 1.0
      %v1999 = vlog2.pop %v1997
      %v2000 = vmul.f32 %v1999, 0.6931472
      %v2001 = vlog2.pop %v1998
      %v2002 = vmul.f32 %v2001, 0.6931472
      %v2003 = vadd.f32 %v1987, %v2000
      %v2004 = vadd.f32 %v1988, %v2002
      %v2005 = vmul.f32 %v1971, %v2003
      %v2006 = vmul.f32 %v1986, %v2004
      %v2007 = vadd.f32 %v1830, %v2005
      %v2008 = vadd.f32 %v1831, %v2006
      %v2009 = vperm.slane %v818, 6
      %vm2010 = vcmp.lt.s32.totalorder %v2009, 0
      %v2011 = vadd.s32 %v2009, 16
      %v2012 = vsel %vm2010, %v2011, %v2009
      %2013 = vset.pattern.permute.xlu0 %v2012
      %2014 = vperm.xlu0 %2013, %v835
      %v2015 = vpop.permute.xlu0 %2014
      %2016 = vset.pattern.permute.xlu0 %v2012
      %2017 = vperm.xlu0 %2016, %v836
      %v2018 = vpop.permute.xlu0 %2017
      %2019 = vset.pattern.permute.xlu0 %v2012
      %2020 = vperm.xlu0 %2019, %v837
      %v2021 = vpop.permute.xlu0 %2020
      %2022 = vset.pattern.permute.xlu0 %v2012
      %2023 = vperm.xlu0 %2022, %v838
      %v2024 = vpop.permute.xlu0 %2023
      %2025 = vset.pattern.permute.xlu0 %v2012
      %2026 = vperm.xlu0 %2025, %v839
      %v2027 = vpop.permute.xlu0 %2026
      %2028 = vset.pattern.permute.xlu0 %v2012
      %2029 = vperm.xlu0 %2028, %v840
      %v2030 = vpop.permute.xlu0 %2029
      %2031 = vset.pattern.permute.xlu0 %v2012
      %2032 = vperm.xlu0 %2031, %v841
      %v2033 = vpop.permute.xlu0 %2032
      %2034 = vset.pattern.permute.xlu0 %v2012
      %2035 = vperm.xlu0 %2034, %v842
      %v2036 = vpop.permute.xlu0 %2035
      %2037 = vset.pattern.permute.xlu0 %v2012
      %2038 = vperm.xlu0 %2037, %v843
      %v2039 = vpop.permute.xlu0 %2038
      %2040 = vset.pattern.permute.xlu0 %v2012
      %2041 = vperm.xlu0 %2040, %v844
      %v2042 = vpop.permute.xlu0 %2041
      %2043 = vset.pattern.permute.xlu0 %v2012
      %2044 = vperm.xlu0 %2043, %v845
      %v2045 = vpop.permute.xlu0 %2044
      %2046 = vset.pattern.permute.xlu0 %v2012
      %2047 = vperm.xlu0 %2046, %v846
      %v2048 = vpop.permute.xlu0 %2047
      %2049 = vset.pattern.permute.xlu0 %v2012
      %2050 = vperm.xlu0 %2049, %v847
      %v2051 = vpop.permute.xlu0 %2050
      %2052 = vset.pattern.permute.xlu0 %v2012
      %2053 = vperm.xlu0 %2052, %v848
      %v2054 = vpop.permute.xlu0 %2053
      %2055 = vset.pattern.permute.xlu0 %v2012
      %2056 = vperm.xlu0 %2055, %v849
      %v2057 = vpop.permute.xlu0 %2056
      %2058 = vset.pattern.permute.xlu0 %v2012
      %2059 = vperm.xlu0 %2058, %v850
      %v2060 = vpop.permute.xlu0 %2059
      %2061 = vxpose.xlu0.b32.start [1/16] %v2015, 128
      %2062 = vxpose.xlu0.b32.cont [2/16] %v2018, 128
      %2063 = vxpose.xlu0.b32.cont [3/16] %v2021, 128
      %2064 = vxpose.xlu0.b32.cont [4/16] %v2024, 128
      %2065 = vxpose.xlu0.b32.cont [5/16] %v2027, 128
      %2066 = vxpose.xlu0.b32.cont [6/16] %v2030, 128
      %2067 = vxpose.xlu0.b32.cont [7/16] %v2033, 128
      %2068 = vxpose.xlu0.b32.cont [8/16] %v2036, 128
      %2069 = vxpose.xlu0.b32.cont [9/16] %v2039, 128
      %2070 = vxpose.xlu0.b32.cont [10/16] %v2042, 128
      %2071 = vxpose.xlu0.b32.cont [11/16] %v2045, 128
      %2072 = vxpose.xlu0.b32.cont [12/16] %v2048, 128
      %2073 = vxpose.xlu0.b32.cont [13/16] %v2051, 128
      %2074 = vxpose.xlu0.b32.cont [14/16] %v2054, 128
      %2075 = vxpose.xlu0.b32.cont [15/16] %v2057, 128
      %2076 = vxpose.xlu0.b32.end [16/16] %v2060, 128
      %v2077 = vpop.trf.xlu0
      %v2078 = vpop.trf.xlu0
      %v2079 = vpop.trf.xlu0
      %v2080 = vpop.trf.xlu0
      %v2081 = vpop.trf.xlu0
      %v2082 = vpop.trf.xlu0
      %v2083 = vpop.trf.xlu0
      %v2084 = vpop.trf.xlu0
      %v2085 = vpop.trf.xlu0
      %v2086 = vpop.trf.xlu0
      %v2087 = vpop.trf.xlu0
      %v2088 = vpop.trf.xlu0
      %v2089 = vpop.trf.xlu0
      %v2090 = vpop.trf.xlu0
      %v2091 = vpop.trf.xlu0
      %v2092 = vpop.trf.xlu0
      %v2093 = vpack.c.bf16 %v2078, %v2077
      %2094 = vmatpush.bf16.msra.mxu0 %v1014
      %2095 = vmatpush.bf16.msra.mxu0 %v1012
      %2096 = vmatpush.bf16.msra.mxu0 %v1010
      %2097 = vmatpush.bf16.msra.mxu0 %v1008
      %2098 = vmatpush.bf16.msra.mxu0 %v1006
      %2099 = vmatpush.bf16.msra.mxu0 %v1004
      %2100 = vmatpush.bf16.msra.mxu0 %v1002
      %2101 = vmatpush.bf16.msra.mxu0 %v1000
      %2102 = vmatmul.bf16.gmra.mxu0 %v2093
      %v2103 = vpop.f32.mrf.mxu0
      %v2104 = vadd.f32 %v608, %v2103
      %v2105 = vpop.f32.mrf.mxu0
      %v2106 = vadd.f32 %v610, %v2105
      %2107 = vdwg.mxu0
      %2108 = vmatpush.bf16.msra.mxu0 %v1015
      %2109 = vmatpush.bf16.msra.mxu0 %v1013
      %2110 = vmatpush.bf16.msra.mxu0 %v1011
      %2111 = vmatpush.bf16.msra.mxu0 %v1009
      %2112 = vmatpush.bf16.msra.mxu0 %v1007
      %2113 = vmatpush.bf16.msra.mxu0 %v1005
      %2114 = vmatpush.bf16.msra.mxu0 %v1003
      %2115 = vmatpush.bf16.msra.mxu0 %v1001
      %2116 = vmatmul.bf16.gmra.mxu0 %v2093
      %v2117 = vpop.f32.mrf.mxu0
      %v2118 = vadd.f32 %v622, %v2117
      %v2119 = vpop.f32.mrf.mxu0
      %v2120 = vadd.f32 %v624, %v2119
      %2121 = vdwg.mxu0
      %v2122 = vadd.f32 %v2104, %v760
      %v2123 = vadd.f32 %v2118, %v809
      %v2124 = vadd.f32 %v2106, %v762
      %v2125 = vadd.f32 %v2120, %v811
      %v2126 = vsub.f32 0.0, %v2122
      %v2127 = vsub.f32 0.0, %v2124
      %v2128 = vmul.f32 %v2126, 1.442695
      %v2129 = vpow.pop %v2128
      %v2130 = vmul.f32 %v2127, 1.442695
      %v2131 = vpow.pop %v2130
      %v2132 = vadd.f32 %v2129, 1.0
      %v2133 = vadd.f32 %v2131, 1.0
      %v2134 = vrcp.pop %v2132
      %v2135 = vmul.f32 %v2132, %v2134
      %v2136 = vsub.f32 1.0, %v2135
      %v2137 = vmul.f32 %v2134, %v2136
      %v2138 = vadd.f32 %v2134, %v2137
      %vm2139 = vweird.f32 %v2132
      %vm2140 = vweird.f32 %v2134
      %vm2141 = vmor %vm2139, %vm2140
      %v2142 = vsel %vm2141, %v2134, %v2138
      %v2143 = vand.u32 2147483647, %v2132
      %vm2144 = vcmp.eq.f32.partialorder %v2143, 8.507059e+37
      %v2145 = vand.u32 %v2132, 2147483648
      %v2146 = vor.u32 1.1754944e-38, %v2145
      %v2147 = vsel %vm2144, %v2146, %v2142
      %v2148 = vmul.f32 1.0, %v2147
      %v2149 = vrcp.pop %v2133
      %v2150 = vmul.f32 %v2133, %v2149
      %v2151 = vsub.f32 1.0, %v2150
      %v2152 = vmul.f32 %v2149, %v2151
      %v2153 = vadd.f32 %v2149, %v2152
      %vm2154 = vweird.f32 %v2133
      %vm2155 = vweird.f32 %v2149
      %vm2156 = vmor %vm2154, %vm2155
      %v2157 = vsel %vm2156, %v2149, %v2153
      %v2158 = vand.u32 2147483647, %v2133
      %vm2159 = vcmp.eq.f32.partialorder %v2158, 8.507059e+37
      %v2160 = vand.u32 %v2133, 2147483648
      %v2161 = vor.u32 1.1754944e-38, %v2160
      %v2162 = vsel %vm2159, %v2161, %v2157
      %v2163 = vmul.f32 1.0, %v2162
      %v2164 = vmax.f32 %v2123, 0.0
      %v2165 = vmax.f32 %v2125, 0.0
      %v2166 = vand.u32 2147483647, %v2123
      %v2167 = vand.u32 2147483647, %v2125
      %v2168 = vsub.f32 0.0, %v2166
      %v2169 = vsub.f32 0.0, %v2167
      %v2170 = vmul.f32 %v2168, 1.442695
      %v2171 = vpow.pop %v2170
      %v2172 = vmul.f32 %v2169, 1.442695
      %v2173 = vpow.pop %v2172
      %v2174 = vadd.f32 %v2171, 1.0
      %v2175 = vadd.f32 %v2173, 1.0
      %v2176 = vlog2.pop %v2174
      %v2177 = vmul.f32 %v2176, 0.6931472
      %v2178 = vlog2.pop %v2175
      %v2179 = vmul.f32 %v2178, 0.6931472
      %v2180 = vadd.f32 %v2164, %v2177
      %v2181 = vadd.f32 %v2165, %v2179
      %v2182 = vmul.f32 %v2148, %v2180
      %v2183 = vmul.f32 %v2163, %v2181
      %v2184 = vadd.f32 %v2007, %v2182
      %v2185 = vadd.f32 %v2008, %v2183
      %v2186 = vperm.slane %v818, 7
      %vm2187 = vcmp.lt.s32.totalorder %v2186, 0
      %v2188 = vadd.s32 %v2186, 16
      %v2189 = vsel %vm2187, %v2188, %v2186
      %2190 = vset.pattern.permute.xlu0 %v2189
      %2191 = vperm.xlu0 %2190, %v835
      %v2192 = vpop.permute.xlu0 %2191
      %2193 = vset.pattern.permute.xlu0 %v2189
      %2194 = vperm.xlu0 %2193, %v836
      %v2195 = vpop.permute.xlu0 %2194
      %2196 = vset.pattern.permute.xlu0 %v2189
      %2197 = vperm.xlu0 %2196, %v837
      %v2198 = vpop.permute.xlu0 %2197
      %2199 = vset.pattern.permute.xlu0 %v2189
      %2200 = vperm.xlu0 %2199, %v838
      %v2201 = vpop.permute.xlu0 %2200
      %2202 = vset.pattern.permute.xlu0 %v2189
      %2203 = vperm.xlu0 %2202, %v839
      %v2204 = vpop.permute.xlu0 %2203
      %2205 = vset.pattern.permute.xlu0 %v2189
      %2206 = vperm.xlu0 %2205, %v840
      %v2207 = vpop.permute.xlu0 %2206
      %2208 = vset.pattern.permute.xlu0 %v2189
      %2209 = vperm.xlu0 %2208, %v841
      %v2210 = vpop.permute.xlu0 %2209
      %2211 = vset.pattern.permute.xlu0 %v2189
      %2212 = vperm.xlu0 %2211, %v842
      %v2213 = vpop.permute.xlu0 %2212
      %2214 = vset.pattern.permute.xlu0 %v2189
      %2215 = vperm.xlu0 %2214, %v843
      %v2216 = vpop.permute.xlu0 %2215
      %2217 = vset.pattern.permute.xlu0 %v2189
      %2218 = vperm.xlu0 %2217, %v844
      %v2219 = vpop.permute.xlu0 %2218
      %2220 = vset.pattern.permute.xlu0 %v2189
      %2221 = vperm.xlu0 %2220, %v845
      %v2222 = vpop.permute.xlu0 %2221
      %2223 = vset.pattern.permute.xlu0 %v2189
      %2224 = vperm.xlu0 %2223, %v846
      %v2225 = vpop.permute.xlu0 %2224
      %2226 = vset.pattern.permute.xlu0 %v2189
      %2227 = vperm.xlu0 %2226, %v847
      %v2228 = vpop.permute.xlu0 %2227
      %2229 = vset.pattern.permute.xlu0 %v2189
      %2230 = vperm.xlu0 %2229, %v848
      %v2231 = vpop.permute.xlu0 %2230
      %2232 = vset.pattern.permute.xlu0 %v2189
      %2233 = vperm.xlu0 %2232, %v849
      %v2234 = vpop.permute.xlu0 %2233
      %2235 = vset.pattern.permute.xlu0 %v2189
      %2236 = vperm.xlu0 %2235, %v850
      %v2237 = vpop.permute.xlu0 %2236
      %2238 = vxpose.xlu0.b32.start [1/16] %v2192, 128
      %2239 = vxpose.xlu0.b32.cont [2/16] %v2195, 128
      %2240 = vxpose.xlu0.b32.cont [3/16] %v2198, 128
      %2241 = vxpose.xlu0.b32.cont [4/16] %v2201, 128
      %2242 = vxpose.xlu0.b32.cont [5/16] %v2204, 128
      %2243 = vxpose.xlu0.b32.cont [6/16] %v2207, 128
      %2244 = vxpose.xlu0.b32.cont [7/16] %v2210, 128
      %2245 = vxpose.xlu0.b32.cont [8/16] %v2213, 128
      %2246 = vxpose.xlu0.b32.cont [9/16] %v2216, 128
      %2247 = vxpose.xlu0.b32.cont [10/16] %v2219, 128
      %2248 = vxpose.xlu0.b32.cont [11/16] %v2222, 128
      %2249 = vxpose.xlu0.b32.cont [12/16] %v2225, 128
      %2250 = vxpose.xlu0.b32.cont [13/16] %v2228, 128
      %2251 = vxpose.xlu0.b32.cont [14/16] %v2231, 128
      %2252 = vxpose.xlu0.b32.cont [15/16] %v2234, 128
      %2253 = vxpose.xlu0.b32.end [16/16] %v2237, 128
      %v2254 = vpop.trf.xlu0
      %v2255 = vpop.trf.xlu0
      %v2256 = vpop.trf.xlu0
      %v2257 = vpop.trf.xlu0
      %v2258 = vpop.trf.xlu0
      %v2259 = vpop.trf.xlu0
      %v2260 = vpop.trf.xlu0
      %v2261 = vpop.trf.xlu0
      %v2262 = vpop.trf.xlu0
      %v2263 = vpop.trf.xlu0
      %v2264 = vpop.trf.xlu0
      %v2265 = vpop.trf.xlu0
      %v2266 = vpop.trf.xlu0
      %v2267 = vpop.trf.xlu0
      %v2268 = vpop.trf.xlu0
      %v2269 = vpop.trf.xlu0
      %v2270 = vpack.c.bf16 %v2255, %v2254
      %2271 = vmatpush.bf16.msra.mxu0 %v1014
      %2272 = vmatpush.bf16.msra.mxu0 %v1012
      %2273 = vmatpush.bf16.msra.mxu0 %v1010
      %2274 = vmatpush.bf16.msra.mxu0 %v1008
      %2275 = vmatpush.bf16.msra.mxu0 %v1006
      %2276 = vmatpush.bf16.msra.mxu0 %v1004
      %2277 = vmatpush.bf16.msra.mxu0 %v1002
      %2278 = vmatpush.bf16.msra.mxu0 %v1000
      %2279 = vmatmul.bf16.gmra.mxu0 %v2270
      %v2280 = vpop.f32.mrf.mxu0
      %v2281 = vadd.f32 %v608, %v2280
      %v2282 = vpop.f32.mrf.mxu0
      %v2283 = vadd.f32 %v610, %v2282
      %2284 = vdwg.mxu0
      %2285 = vmatpush.bf16.msra.mxu0 %v1015
      %2286 = vmatpush.bf16.msra.mxu0 %v1013
      %2287 = vmatpush.bf16.msra.mxu0 %v1011
      %2288 = vmatpush.bf16.msra.mxu0 %v1009
      %2289 = vmatpush.bf16.msra.mxu0 %v1007
      %2290 = vmatpush.bf16.msra.mxu0 %v1005
      %2291 = vmatpush.bf16.msra.mxu0 %v1003
      %2292 = vmatpush.bf16.msra.mxu0 %v1001
      %2293 = vmatmul.bf16.gmra.mxu0 %v2270
      %v2294 = vpop.f32.mrf.mxu0
      %v2295 = vadd.f32 %v622, %v2294
      %v2296 = vpop.f32.mrf.mxu0
      %v2297 = vadd.f32 %v624, %v2296
      %2298 = vdwg.mxu0
      %v2299 = vadd.f32 %v2281, %v765
      %v2300 = vadd.f32 %v2295, %v814
      %v2301 = vadd.f32 %v2283, %v767
      %v2302 = vadd.f32 %v2297, %v816
      %v2303 = vsub.f32 0.0, %v2299
      %v2304 = vsub.f32 0.0, %v2301
      %v2305 = vmul.f32 %v2303, 1.442695
      %v2306 = vpow.pop %v2305
      %v2307 = vmul.f32 %v2304, 1.442695
      %v2308 = vpow.pop %v2307
      %v2309 = vadd.f32 %v2306, 1.0
      %v2310 = vadd.f32 %v2308, 1.0
      %v2311 = vrcp.pop %v2309
      %v2312 = vmul.f32 %v2309, %v2311
      %v2313 = vsub.f32 1.0, %v2312
      %v2314 = vmul.f32 %v2311, %v2313
      %v2315 = vadd.f32 %v2311, %v2314
      %vm2316 = vweird.f32 %v2309
      %vm2317 = vweird.f32 %v2311
      %vm2318 = vmor %vm2316, %vm2317
      %v2319 = vsel %vm2318, %v2311, %v2315
      %v2320 = vand.u32 2147483647, %v2309
      %vm2321 = vcmp.eq.f32.partialorder %v2320, 8.507059e+37
      %v2322 = vand.u32 %v2309, 2147483648
      %v2323 = vor.u32 1.1754944e-38, %v2322
      %v2324 = vsel %vm2321, %v2323, %v2319
      %v2325 = vmul.f32 1.0, %v2324
      %v2326 = vrcp.pop %v2310
      %v2327 = vmul.f32 %v2310, %v2326
      %v2328 = vsub.f32 1.0, %v2327
      %v2329 = vmul.f32 %v2326, %v2328
      %v2330 = vadd.f32 %v2326, %v2329
      %vm2331 = vweird.f32 %v2310
      %vm2332 = vweird.f32 %v2326
      %vm2333 = vmor %vm2331, %vm2332
      %v2334 = vsel %vm2333, %v2326, %v2330
      %v2335 = vand.u32 2147483647, %v2310
      %vm2336 = vcmp.eq.f32.partialorder %v2335, 8.507059e+37
      %v2337 = vand.u32 %v2310, 2147483648
      %v2338 = vor.u32 1.1754944e-38, %v2337
      %v2339 = vsel %vm2336, %v2338, %v2334
      %v2340 = vmul.f32 1.0, %v2339
      %v2341 = vmax.f32 %v2300, 0.0
      %v2342 = vmax.f32 %v2302, 0.0
      %v2343 = vand.u32 2147483647, %v2300
      %v2344 = vand.u32 2147483647, %v2302
      %v2345 = vsub.f32 0.0, %v2343
      %v2346 = vsub.f32 0.0, %v2344
      %v2347 = vmul.f32 %v2345, 1.442695
      %v2348 = vpow.pop %v2347
      %v2349 = vmul.f32 %v2346, 1.442695
      %v2350 = vpow.pop %v2349
      %v2351 = vadd.f32 %v2348, 1.0
      %v2352 = vadd.f32 %v2350, 1.0
      %v2353 = vlog2.pop %v2351
      %v2354 = vmul.f32 %v2353, 0.6931472
      %v2355 = vlog2.pop %v2352
      %v2356 = vmul.f32 %v2355, 0.6931472
      %v2357 = vadd.f32 %v2341, %v2354
      %v2358 = vadd.f32 %v2342, %v2356
      %v2359 = vmul.f32 %v2325, %v2357
      %v2360 = vmul.f32 %v2340, %v2358
      %v2361 = vadd.f32 %v2184, %v2359
      %v2362 = vadd.f32 %v2185, %v2360
      %v2363 = vld [vmem:[%s483] sm:$0x1]
      %v2364 = vld [vmem:[%s483 + $0x1] sm:$0x1]
      %v2365 = vperm.slane %v2363, 0
      %v2366 = vmul.f32 %v2361, %v2365
      %v2367 = vmul.f32 %v2362, %v2365
      %v2368 = vadd.f32 %v493, %v2366
      %v2369 = vadd.f32 %v494, %v2367
      %v2370 = vperm.slane %v2364, 0
      %v2371 = vadd.f32 %v2368, %v2370
      %v2372 = vadd.f32 %v2369, %v2370
      %v2373 = vmax.f32 %v2371, 0.0
      %v2374 = vmax.f32 %v2372, 0.0
      %v2375 = vand.u32 2147483647, %v2371
      %v2376 = vand.u32 2147483647, %v2372
      %v2377 = vsub.f32 0.0, %v2375
      %v2378 = vsub.f32 0.0, %v2376
      %v2379 = vmul.f32 %v2377, 1.442695
      %v2380 = vpow.pop %v2379
      %v2381 = vmul.f32 %v2378, 1.442695
      %v2382 = vpow.pop %v2381
      %v2383 = vadd.f32 %v2380, 1.0
      %v2384 = vadd.f32 %v2382, 1.0
      %v2385 = vlog2.pop %v2383
      %v2386 = vmul.f32 %v2385, 0.6931472
      %v2387 = vlog2.pop %v2384
      %v2388 = vmul.f32 %v2387, 0.6931472
      %v2389 = vadd.f32 %v2373, %v2386
      %v2390 = vadd.f32 %v2374, %v2388
      %2391 = vst [vmem:[#allocation2] sm:$0xff] %v2389
      %2392 = vst [vmem:[#allocation2 + $0x8] sm:$0xff] %v2390
      %p2393 = scmp.eq.s32.totalorder %s34, 2
      // Predicated region
      $region73: #{cgcnn_forward.1} parent=67 // pred_check
        %p2394 = pneg %p2393
      $region74: #{cgcnn_forward.1} parent=67 // pred_check_branch
        %2396 = sbr.rel (%p2394) target = $region76
      $region75: #{cgcnn_forward.1} parent=67 // pred_region
        %s2397 = sld [smem:[#allocation4]]
        %s2398 = scalar_lea.vmem [#allocation2], %s2397
        %v2399 = vld [vmem:[%s2398] sm:$0x1]
        %s2400 = sld [smem:[#allocation4 + $0x1]]
        %s2401 = scalar_lea.vmem [#allocation2], %s2400
        %v2402 = vld [vmem:[%s2401] sm:$0x1]
        %v2404 = vrot.slane %v2402, 7
        %vm2406 = vcmask 1040384
        %v2407 = vsel %vm2406, %v2399, %v2404
        %v2408 = vmax.f32 %v2407, 0.0
        %v2409 = vand.u32 2147483647, %v2407
        %v2410 = vsub.f32 0.0, %v2409
        %v2411 = vmul.f32 %v2410, 1.442695
        %v2412 = vpow.pop %v2411
        %v2413 = vadd.f32 %v2412, 1.0
        %v2414 = vlog2.pop %v2413
        %v2415 = vmul.f32 %v2414, 0.6931472
        %v2416 = vadd.f32 %v2408, %v2415
        %v2417 = vld [vmem:[%s9] sm:$0xff]
        %v2418 = vld [vmem:[%s9 + $0x8] sm:$0xff]
        %v2419 = vld [vmem:[%s9 + $0x10] sm:$0xff]
        %v2420 = vld [vmem:[%s9 + $0x18] sm:$0xff]
        %v2421 = vld [vmem:[%s9 + $0x20] sm:$0xff]
        %v2422 = vld [vmem:[%s9 + $0x28] sm:$0xff]
        %v2423 = vld [vmem:[%s9 + $0x30] sm:$0xff]
        %v2424 = vld [vmem:[%s9 + $0x38] sm:$0xff]
        %v2425 = vld [vmem:[%s9 + $0x40] sm:$0xff]
        %v2426 = vld [vmem:[%s9 + $0x48] sm:$0xff]
        %v2427 = vld [vmem:[%s9 + $0x50] sm:$0xff]
        %v2428 = vld [vmem:[%s9 + $0x58] sm:$0xff]
        %v2429 = vld [vmem:[%s9 + $0x60] sm:$0xff]
        %v2430 = vld [vmem:[%s9 + $0x68] sm:$0xff]
        %v2431 = vld [vmem:[%s9 + $0x70] sm:$0xff]
        %v2432 = vld [vmem:[%s9 + $0x78] sm:$0xff]
        %v2433 = vld [vmem:[%s10] sm:$0x3]
        %2434 = vmatpush.msra.mxu0 %v2432
        %2435 = vmatpush.msra.mxu0 %v2431
        %2436 = vmatpush.msra.mxu0 %v2430
        %2437 = vmatpush.msra.mxu0 %v2429
        %2438 = vmatpush.msra.mxu0 %v2428
        %2439 = vmatpush.msra.mxu0 %v2427
        %2440 = vmatpush.msra.mxu0 %v2426
        %2441 = vmatpush.msra.mxu0 %v2425
        %2442 = vmatpush.msra.mxu0 %v2424
        %2443 = vmatpush.msra.mxu0 %v2423
        %2444 = vmatpush.msra.mxu0 %v2422
        %2445 = vmatpush.msra.mxu0 %v2421
        %2446 = vmatpush.msra.mxu0 %v2420
        %2447 = vmatpush.msra.mxu0 %v2419
        %2448 = vmatpush.msra.mxu0 %v2418
        %2449 = vmatpush.msra.mxu0 %v2417
        %2450 = vmatmul.f32.gmra.mxu0 %v2416
        %v2451 = vpop.f32.mrf.mxu0
        %v2452 = vadd.f32 %v2433, %v2451
        %2453 = vdwg.mxu0
        %v2454 = vmax.f32 %v2452, 0.0
        %v2455 = vand.u32 2147483647, %v2452
        %v2456 = vsub.f32 0.0, %v2455
        %v2457 = vmul.f32 %v2456, 1.442695
        %v2458 = vpow.pop %v2457
        %v2459 = vadd.f32 %v2458, 1.0
        %v2460 = vlog2.pop %v2459
        %v2461 = vmul.f32 %v2460, 0.6931472
        %v2462 = vadd.f32 %v2454, %v2461
        %v2463 = vld [vmem:[%s11] sm:$0xff]
        %v2464 = vld [vmem:[%s11 + $0x8] sm:$0xff]
        %v2465 = vld [vmem:[%s11 + $0x10] sm:$0xff]
        %v2466 = vld [vmem:[%s11 + $0x18] sm:$0xff]
        %v2467 = vld [vmem:[%s11 + $0x20] sm:$0xff]
        %v2468 = vld [vmem:[%s11 + $0x28] sm:$0xff]
        %v2469 = vld [vmem:[%s11 + $0x30] sm:$0xff]
        %v2470 = vld [vmem:[%s11 + $0x38] sm:$0xff]
        %v2471 = vld [vmem:[#allocation5] sm:$0x1]
        %v2473 = vperm.slane %v2471, 0
        %vm2475 = vcmask 523264
        %v2477 = vsel %vm2475, %v2462, 0
        %2479 = vmatpush.msra.mxu0 0.0
        %2480 = vmatpush.msra.mxu0 0.0
        %2481 = vmatpush.msra.mxu0 0.0
        %2482 = vmatpush.msra.mxu0 0.0
        %2483 = vmatpush.msra.mxu0 0.0
        %2484 = vmatpush.msra.mxu0 0.0
        %2485 = vmatpush.msra.mxu0 0.0
        %2486 = vmatpush.msra.mxu0 0.0
        %2487 = vmatpush.msra.mxu0 %v2470
        %2488 = vmatpush.msra.mxu0 %v2469
        %2489 = vmatpush.msra.mxu0 %v2468
        %2490 = vmatpush.msra.mxu0 %v2467
        %2491 = vmatpush.msra.mxu0 %v2466
        %2492 = vmatpush.msra.mxu0 %v2465
        %2493 = vmatpush.msra.mxu0 %v2464
        %2494 = vmatpush.msra.mxu0 %v2463
        %2495 = vmatmul.f32.gmra.mxu0 %v2477
        %v2496 = vpop.f32.mrf.mxu0
        %v2497 = vadd.f32 %v2473, %v2496
        %2498 = vdwg.mxu0
        %vm2499 = vcmask 1024
        %2500 = vst.msk [vmem:[%s13] sm:$0x3] %vm2499, %v2497
      $region76: #{cgcnn_forward.1} parent=67 // pred_fallthru
        _
      // Predicated region
      $region77: #{cgcnn_forward.1} parent=67 // pred_check
        %p2501 = pneg %p324
      $region78: #{cgcnn_forward.1} parent=67 // pred_check_branch
        %2503 = sbr.rel (%p2501) target = $region80
      $region79: #{cgcnn_forward.1} parent=67 // pred_region
        _
      $region80: #{cgcnn_forward.1} parent=67 // pred_fallthru
        _
      // Predicated region
      $region81: #{cgcnn_forward.1} parent=67 // pred_check
        %p2504 = pneg %p324
      $region82: #{cgcnn_forward.1} parent=67 // pred_check_branch
        %2506 = sbr.rel (%p2504) target = $region84
      $region83: #{cgcnn_forward.1} parent=67 // pred_region
        _
      $region84: #{cgcnn_forward.1} parent=67 // pred_fallthru
        _
    $region68: #{cgcnn_forward.1} parent=5 // pred_fallthru
      _
    %p2507 = scmp.le.s32.totalorder 2, %s29
    // Predicated region
    $region85: #{cgcnn_forward.1} parent=5 // pred_check
      %p2508 = pneg %p2507
    $region86: #{cgcnn_forward.1} parent=5 // pred_check_branch
      %2510 = sbr.rel (%p2508) target = $region88
    $region87: #{cgcnn_forward.1} parent=5 // pred_region
      %s2511 = ssub.s32 %s29, 2
    $region88: #{cgcnn_forward.1} parent=5 // pred_fallthru
      _
  $region6: #{cgcnn_forward.1} parent=0 // loop_footer
    %s33 = sadd.s32 1, %s29
  $region7: #{cgcnn_forward.1} parent=0 // loop_footer_branch
    %28 = sbr.rel target = $region3
  $region8: #{cgcnn_forward.1} parent=0 // loop_exit
    _

</llo_original>
